<compile_context>
chip_gen: v5e
topology: v5e:2x2
jax: 0.10.0
libtpu: 0.0.40
codegen_flags: <defaults>
</compile_context>

<pallas_src>
import math

import jax
import jax.numpy as jnp
from jax import lax
from jax.experimental import pallas as pl
from jax.experimental.pallas import tpu as pltpu

# ---------------------------------------------------------------------------
# Architecture constants (match the PyTorch module instance under test).
# ---------------------------------------------------------------------------
BATCH = 2
N_CHANNELS = 4
SEQ_LEN = 16
HIDDEN = 32
T = 8                        # sequence length after the stride-2 conv
NB = T * BATCH               # rows of the time-major activation matrices (16)
LANES = 128                  # lane-dense output width

C1_OUT, C1_K, C1_STRIDE, C1_PAD = 8, 3, 2, 1   # Conv1d(4->8,  k3, s2, p1), ReLU
C2_OUT, C2_K = 16, 3                           # Conv1d(8->16, k3, s1, p1), ReLU
D1_OUT, D1_K = 16, 4                           # ConvT1d(32->16, k4, s2, p1), ReLU
D2_K = 3                                       # ConvT1d(16->4,  k3, s1, p1), Tanh

EPSILON = math.pi / 4.0       # initial_epsilon, non-trainable, use_threshold=True
COS_EPS = math.cos(EPSILON)   # acos(c) <= eps  <=>  c >= cos(eps)  (acos decreasing)


# ---------------------------------------------------------------------------
# The fused kernel.
# ---------------------------------------------------------------------------
def fused_autoencoder_kernel(
    p1_ref, w1_ref, b1_ref, w2_ref, b2_ref,
    wih_e_ref, whh_e_ref, be_ref, wfc_ref, bfc_ref,
    wih_d_ref, whh_d_ref, bd_ref, wd1_ref, bd1_ref, wd2_ref, bd2_ref,
    recon_ref, rec_ref,
    henc_tm, hdec_tm,
):
    """Whole autoencoder forward in one kernel invocation (VMEM resident)."""

    def mm(a, b):
        return jnp.dot(a, b, preferred_element_type=jnp.float32)

    # Row-shift operators for the time-major (row = t*BATCH + b) layout:
    #   (s_dn @ X)[r] = X[r - BATCH]   previous time step, zeros at t == 0
    #   (s_up @ X)[r] = X[r + BATCH]   next time step,     zeros at t == T-1
    row = lax.broadcasted_iota(jnp.int32, (NB, NB), 0)
    col = lax.broadcasted_iota(jnp.int32, (NB, NB), 1)
    s_dn = (col == row - BATCH).astype(jnp.float32)
    s_up = (col == row + BATCH).astype(jnp.float32)

    # ---------------- encoder: Conv1d(4->8, k3, s2, p1) + ReLU ---------------
    # im2col patches prepared with static slices in the wrapper -> one matmul.
    h1 = jnp.maximum(mm(p1_ref[...], w1_ref[...]) + b1_ref[...], 0.0)     # (16, 8)

    # ---------------- encoder: Conv1d(8->16, k3, s1, p1) + ReLU --------------
    a0 = w2_ref[0 * C1_OUT:1 * C1_OUT, :]          # tap j=0  (x[l-1])
    a1 = w2_ref[1 * C1_OUT:2 * C1_OUT, :]          # tap j=1  (x[l])
    a2 = w2_ref[2 * C1_OUT:3 * C1_OUT, :]          # tap j=2  (x[l+1])
    h2 = mm(mm(s_dn, h1), a0) + mm(h1, a1) + mm(mm(s_up, h1), a2) + b2_ref[...]
    h2 = jnp.maximum(h2, 0.0)                                             # (16, 16)

    # ---------------- LSTM helper (input matmul hoisted out of the loop) -----
    # Gate columns are packed [0.5*i, 0.5*f, 0.5*o, g] so a SINGLE tanh over
    # the whole (B, 4H) slab yields tanh(x/2) for the sigmoid gates
    # (sigmoid(x) == 0.5*tanh(x/2) + 0.5, exact) and tanh(x) for g.
    def lstm(zx, whh, out_tm):
        h = jnp.zeros((BATCH, HIDDEN), jnp.float32)
        c = jnp.zeros((BATCH, HIDDEN), jnp.float32)
        for t in range(T):                          # T == 8: fully unrolled
            z = zx[t * BATCH:(t + 1) * BATCH, :] + mm(h, whh)             # (B, 4H)
            tz = jnp.tanh(z)                        # one EUP push per step
            i = 0.5 * tz[:, 0 * HIDDEN:1 * HIDDEN] + 0.5
            f = 0.5 * tz[:, 1 * HIDDEN:2 * HIDDEN] + 0.5
            o = 0.5 * tz[:, 2 * HIDDEN:3 * HIDDEN] + 0.5
            g = tz[:, 3 * HIDDEN:4 * HIDDEN]
            c = f * c + i * g
            h = o * jnp.tanh(c)
            out_tm[t * BATCH:(t + 1) * BATCH, :] = h                      # time-major

    # ---------------- encoder LSTM (16 -> 32) --------------------------------
    zx_e = mm(h2, wih_e_ref[...]) + be_ref[...]                           # (16, 128)
    lstm(zx_e, whh_e_ref[...], henc_tm)

    # ---------------- encoder FC (32 -> 32) + Tanh ---------------------------
    fc_tm = jnp.tanh(mm(henc_tm[...], wfc_ref[...]) + bfc_ref[...])       # (16, 32)

    # ---------------- recurrence matrices (per batch sample) -----------------
    # Normalize all rows once (time-major); per-sample rows are selected with
    # a constant permutation matmul (no batch-major scratch, no row gathers).
    sq = jnp.sum(fc_tm * fc_tm, axis=1, keepdims=True)
    nv_tm = fc_tm * lax.rsqrt(jnp.maximum(sq, 1e-16))                     # (16, 32)
    rT = lax.broadcasted_iota(jnp.int32, (T, NB), 0)
    cT = lax.broadcasted_iota(jnp.int32, (T, NB), 1)
    for b in range(BATCH):
        sel = (cT == rT * BATCH + b).astype(jnp.float32)                  # (T, NB)
        v = mm(sel, nv_tm)                                                # (T, H)
        cs = lax.dot_general(v, v, (((1,), (1,)), ((), ())),
                             preferred_element_type=jnp.float32)          # (T, T)
        cs = jnp.clip(cs, -1.0 + 1e-7, 1.0 - 1e-7)
        rec_ref[b, :, :] = (cs >= COS_EPS).astype(jnp.float32)

    # ---------------- decoder LSTM (32 -> 32) --------------------------------
    zx_d = mm(fc_tm, wih_d_ref[...]) + bd_ref[...]                        # (16, 128)
    lstm(zx_d, whh_d_ref[...], hdec_tm)
    hd = hdec_tm[...]                                                     # (16, 32)

    # -------- decoder: ConvTranspose1d(32->16, k4, s2, p1) + ReLU ------------
    #   out[2t]   = x[t]   @ W1 + x[t-1] @ W3      (even output positions, e1)
    #   out[2t+1] = x[t+1] @ W0 + x[t]   @ W2      (odd  output positions, o1)
    wt0 = wd1_ref[0 * HIDDEN:1 * HIDDEN, :]
    wt1 = wd1_ref[1 * HIDDEN:2 * HIDDEN, :]
    wt2 = wd1_ref[2 * HIDDEN:3 * HIDDEN, :]
    wt3 = wd1_ref[3 * HIDDEN:4 * HIDDEN, :]
    bd1 = bd1_ref[...]
    e1 = jnp.maximum(mm(hd, wt1) + mm(mm(s_dn, hd), wt3) + bd1, 0.0)      # (16, 16)
    o1 = jnp.maximum(mm(mm(s_up, hd), wt0) + mm(hd, wt2) + bd1, 0.0)      # (16, 16)

    # -------- decoder: ConvTranspose1d(16->4, k3, s1, p1) + Tanh -------------
    # Weights are zero-padded to 128 output lanes so the two final stores are
    # unmasked, lane-dense (16, 128) writes.
    m0 = wd2_ref[0 * D1_OUT:1 * D1_OUT, :]         # pairs with in[lo-1]
    m1 = wd2_ref[1 * D1_OUT:2 * D1_OUT, :]         # pairs with in[lo]
    m2 = wd2_ref[2 * D1_OUT:3 * D1_OUT, :]         # pairs with in[lo+1]
    bd2 = bd2_ref[...]
    out_even = jnp.tanh(mm(mm(s_dn, o1), m0) + mm(e1, m1) + mm(o1, m2) + bd2)
    out_odd = jnp.tanh(mm(e1, m0) + mm(o1, m1) + mm(mm(s_up, e1), m2) + bd2)
    recon_ref[0:NB, :] = out_even                                         # lo = 2t
    recon_ref[NB:2 * NB, :] = out_odd                                     # lo = 2t+1


# ---------------------------------------------------------------------------
# Wrapper.
# ---------------------------------------------------------------------------
def _fullspec(shape):
    n = len(shape)
    return pl.BlockSpec(shape, lambda i, _n=n: (0,) * _n)


@jax.jit
def forward(params, x):
    """x: (BATCH, N_CHANNELS, SEQ_LEN) f32 -> (reconstructed, recurrence)."""
    # conv1 im2col patches, time-major rows: k static (strided) slices, no gather.
    xpad = jnp.pad(x, ((0, 0), (0, 0), (C1_PAD, C1_PAD)))                  # (B, C, 18)
    taps = [xpad[:, :, j:j + C1_STRIDE * T:C1_STRIDE] for j in range(C1_K)]
    p1 = jnp.stack(taps, axis=-1)                                          # (B, C, T, k)
    p1 = p1.transpose(2, 0, 1, 3).reshape(NB, N_CHANNELS * C1_K)           # (16, 12)

    arg_order = ("w1", "b1", "w2", "b2", "wih_e", "whh_e", "be", "wfc", "bfc",
                 "wih_d", "whh_d", "bd", "wd1", "bd1", "wd2", "bd2")
    args = (p1,) + tuple(params[k] for k in arg_order)

    recon128, rec = pl.pallas_call(
        fused_autoencoder_kernel,
        grid=(1,),
        in_specs=[_fullspec(a.shape) for a in args],
        out_specs=(_fullspec((2 * NB, LANES)), _fullspec((BATCH, T, T))),
        out_shape=(jax.ShapeDtypeStruct((2 * NB, LANES), jnp.float32),
                   jax.ShapeDtypeStruct((BATCH, T, T), jnp.float32)),
        scratch_shapes=[pltpu.VMEM((NB, HIDDEN), jnp.float32),   # enc LSTM, time-major
                        pltpu.VMEM((NB, HIDDEN), jnp.float32)],  # dec LSTM, time-major
        compiler_params=pltpu.CompilerParams(dimension_semantics=("arbitrary",)),
    )(*args)

    # Undo the kernel's packed layout: rows = eo*16 + t*2 + b, lanes 0..3 = channels.
    recon = recon128[:, :N_CHANNELS].reshape(2, T, BATCH, N_CHANNELS)      # (eo,t,b,c)
    recon = recon.transpose(2, 3, 1, 0).reshape(BATCH, N_CHANNELS, SEQ_LEN)
    return recon, rec


# ---------------------------------------------------------------------------
# Parameter init: PyTorch-style uniform fan-in init, stored directly in the
# layouts the kernel consumes (transposed / tap-stacked / gate-reordered /
# lane-padded once at init time, never per forward).
# ---------------------------------------------------------------------------
def _pack_lstm(wih_t, whh_t, bih_t, bhh_t):
    """PyTorch gate order [i,f,g,o] -> kernel order [i,f,o,g]; sigmoid gate
    columns pre-scaled by 0.5 so sigmoid(x) == 0.5*tanh(col)+0.5 in-kernel."""
    H = HIDDEN

    def reorder(w):                                  # w: (4H, in)
        return jnp.concatenate(
            [0.5 * w[0:H], 0.5 * w[H:2 * H], 0.5 * w[3 * H:4 * H], w[2 * H:3 * H]],
            axis=0)

    b = bih_t + bhh_t
    bias = jnp.concatenate(
        [0.5 * b[0:H], 0.5 * b[H:2 * H], 0.5 * b[3 * H:4 * H], b[2 * H:3 * H]],
        axis=0).reshape(1, 4 * H)
    return reorder(wih_t).T, reorder(whh_t).T, bias


def init_params(key):
    ks = iter(jax.random.split(key, 24))

    def u(shape, fan_in):
        s = 1.0 / math.sqrt(fan_in)
        return jax.random.uniform(next(ks), shape, jnp.float32, -s, s)

    # PyTorch-layout tensors.
    w1_t = u((C1_OUT, N_CHANNELS, C1_K), N_CHANNELS * C1_K)       # Conv1d (Co,Ci,k)
    b1_t = u((C1_OUT,), N_CHANNELS * C1_K)
    w2_t = u((C2_OUT, C1_OUT, C2_K), C1_OUT * C2_K)
    b2_t = u((C2_OUT,), C1_OUT * C2_K)
    wih_e_t = u((4 * HIDDEN, C2_OUT), HIDDEN)                     # LSTM gates i,f,g,o
    whh_e_t = u((4 * HIDDEN, HIDDEN), HIDDEN)
    bih_e_t = u((4 * HIDDEN,), HIDDEN)
    bhh_e_t = u((4 * HIDDEN,), HIDDEN)
    wfc_t = u((HIDDEN, HIDDEN), HIDDEN)                           # Linear (out,in)
    bfc_t = u((HIDDEN,), HIDDEN)
    wih_d_t = u((4 * HIDDEN, HIDDEN), HIDDEN)
    whh_d_t = u((4 * HIDDEN, HIDDEN), HIDDEN)
    bih_d_t = u((4 * HIDDEN,), HIDDEN)
    bhh_d_t = u((4 * HIDDEN,), HIDDEN)
    wd1_t = u((HIDDEN, D1_OUT, D1_K), D1_OUT * D1_K)              # ConvT1d (Ci,Co,k)
    bd1_t = u((D1_OUT,), D1_OUT * D1_K)
    wd2_t = u((D1_OUT, N_CHANNELS, D2_K), N_CHANNELS * D2_K)
    bd2_t = u((N_CHANNELS,), N_CHANNELS * D2_K)

    wih_e, whh_e, be = _pack_lstm(wih_e_t, whh_e_t, bih_e_t, bhh_e_t)
    wih_d, whh_d, bd = _pack_lstm(wih_d_t, whh_d_t, bih_d_t, bhh_d_t)

    pad = LANES - N_CHANNELS
    return {
        # conv1 as im2col matmul: rows indexed by ci*k + j.
        "w1": w1_t.reshape(C1_OUT, N_CHANNELS * C1_K).T,                    # (12, 8)
        "b1": b1_t.reshape(1, C1_OUT),
        # conv2 taps stacked along rows: block j = w2[:, :, j].T  (Ci, Co).
        "w2": jnp.concatenate([w2_t[:, :, j].T for j in range(C2_K)], axis=0),
        "b2": b2_t.reshape(1, C2_OUT),
        "wih_e": wih_e,                                                     # (16, 128)
        "whh_e": whh_e,                                                     # (32, 128)
        "be": be,
        "wfc": wfc_t.T,
        "bfc": bfc_t.reshape(1, HIDDEN),
        "wih_d": wih_d,
        "whh_d": whh_d,
        "bd": bd,
        # deconv1 taps stacked along rows: block j = wd1[:, :, j]  (Ci, Co).
        "wd1": jnp.concatenate([wd1_t[:, :, j] for j in range(D1_K)], axis=0),
        "bd1": bd1_t.reshape(1, D1_OUT),
        # deconv2 taps: shift offset d in {-1,0,+1} pairs with kernel index 2-d;
        # zero-padded to 128 output lanes for dense final stores.
        "wd2": jnp.concatenate(
            [jnp.pad(wd2_t[:, :, D2_K - 1 - d], ((0, 0), (0, pad)))
             for d in range(D2_K)], axis=0),                                # (48, 128)
        "bd2": jnp.pad(bd2_t.reshape(1, N_CHANNELS), ((0, 0), (0, pad))),
    }


# ---------------------------------------------------------------------------
if __name__ == "__main__":
    x = jax.random.normal(jax.random.PRNGKey(0),
                          (BATCH, N_CHANNELS, SEQ_LEN), jnp.float32)
    params = init_params(jax.random.PRNGKey(1))

    reconstructed, recurrence = forward(params, x)
    jax.block_until_ready((reconstructed, recurrence))

    assert reconstructed.shape == (BATCH, N_CHANNELS, SEQ_LEN), reconstructed.shape
    assert recurrence.shape == (BATCH, T, T), recurrence.shape
    assert bool(jnp.all(jnp.isfinite(reconstructed)))
    assert bool(jnp.all((recurrence == 0.0) | (recurrence == 1.0)))

    print("KERNEL_OK")
</pallas_src>

<mosaic_0001>
module attributes {stable_mosaic.version = 11 : i64} {
  func.func @fused_autoencoder_kernel(%arg0: i32, %arg1: memref<16x12xf32, #tpu.memory_space<vmem>>, %arg2: memref<12x8xf32, #tpu.memory_space<vmem>>, %arg3: memref<1x8xf32, #tpu.memory_space<vmem>>, %arg4: memref<24x16xf32, #tpu.memory_space<vmem>>, %arg5: memref<1x16xf32, #tpu.memory_space<vmem>>, %arg6: memref<16x128xf32, #tpu.memory_space<vmem>>, %arg7: memref<32x128xf32, #tpu.memory_space<vmem>>, %arg8: memref<1x128xf32, #tpu.memory_space<vmem>>, %arg9: memref<32x32xf32, #tpu.memory_space<vmem>>, %arg10: memref<1x32xf32, #tpu.memory_space<vmem>>, %arg11: memref<32x128xf32, #tpu.memory_space<vmem>>, %arg12: memref<32x128xf32, #tpu.memory_space<vmem>>, %arg13: memref<1x128xf32, #tpu.memory_space<vmem>>, %arg14: memref<128x16xf32, #tpu.memory_space<vmem>>, %arg15: memref<1x16xf32, #tpu.memory_space<vmem>>, %arg16: memref<48x128xf32, #tpu.memory_space<vmem>>, %arg17: memref<1x128xf32, #tpu.memory_space<vmem>>, %arg18: memref<32x128xf32, #tpu.memory_space<vmem>>, %arg19: memref<2x8x8xf32, #tpu.memory_space<vmem>>, %arg20: memref<16x32xf32, #tpu.memory_space<vmem>>, %arg21: memref<16x32xf32, #tpu.memory_space<vmem>>) attributes {dimension_semantics = [#tpu.dimension_semantics<arbitrary>], iteration_bounds = array<i64: 1>, scalar_prefetch = 0 : i64, scratch_operands = 2 : i64, tpu.core_type = #tpu.core_type<tc>, window_params = [{pipeline_mode = #tpu.pipeline_mode<synchronous>, transform_indices = @transform_0, window_bounds = array<i64: 16, 12>}, {pipeline_mode = #tpu.pipeline_mode<synchronous>, transform_indices = @transform_1, window_bounds = array<i64: 12, 8>}, {pipeline_mode = #tpu.pipeline_mode<synchronous>, transform_indices = @transform_2, window_bounds = array<i64: 1, 8>}, {pipeline_mode = #tpu.pipeline_mode<synchronous>, transform_indices = @transform_3, window_bounds = array<i64: 24, 16>}, {pipeline_mode = #tpu.pipeline_mode<synchronous>, transform_indices = @transform_4, window_bounds = array<i64: 1, 16>}, {pipeline_mode = #tpu.pipeline_mode<synchronous>, transform_indices = @transform_5, window_bounds = array<i64: 16, 128>}, {pipeline_mode = #tpu.pipeline_mode<synchronous>, transform_indices = @transform_6, window_bounds = array<i64: 32, 128>}, {pipeline_mode = #tpu.pipeline_mode<synchronous>, transform_indices = @transform_7, window_bounds = array<i64: 1, 128>}, {pipeline_mode = #tpu.pipeline_mode<synchronous>, transform_indices = @transform_8, window_bounds = array<i64: 32, 32>}, {pipeline_mode = #tpu.pipeline_mode<synchronous>, transform_indices = @transform_9, window_bounds = array<i64: 1, 32>}, {pipeline_mode = #tpu.pipeline_mode<synchronous>, transform_indices = @transform_10, window_bounds = array<i64: 32, 128>}, {pipeline_mode = #tpu.pipeline_mode<synchronous>, transform_indices = @transform_11, window_bounds = array<i64: 32, 128>}, {pipeline_mode = #tpu.pipeline_mode<synchronous>, transform_indices = @transform_12, window_bounds = array<i64: 1, 128>}, {pipeline_mode = #tpu.pipeline_mode<synchronous>, transform_indices = @transform_13, window_bounds = array<i64: 128, 16>}, {pipeline_mode = #tpu.pipeline_mode<synchronous>, transform_indices = @transform_14, window_bounds = array<i64: 1, 16>}, {pipeline_mode = #tpu.pipeline_mode<synchronous>, transform_indices = @transform_15, window_bounds = array<i64: 48, 128>}, {pipeline_mode = #tpu.pipeline_mode<synchronous>, transform_indices = @transform_16, window_bounds = array<i64: 1, 128>}, {pipeline_mode = #tpu.pipeline_mode<synchronous>, transform_indices = @transform_17, window_bounds = array<i64: 32, 128>}, {pipeline_mode = #tpu.pipeline_mode<synchronous>, transform_indices = @transform_18, window_bounds = array<i64: 2, 8, 8>}]} {
    %0 = tpu.iota {dimensions = array<i32: 0>} : vector<16x16xi32>
    %1 = tpu.iota {dimensions = array<i32: 1>} : vector<16x16xi32>
    %c2_i32 = arith.constant 2 : i32
    %2 = vector.broadcast %c2_i32 : i32 to vector<16x16xi32>
    %3 = arith.subi %0, %2 : vector<16x16xi32>
    %4 = arith.cmpi eq, %1, %3 : vector<16x16xi32>
    %5 = arith.extui %4 : vector<16x16xi1> to vector<16x16xi32>
    %6 = arith.sitofp %5 : vector<16x16xi32> to vector<16x16xf32>
    %c2_i32_0 = arith.constant 2 : i32
    %7 = vector.broadcast %c2_i32_0 : i32 to vector<16x16xi32>
    %8 = arith.addi %0, %7 : vector<16x16xi32>
    %9 = arith.cmpi eq, %1, %8 : vector<16x16xi32>
    %10 = arith.extui %9 : vector<16x16xi1> to vector<16x16xi32>
    %11 = arith.sitofp %10 : vector<16x16xi32> to vector<16x16xf32>
    %c0 = arith.constant 0 : index
    %c0_1 = arith.constant 0 : index
    %12 = vector.load %arg1[%c0, %c0_1] : memref<16x12xf32, #tpu.memory_space<vmem>>, vector<16x12xf32>
    %c0_2 = arith.constant 0 : index
    %c0_3 = arith.constant 0 : index
    %13 = vector.load %arg2[%c0_2, %c0_3] : memref<12x8xf32, #tpu.memory_space<vmem>>, vector<12x8xf32>
    %cst = arith.constant dense<0.000000e+00> : vector<16x8xf32>
    %14 = tpu.matmul %12, %13, %cst {dimension_numbers = #tpu.dot_dimension_numbers<[1], [0], [0], [1], [0, 0, 1, 1], [], []>} : vector<16x12xf32>, vector<12x8xf32>, vector<16x8xf32> -> vector<16x8xf32>
    %c0_4 = arith.constant 0 : index
    %c0_5 = arith.constant 0 : index
    %15 = vector.load %arg3[%c0_4, %c0_5] : memref<1x8xf32, #tpu.memory_space<vmem>>, vector<1x8xf32>
    %16 = vector.broadcast %15 : vector<1x8xf32> to vector<16x8xf32>
    %17 = arith.addf %14, %16 : vector<16x8xf32>
    %cst_6 = arith.constant 0.000000e+00 : f32
    %18 = vector.broadcast %cst_6 : f32 to vector<16x8xf32>
    %19 = arith.maximumf %17, %18 : vector<16x8xf32>
    %c0_7 = arith.constant 0 : index
    %c0_8 = arith.constant 0 : index
    %20 = vector.load %arg4[%c0_7, %c0_8] : memref<24x16xf32, #tpu.memory_space<vmem>>, vector<8x16xf32>
    %c8 = arith.constant 8 : index
    %c0_9 = arith.constant 0 : index
    %21 = vector.load %arg4[%c8, %c0_9] : memref<24x16xf32, #tpu.memory_space<vmem>>, vector<8x16xf32>
    %c16 = arith.constant 16 : index
    %c0_10 = arith.constant 0 : index
    %22 = vector.load %arg4[%c16, %c0_10] : memref<24x16xf32, #tpu.memory_space<vmem>>, vector<8x16xf32>
    %cst_11 = arith.constant dense<0.000000e+00> : vector<16x8xf32>
    %23 = tpu.matmul %6, %19, %cst_11 {dimension_numbers = #tpu.dot_dimension_numbers<[1], [0], [0], [1], [0, 0, 1, 1], [], []>} : vector<16x16xf32>, vector<16x8xf32>, vector<16x8xf32> -> vector<16x8xf32>
    %cst_12 = arith.constant dense<0.000000e+00> : vector<16x16xf32>
    %24 = tpu.matmul %23, %20, %cst_12 {dimension_numbers = #tpu.dot_dimension_numbers<[1], [0], [0], [1], [0, 0, 1, 1], [], []>} : vector<16x8xf32>, vector<8x16xf32>, vector<16x16xf32> -> vector<16x16xf32>
    %cst_13 = arith.constant dense<0.000000e+00> : vector<16x16xf32>
    %25 = tpu.matmul %19, %21, %cst_13 {dimension_numbers = #tpu.dot_dimension_numbers<[1], [0], [0], [1], [0, 0, 1, 1], [], []>} : vector<16x8xf32>, vector<8x16xf32>, vector<16x16xf32> -> vector<16x16xf32>
    %26 = arith.addf %24, %25 : vector<16x16xf32>
    %cst_14 = arith.constant dense<0.000000e+00> : vector<16x8xf32>
    %27 = tpu.matmul %11, %19, %cst_14 {dimension_numbers = #tpu.dot_dimension_numbers<[1], [0], [0], [1], [0, 0, 1, 1], [], []>} : vector<16x16xf32>, vector<16x8xf32>, vector<16x8xf32> -> vector<16x8xf32>
    %cst_15 = arith.constant dense<0.000000e+00> : vector<16x16xf32>
    %28 = tpu.matmul %27, %22, %cst_15 {dimension_numbers = #tpu.dot_dimension_numbers<[1], [0], [0], [1], [0, 0, 1, 1], [], []>} : vector<16x8xf32>, vector<8x16xf32>, vector<16x16xf32> -> vector<16x16xf32>
    %29 = arith.addf %26, %28 : vector<16x16xf32>
    %c0_16 = arith.constant 0 : index
    %c0_17 = arith.constant 0 : index
    %30 = vector.load %arg5[%c0_16, %c0_17] : memref<1x16xf32, #tpu.memory_space<vmem>>, vector<1x16xf32>
    %31 = vector.broadcast %30 : vector<1x16xf32> to vector<16x16xf32>
    %32 = arith.addf %29, %31 : vector<16x16xf32>
    %cst_18 = arith.constant 0.000000e+00 : f32
    %33 = vector.broadcast %cst_18 : f32 to vector<16x16xf32>
    %34 = arith.maximumf %32, %33 : vector<16x16xf32>
    %c0_19 = arith.constant 0 : index
    %c0_20 = arith.constant 0 : index
    %35 = vector.load %arg6[%c0_19, %c0_20] : memref<16x128xf32, #tpu.memory_space<vmem>>, vector<16x128xf32>
    %cst_21 = arith.constant dense<0.000000e+00> : vector<16x128xf32>
    %36 = tpu.matmul %34, %35, %cst_21 {dimension_numbers = #tpu.dot_dimension_numbers<[1], [0], [0], [1], [0, 0, 1, 1], [], []>} : vector<16x16xf32>, vector<16x128xf32>, vector<16x128xf32> -> vector<16x128xf32>
    %c0_22 = arith.constant 0 : index
    %c0_23 = arith.constant 0 : index
    %37 = vector.load %arg8[%c0_22, %c0_23] : memref<1x128xf32, #tpu.memory_space<vmem>>, vector<1x128xf32>
    %38 = vector.broadcast %37 : vector<1x128xf32> to vector<16x128xf32>
    %39 = arith.addf %36, %38 : vector<16x128xf32>
    %c0_24 = arith.constant 0 : index
    %c0_25 = arith.constant 0 : index
    %40 = vector.load %arg7[%c0_24, %c0_25] : memref<32x128xf32, #tpu.memory_space<vmem>>, vector<32x128xf32>
    %cst_26 = arith.constant 0.000000e+00 : f32
    %41 = vector.broadcast %cst_26 : f32 to vector<2x32xf32>
    %cst_27 = arith.constant 0.000000e+00 : f32
    %42 = vector.broadcast %cst_27 : f32 to vector<2x32xf32>
    %43 = vector.extract_strided_slice %39 {offsets = [0, 0], sizes = [2, 128], strides = [1, 1]} : vector<16x128xf32> to vector<2x128xf32>
    %cst_28 = arith.constant dense<0.000000e+00> : vector<2x128xf32>
    %44 = tpu.matmul %41, %40, %cst_28 {dimension_numbers = #tpu.dot_dimension_numbers<[1], [0], [0], [1], [0, 0, 1, 1], [], []>} : vector<2x32xf32>, vector<32x128xf32>, vector<2x128xf32> -> vector<2x128xf32>
    %45 = arith.addf %43, %44 : vector<2x128xf32>
    %46 = math.tanh %45 : vector<2x128xf32>
    %47 = vector.extract_strided_slice %46 {offsets = [0, 0], sizes = [2, 32], strides = [1, 1]} : vector<2x128xf32> to vector<2x32xf32>
    %cst_29 = arith.constant 5.000000e-01 : f32
    %48 = vector.broadcast %cst_29 : f32 to vector<2x32xf32>
    %49 = arith.mulf %48, %47 : vector<2x32xf32>
    %cst_30 = arith.constant 5.000000e-01 : f32
    %50 = vector.broadcast %cst_30 : f32 to vector<2x32xf32>
    %51 = arith.addf %49, %50 : vector<2x32xf32>
    %52 = vector.extract_strided_slice %46 {offsets = [0, 32], sizes = [2, 32], strides = [1, 1]} : vector<2x128xf32> to vector<2x32xf32>
    %cst_31 = arith.constant 5.000000e-01 : f32
    %53 = vector.broadcast %cst_31 : f32 to vector<2x32xf32>
    %54 = arith.mulf %53, %52 : vector<2x32xf32>
    %cst_32 = arith.constant 5.000000e-01 : f32
    %55 = vector.broadcast %cst_32 : f32 to vector<2x32xf32>
    %56 = arith.addf %54, %55 : vector<2x32xf32>
    %57 = vector.extract_strided_slice %46 {offsets = [0, 64], sizes = [2, 32], strides = [1, 1]} : vector<2x128xf32> to vector<2x32xf32>
    %cst_33 = arith.constant 5.000000e-01 : f32
    %58 = vector.broadcast %cst_33 : f32 to vector<2x32xf32>
    %59 = arith.mulf %58, %57 : vector<2x32xf32>
    %cst_34 = arith.constant 5.000000e-01 : f32
    %60 = vector.broadcast %cst_34 : f32 to vector<2x32xf32>
    %61 = arith.addf %59, %60 : vector<2x32xf32>
    %62 = vector.extract_strided_slice %46 {offsets = [0, 96], sizes = [2, 32], strides = [1, 1]} : vector<2x128xf32> to vector<2x32xf32>
    %63 = arith.mulf %56, %42 : vector<2x32xf32>
    %64 = arith.mulf %51, %62 : vector<2x32xf32>
    %65 = arith.addf %63, %64 : vector<2x32xf32>
    %66 = math.tanh %65 : vector<2x32xf32>
    %67 = arith.mulf %61, %66 : vector<2x32xf32>
    %c0_35 = arith.constant 0 : index
    %c0_36 = arith.constant 0 : index
    %68 = vector.load %arg20[%c0_35, %c0_36] : memref<16x32xf32, #tpu.memory_space<vmem>>, vector<2x32xf32>
    tpu.vector_store %arg20[%c0_35, %c0_36], %67 {strides = array<i32>} : memref<16x32xf32, #tpu.memory_space<vmem>>, vector<2x32xf32>,
    %69 = vector.extract_strided_slice %39 {offsets = [2, 0], sizes = [2, 128], strides = [1, 1]} : vector<16x128xf32> to vector<2x128xf32>
    %cst_37 = arith.constant dense<0.000000e+00> : vector<2x128xf32>
    %70 = tpu.matmul %67, %40, %cst_37 {dimension_numbers = #tpu.dot_dimension_numbers<[1], [0], [0], [1], [0, 0, 1, 1], [], []>} : vector<2x32xf32>, vector<32x128xf32>, vector<2x128xf32> -> vector<2x128xf32>
    %71 = arith.addf %69, %70 : vector<2x128xf32>
    %72 = math.tanh %71 : vector<2x128xf32>
    %73 = vector.extract_strided_slice %72 {offsets = [0, 0], sizes = [2, 32], strides = [1, 1]} : vector<2x128xf32> to vector<2x32xf32>
    %cst_38 = arith.constant 5.000000e-01 : f32
    %74 = vector.broadcast %cst_38 : f32 to vector<2x32xf32>
    %75 = arith.mulf %74, %73 : vector<2x32xf32>
    %cst_39 = arith.constant 5.000000e-01 : f32
    %76 = vector.broadcast %cst_39 : f32 to vector<2x32xf32>
    %77 = arith.addf %75, %76 : vector<2x32xf32>
    %78 = vector.extract_strided_slice %72 {offsets = [0, 32], sizes = [2, 32], strides = [1, 1]} : vector<2x128xf32> to vector<2x32xf32>
    %cst_40 = arith.constant 5.000000e-01 : f32
    %79 = vector.broadcast %cst_40 : f32 to vector<2x32xf32>
    %80 = arith.mulf %79, %78 : vector<2x32xf32>
    %cst_41 = arith.constant 5.000000e-01 : f32
    %81 = vector.broadcast %cst_41 : f32 to vector<2x32xf32>
    %82 = arith.addf %80, %81 : vector<2x32xf32>
    %83 = vector.extract_strided_slice %72 {offsets = [0, 64], sizes = [2, 32], strides = [1, 1]} : vector<2x128xf32> to vector<2x32xf32>
    %cst_42 = arith.constant 5.000000e-01 : f32
    %84 = vector.broadcast %cst_42 : f32 to vector<2x32xf32>
    %85 = arith.mulf %84, %83 : vector<2x32xf32>
    %cst_43 = arith.constant 5.000000e-01 : f32
    %86 = vector.broadcast %cst_43 : f32 to vector<2x32xf32>
    %87 = arith.addf %85, %86 : vector<2x32xf32>
    %88 = vector.extract_strided_slice %72 {offsets = [0, 96], sizes = [2, 32], strides = [1, 1]} : vector<2x128xf32> to vector<2x32xf32>
    %89 = arith.mulf %82, %65 : vector<2x32xf32>
    %90 = arith.mulf %77, %88 : vector<2x32xf32>
    %91 = arith.addf %89, %90 : vector<2x32xf32>
    %92 = math.tanh %91 : vector<2x32xf32>
    %93 = arith.mulf %87, %92 : vector<2x32xf32>
    %c2 = arith.constant 2 : index
    %c0_44 = arith.constant 0 : index
    %94 = vector.load %arg20[%c2, %c0_44] : memref<16x32xf32, #tpu.memory_space<vmem>>, vector<2x32xf32>
    tpu.vector_store %arg20[%c2, %c0_44], %93 {strides = array<i32>} : memref<16x32xf32, #tpu.memory_space<vmem>>, vector<2x32xf32>,
    %95 = vector.extract_strided_slice %39 {offsets = [4, 0], sizes = [2, 128], strides = [1, 1]} : vector<16x128xf32> to vector<2x128xf32>
    %cst_45 = arith.constant dense<0.000000e+00> : vector<2x128xf32>
    %96 = tpu.matmul %93, %40, %cst_45 {dimension_numbers = #tpu.dot_dimension_numbers<[1], [0], [0], [1], [0, 0, 1, 1], [], []>} : vector<2x32xf32>, vector<32x128xf32>, vector<2x128xf32> -> vector<2x128xf32>
    %97 = arith.addf %95, %96 : vector<2x128xf32>
    %98 = math.tanh %97 : vector<2x128xf32>
    %99 = vector.extract_strided_slice %98 {offsets = [0, 0], sizes = [2, 32], strides = [1, 1]} : vector<2x128xf32> to vector<2x32xf32>
    %cst_46 = arith.constant 5.000000e-01 : f32
    %100 = vector.broadcast %cst_46 : f32 to vector<2x32xf32>
    %101 = arith.mulf %100, %99 : vector<2x32xf32>
    %cst_47 = arith.constant 5.000000e-01 : f32
    %102 = vector.broadcast %cst_47 : f32 to vector<2x32xf32>
    %103 = arith.addf %101, %102 : vector<2x32xf32>
    %104 = vector.extract_strided_slice %98 {offsets = [0, 32], sizes = [2, 32], strides = [1, 1]} : vector<2x128xf32> to vector<2x32xf32>
    %cst_48 = arith.constant 5.000000e-01 : f32
    %105 = vector.broadcast %cst_48 : f32 to vector<2x32xf32>
    %106 = arith.mulf %105, %104 : vector<2x32xf32>
    %cst_49 = arith.constant 5.000000e-01 : f32
    %107 = vector.broadcast %cst_49 : f32 to vector<2x32xf32>
    %108 = arith.addf %106, %107 : vector<2x32xf32>
    %109 = vector.extract_strided_slice %98 {offsets = [0, 64], sizes = [2, 32], strides = [1, 1]} : vector<2x128xf32> to vector<2x32xf32>
    %cst_50 = arith.constant 5.000000e-01 : f32
    %110 = vector.broadcast %cst_50 : f32 to vector<2x32xf32>
    %111 = arith.mulf %110, %109 : vector<2x32xf32>
    %cst_51 = arith.constant 5.000000e-01 : f32
    %112 = vector.broadcast %cst_51 : f32 to vector<2x32xf32>
    %113 = arith.addf %111, %112 : vector<2x32xf32>
    %114 = vector.extract_strided_slice %98 {offsets = [0, 96], sizes = [2, 32], strides = [1, 1]} : vector<2x128xf32> to vector<2x32xf32>
    %115 = arith.mulf %108, %91 : vector<2x32xf32>
    %116 = arith.mulf %103, %114 : vector<2x32xf32>
    %117 = arith.addf %115, %116 : vector<2x32xf32>
    %118 = math.tanh %117 : vector<2x32xf32>
    %119 = arith.mulf %113, %118 : vector<2x32xf32>
    %c4 = arith.constant 4 : index
    %c0_52 = arith.constant 0 : index
    %120 = vector.load %arg20[%c4, %c0_52] : memref<16x32xf32, #tpu.memory_space<vmem>>, vector<2x32xf32>
    tpu.vector_store %arg20[%c4, %c0_52], %119 {strides = array<i32>} : memref<16x32xf32, #tpu.memory_space<vmem>>, vector<2x32xf32>,
    %121 = vector.extract_strided_slice %39 {offsets = [6, 0], sizes = [2, 128], strides = [1, 1]} : vector<16x128xf32> to vector<2x128xf32>
    %cst_53 = arith.constant dense<0.000000e+00> : vector<2x128xf32>
    %122 = tpu.matmul %119, %40, %cst_53 {dimension_numbers = #tpu.dot_dimension_numbers<[1], [0], [0], [1], [0, 0, 1, 1], [], []>} : vector<2x32xf32>, vector<32x128xf32>, vector<2x128xf32> -> vector<2x128xf32>
    %123 = arith.addf %121, %122 : vector<2x128xf32>
    %124 = math.tanh %123 : vector<2x128xf32>
    %125 = vector.extract_strided_slice %124 {offsets = [0, 0], sizes = [2, 32], strides = [1, 1]} : vector<2x128xf32> to vector<2x32xf32>
    %cst_54 = arith.constant 5.000000e-01 : f32
    %126 = vector.broadcast %cst_54 : f32 to vector<2x32xf32>
    %127 = arith.mulf %126, %125 : vector<2x32xf32>
    %cst_55 = arith.constant 5.000000e-01 : f32
    %128 = vector.broadcast %cst_55 : f32 to vector<2x32xf32>
    %129 = arith.addf %127, %128 : vector<2x32xf32>
    %130 = vector.extract_strided_slice %124 {offsets = [0, 32], sizes = [2, 32], strides = [1, 1]} : vector<2x128xf32> to vector<2x32xf32>
    %cst_56 = arith.constant 5.000000e-01 : f32
    %131 = vector.broadcast %cst_56 : f32 to vector<2x32xf32>
    %132 = arith.mulf %131, %130 : vector<2x32xf32>
    %cst_57 = arith.constant 5.000000e-01 : f32
    %133 = vector.broadcast %cst_57 : f32 to vector<2x32xf32>
    %134 = arith.addf %132, %133 : vector<2x32xf32>
    %135 = vector.extract_strided_slice %124 {offsets = [0, 64], sizes = [2, 32], strides = [1, 1]} : vector<2x128xf32> to vector<2x32xf32>
    %cst_58 = arith.constant 5.000000e-01 : f32
    %136 = vector.broadcast %cst_58 : f32 to vector<2x32xf32>
    %137 = arith.mulf %136, %135 : vector<2x32xf32>
    %cst_59 = arith.constant 5.000000e-01 : f32
    %138 = vector.broadcast %cst_59 : f32 to vector<2x32xf32>
    %139 = arith.addf %137, %138 : vector<2x32xf32>
    %140 = vector.extract_strided_slice %124 {offsets = [0, 96], sizes = [2, 32], strides = [1, 1]} : vector<2x128xf32> to vector<2x32xf32>
    %141 = arith.mulf %134, %117 : vector<2x32xf32>
    %142 = arith.mulf %129, %140 : vector<2x32xf32>
    %143 = arith.addf %141, %142 : vector<2x32xf32>
    %144 = math.tanh %143 : vector<2x32xf32>
    %145 = arith.mulf %139, %144 : vector<2x32xf32>
    %c6 = arith.constant 6 : index
    %c0_60 = arith.constant 0 : index
    %146 = vector.load %arg20[%c6, %c0_60] : memref<16x32xf32, #tpu.memory_space<vmem>>, vector<2x32xf32>
    tpu.vector_store %arg20[%c6, %c0_60], %145 {strides = array<i32>} : memref<16x32xf32, #tpu.memory_space<vmem>>, vector<2x32xf32>,
    %147 = vector.extract_strided_slice %39 {offsets = [8, 0], sizes = [2, 128], strides = [1, 1]} : vector<16x128xf32> to vector<2x128xf32>
    %cst_61 = arith.constant dense<0.000000e+00> : vector<2x128xf32>
    %148 = tpu.matmul %145, %40, %cst_61 {dimension_numbers = #tpu.dot_dimension_numbers<[1], [0], [0], [1], [0, 0, 1, 1], [], []>} : vector<2x32xf32>, vector<32x128xf32>, vector<2x128xf32> -> vector<2x128xf32>
    %149 = arith.addf %147, %148 : vector<2x128xf32>
    %150 = math.tanh %149 : vector<2x128xf32>
    %151 = vector.extract_strided_slice %150 {offsets = [0, 0], sizes = [2, 32], strides = [1, 1]} : vector<2x128xf32> to vector<2x32xf32>
    %cst_62 = arith.constant 5.000000e-01 : f32
    %152 = vector.broadcast %cst_62 : f32 to vector<2x32xf32>
    %153 = arith.mulf %152, %151 : vector<2x32xf32>
    %cst_63 = arith.constant 5.000000e-01 : f32
    %154 = vector.broadcast %cst_63 : f32 to vector<2x32xf32>
    %155 = arith.addf %153, %154 : vector<2x32xf32>
    %156 = vector.extract_strided_slice %150 {offsets = [0, 32], sizes = [2, 32], strides = [1, 1]} : vector<2x128xf32> to vector<2x32xf32>
    %cst_64 = arith.constant 5.000000e-01 : f32
    %157 = vector.broadcast %cst_64 : f32 to vector<2x32xf32>
    %158 = arith.mulf %157, %156 : vector<2x32xf32>
    %cst_65 = arith.constant 5.000000e-01 : f32
    %159 = vector.broadcast %cst_65 : f32 to vector<2x32xf32>
    %160 = arith.addf %158, %159 : vector<2x32xf32>
    %161 = vector.extract_strided_slice %150 {offsets = [0, 64], sizes = [2, 32], strides = [1, 1]} : vector<2x128xf32> to vector<2x32xf32>
    %cst_66 = arith.constant 5.000000e-01 : f32
    %162 = vector.broadcast %cst_66 : f32 to vector<2x32xf32>
    %163 = arith.mulf %162, %161 : vector<2x32xf32>
    %cst_67 = arith.constant 5.000000e-01 : f32
    %164 = vector.broadcast %cst_67 : f32 to vector<2x32xf32>
    %165 = arith.addf %163, %164 : vector<2x32xf32>
    %166 = vector.extract_strided_slice %150 {offsets = [0, 96], sizes = [2, 32], strides = [1, 1]} : vector<2x128xf32> to vector<2x32xf32>
    %167 = arith.mulf %160, %143 : vector<2x32xf32>
    %168 = arith.mulf %155, %166 : vector<2x32xf32>
    %169 = arith.addf %167, %168 : vector<2x32xf32>
    %170 = math.tanh %169 : vector<2x32xf32>
    %171 = arith.mulf %165, %170 : vector<2x32xf32>
    %c8_68 = arith.constant 8 : index
    %c0_69 = arith.constant 0 : index
    %172 = vector.load %arg20[%c8_68, %c0_69] : memref<16x32xf32, #tpu.memory_space<vmem>>, vector<2x32xf32>
    tpu.vector_store %arg20[%c8_68, %c0_69], %171 {strides = array<i32>} : memref<16x32xf32, #tpu.memory_space<vmem>>, vector<2x32xf32>,
    %173 = vector.extract_strided_slice %39 {offsets = [10, 0], sizes = [2, 128], strides = [1, 1]} : vector<16x128xf32> to vector<2x128xf32>
    %cst_70 = arith.constant dense<0.000000e+00> : vector<2x128xf32>
    %174 = tpu.matmul %171, %40, %cst_70 {dimension_numbers = #tpu.dot_dimension_numbers<[1], [0], [0], [1], [0, 0, 1, 1], [], []>} : vector<2x32xf32>, vector<32x128xf32>, vector<2x128xf32> -> vector<2x128xf32>
    %175 = arith.addf %173, %174 : vector<2x128xf32>
    %176 = math.tanh %175 : vector<2x128xf32>
    %177 = vector.extract_strided_slice %176 {offsets = [0, 0], sizes = [2, 32], strides = [1, 1]} : vector<2x128xf32> to vector<2x32xf32>
    %cst_71 = arith.constant 5.000000e-01 : f32
    %178 = vector.broadcast %cst_71 : f32 to vector<2x32xf32>
    %179 = arith.mulf %178, %177 : vector<2x32xf32>
    %cst_72 = arith.constant 5.000000e-01 : f32
    %180 = vector.broadcast %cst_72 : f32 to vector<2x32xf32>
    %181 = arith.addf %179, %180 : vector<2x32xf32>
    %182 = vector.extract_strided_slice %176 {offsets = [0, 32], sizes = [2, 32], strides = [1, 1]} : vector<2x128xf32> to vector<2x32xf32>
    %cst_73 = arith.constant 5.000000e-01 : f32
    %183 = vector.broadcast %cst_73 : f32 to vector<2x32xf32>
    %184 = arith.mulf %183, %182 : vector<2x32xf32>
    %cst_74 = arith.constant 5.000000e-01 : f32
    %185 = vector.broadcast %cst_74 : f32 to vector<2x32xf32>
    %186 = arith.addf %184, %185 : vector<2x32xf32>
    %187 = vector.extract_strided_slice %176 {offsets = [0, 64], sizes = [2, 32], strides = [1, 1]} : vector<2x128xf32> to vector<2x32xf32>
    %cst_75 = arith.constant 5.000000e-01 : f32
    %188 = vector.broadcast %cst_75 : f32 to vector<2x32xf32>
    %189 = arith.mulf %188, %187 : vector<2x32xf32>
    %cst_76 = arith.constant 5.000000e-01 : f32
    %190 = vector.broadcast %cst_76 : f32 to vector<2x32xf32>
    %191 = arith.addf %189, %190 : vector<2x32xf32>
    %192 = vector.extract_strided_slice %176 {offsets = [0, 96], sizes = [2, 32], strides = [1, 1]} : vector<2x128xf32> to vector<2x32xf32>
    %193 = arith.mulf %186, %169 : vector<2x32xf32>
    %194 = arith.mulf %181, %192 : vector<2x32xf32>
    %195 = arith.addf %193, %194 : vector<2x32xf32>
    %196 = math.tanh %195 : vector<2x32xf32>
    %197 = arith.mulf %191, %196 : vector<2x32xf32>
    %c10 = arith.constant 10 : index
    %c0_77 = arith.constant 0 : index
    %198 = vector.load %arg20[%c10, %c0_77] : memref<16x32xf32, #tpu.memory_space<vmem>>, vector<2x32xf32>
    tpu.vector_store %arg20[%c10, %c0_77], %197 {strides = array<i32>} : memref<16x32xf32, #tpu.memory_space<vmem>>, vector<2x32xf32>,
    %199 = vector.extract_strided_slice %39 {offsets = [12, 0], sizes = [2, 128], strides = [1, 1]} : vector<16x128xf32> to vector<2x128xf32>
    %cst_78 = arith.constant dense<0.000000e+00> : vector<2x128xf32>
    %200 = tpu.matmul %197, %40, %cst_78 {dimension_numbers = #tpu.dot_dimension_numbers<[1], [0], [0], [1], [0, 0, 1, 1], [], []>} : vector<2x32xf32>, vector<32x128xf32>, vector<2x128xf32> -> vector<2x128xf32>
    %201 = arith.addf %199, %200 : vector<2x128xf32>
    %202 = math.tanh %201 : vector<2x128xf32>
    %203 = vector.extract_strided_slice %202 {offsets = [0, 0], sizes = [2, 32], strides = [1, 1]} : vector<2x128xf32> to vector<2x32xf32>
    %cst_79 = arith.constant 5.000000e-01 : f32
    %204 = vector.broadcast %cst_79 : f32 to vector<2x32xf32>
    %205 = arith.mulf %204, %203 : vector<2x32xf32>
    %cst_80 = arith.constant 5.000000e-01 : f32
    %206 = vector.broadcast %cst_80 : f32 to vector<2x32xf32>
    %207 = arith.addf %205, %206 : vector<2x32xf32>
    %208 = vector.extract_strided_slice %202 {offsets = [0, 32], sizes = [2, 32], strides = [1, 1]} : vector<2x128xf32> to vector<2x32xf32>
    %cst_81 = arith.constant 5.000000e-01 : f32
    %209 = vector.broadcast %cst_81 : f32 to vector<2x32xf32>
    %210 = arith.mulf %209, %208 : vector<2x32xf32>
    %cst_82 = arith.constant 5.000000e-01 : f32
    %211 = vector.broadcast %cst_82 : f32 to vector<2x32xf32>
    %212 = arith.addf %210, %211 : vector<2x32xf32>
    %213 = vector.extract_strided_slice %202 {offsets = [0, 64], sizes = [2, 32], strides = [1, 1]} : vector<2x128xf32> to vector<2x32xf32>
    %cst_83 = arith.constant 5.000000e-01 : f32
    %214 = vector.broadcast %cst_83 : f32 to vector<2x32xf32>
    %215 = arith.mulf %214, %213 : vector<2x32xf32>
    %cst_84 = arith.constant 5.000000e-01 : f32
    %216 = vector.broadcast %cst_84 : f32 to vector<2x32xf32>
    %217 = arith.addf %215, %216 : vector<2x32xf32>
    %218 = vector.extract_strided_slice %202 {offsets = [0, 96], sizes = [2, 32], strides = [1, 1]} : vector<2x128xf32> to vector<2x32xf32>
    %219 = arith.mulf %212, %195 : vector<2x32xf32>
    %220 = arith.mulf %207, %218 : vector<2x32xf32>
    %221 = arith.addf %219, %220 : vector<2x32xf32>
    %222 = math.tanh %221 : vector<2x32xf32>
    %223 = arith.mulf %217, %222 : vector<2x32xf32>
    %c12 = arith.constant 12 : index
    %c0_85 = arith.constant 0 : index
    %224 = vector.load %arg20[%c12, %c0_85] : memref<16x32xf32, #tpu.memory_space<vmem>>, vector<2x32xf32>
    tpu.vector_store %arg20[%c12, %c0_85], %223 {strides = array<i32>} : memref<16x32xf32, #tpu.memory_space<vmem>>, vector<2x32xf32>,
    %225 = vector.extract_strided_slice %39 {offsets = [14, 0], sizes = [2, 128], strides = [1, 1]} : vector<16x128xf32> to vector<2x128xf32>
    %cst_86 = arith.constant dense<0.000000e+00> : vector<2x128xf32>
    %226 = tpu.matmul %223, %40, %cst_86 {dimension_numbers = #tpu.dot_dimension_numbers<[1], [0], [0], [1], [0, 0, 1, 1], [], []>} : vector<2x32xf32>, vector<32x128xf32>, vector<2x128xf32> -> vector<2x128xf32>
    %227 = arith.addf %225, %226 : vector<2x128xf32>
    %228 = math.tanh %227 : vector<2x128xf32>
    %229 = vector.extract_strided_slice %228 {offsets = [0, 0], sizes = [2, 32], strides = [1, 1]} : vector<2x128xf32> to vector<2x32xf32>
    %cst_87 = arith.constant 5.000000e-01 : f32
    %230 = vector.broadcast %cst_87 : f32 to vector<2x32xf32>
    %231 = arith.mulf %230, %229 : vector<2x32xf32>
    %cst_88 = arith.constant 5.000000e-01 : f32
    %232 = vector.broadcast %cst_88 : f32 to vector<2x32xf32>
    %233 = arith.addf %231, %232 : vector<2x32xf32>
    %234 = vector.extract_strided_slice %228 {offsets = [0, 32], sizes = [2, 32], strides = [1, 1]} : vector<2x128xf32> to vector<2x32xf32>
    %cst_89 = arith.constant 5.000000e-01 : f32
    %235 = vector.broadcast %cst_89 : f32 to vector<2x32xf32>
    %236 = arith.mulf %235, %234 : vector<2x32xf32>
    %cst_90 = arith.constant 5.000000e-01 : f32
    %237 = vector.broadcast %cst_90 : f32 to vector<2x32xf32>
    %238 = arith.addf %236, %237 : vector<2x32xf32>
    %239 = vector.extract_strided_slice %228 {offsets = [0, 64], sizes = [2, 32], strides = [1, 1]} : vector<2x128xf32> to vector<2x32xf32>
    %cst_91 = arith.constant 5.000000e-01 : f32
    %240 = vector.broadcast %cst_91 : f32 to vector<2x32xf32>
    %241 = arith.mulf %240, %239 : vector<2x32xf32>
    %cst_92 = arith.constant 5.000000e-01 : f32
    %242 = vector.broadcast %cst_92 : f32 to vector<2x32xf32>
    %243 = arith.addf %241, %242 : vector<2x32xf32>
    %244 = vector.extract_strided_slice %228 {offsets = [0, 96], sizes = [2, 32], strides = [1, 1]} : vector<2x128xf32> to vector<2x32xf32>
    %245 = arith.mulf %238, %221 : vector<2x32xf32>
    %246 = arith.mulf %233, %244 : vector<2x32xf32>
    %247 = arith.addf %245, %246 : vector<2x32xf32>
    %248 = math.tanh %247 : vector<2x32xf32>
    %249 = arith.mulf %243, %248 : vector<2x32xf32>
    %c14 = arith.constant 14 : index
    %c0_93 = arith.constant 0 : index
    %250 = vector.load %arg20[%c14, %c0_93] : memref<16x32xf32, #tpu.memory_space<vmem>>, vector<2x32xf32>
    tpu.vector_store %arg20[%c14, %c0_93], %249 {strides = array<i32>} : memref<16x32xf32, #tpu.memory_space<vmem>>, vector<2x32xf32>,
    %c0_94 = arith.constant 0 : index
    %c0_95 = arith.constant 0 : index
    %251 = vector.load %arg20[%c0_94, %c0_95] : memref<16x32xf32, #tpu.memory_space<vmem>>, vector<16x32xf32>
    %c0_96 = arith.constant 0 : index
    %c0_97 = arith.constant 0 : index
    %252 = vector.load %arg9[%c0_96, %c0_97] : memref<32x32xf32, #tpu.memory_space<vmem>>, vector<32x32xf32>
    %cst_98 = arith.constant dense<0.000000e+00> : vector<16x32xf32>
    %253 = tpu.matmul %251, %252, %cst_98 {dimension_numbers = #tpu.dot_dimension_numbers<[1], [0], [0], [1], [0, 0, 1, 1], [], []>} : vector<16x32xf32>, vector<32x32xf32>, vector<16x32xf32> -> vector<16x32xf32>
    %c0_99 = arith.constant 0 : index
    %c0_100 = arith.constant 0 : index
    %254 = vector.load %arg10[%c0_99, %c0_100] : memref<1x32xf32, #tpu.memory_space<vmem>>, vector<1x32xf32>
    %255 = vector.broadcast %254 : vector<1x32xf32> to vector<16x32xf32>
    %256 = arith.addf %253, %255 : vector<16x32xf32>
    %257 = math.tanh %256 : vector<16x32xf32>
    %258 = arith.mulf %257, %257 : vector<16x32xf32>
    %cst_101 = arith.constant dense<0.000000e+00> : vector<16xf32>
    %259 = vector.multi_reduction <add>, %258, %cst_101 [1] : vector<16x32xf32> to vector<16xf32>
    %260 = vector.shape_cast %259 : vector<16xf32> to vector<16x1xf32>
    %cst_102 = arith.constant 1.000000e-16 : f32
    %261 = vector.broadcast %cst_102 : f32 to vector<16x1xf32>
    %262 = arith.maximumf %260, %261 : vector<16x1xf32>
    %263 = math.rsqrt %262 : vector<16x1xf32>
    %264 = vector.broadcast %263 : vector<16x1xf32> to vector<16x32xf32>
    %265 = arith.mulf %257, %264 : vector<16x32xf32>
    %266 = tpu.iota {dimensions = array<i32: 0>} : vector<8x16xi32>
    %267 = tpu.iota {dimensions = array<i32: 1>} : vector<8x16xi32>
    %c2_i32_103 = arith.constant 2 : i32
    %268 = vector.broadcast %c2_i32_103 : i32 to vector<8x16xi32>
    %269 = arith.muli %266, %268 : vector<8x16xi32>
    %c0_i32 = arith.constant 0 : i32
    %270 = vector.broadcast %c0_i32 : i32 to vector<8x16xi32>
    %271 = arith.addi %269, %270 : vector<8x16xi32>
    %272 = arith.cmpi eq, %267, %271 : vector<8x16xi32>
    %273 = arith.extui %272 : vector<8x16xi1> to vector<8x16xi32>
    %274 = arith.sitofp %273 : vector<8x16xi32> to vector<8x16xf32>
    %cst_104 = arith.constant dense<0.000000e+00> : vector<8x32xf32>
    %275 = tpu.matmul %274, %265, %cst_104 {dimension_numbers = #tpu.dot_dimension_numbers<[1], [0], [0], [1], [0, 0, 1, 1], [], []>} : vector<8x16xf32>, vector<16x32xf32>, vector<8x32xf32> -> vector<8x32xf32>
    %cst_105 = arith.constant dense<0.000000e+00> : vector<8x8xf32>
    %276 = tpu.matmul %275, %275, %cst_105 {dimension_numbers = #tpu.dot_dimension_numbers<[1], [1], [0], [0], [0, 0, 1, 0], [], []>} : vector<8x32xf32>, vector<8x32xf32>, vector<8x8xf32> -> vector<8x8xf32>
    %cst_106 = arith.constant -0.99999988 : f32
    %cst_107 = arith.constant 0.99999988 : f32
    %277 = vector.broadcast %cst_106 : f32 to vector<8x8xf32>
    %278 = arith.maximumf %277, %276 : vector<8x8xf32>
    %279 = vector.broadcast %cst_107 : f32 to vector<8x8xf32>
    %280 = arith.minimumf %279, %278 : vector<8x8xf32>
    %cst_108 = arith.constant 0.707106769 : f32
    %281 = vector.broadcast %cst_108 : f32 to vector<8x8xf32>
    %282 = arith.cmpf oge, %280, %281 : vector<8x8xf32>
    %283 = arith.extui %282 : vector<8x8xi1> to vector<8x8xi32>
    %284 = arith.sitofp %283 : vector<8x8xi32> to vector<8x8xf32>
    %c0_109 = arith.constant 0 : index
    %c0_110 = arith.constant 0 : index
    %c0_111 = arith.constant 0 : index
    %285 = vector.load %arg19[%c0_109, %c0_110, %c0_111] : memref<2x8x8xf32, #tpu.memory_space<vmem>>, vector<1x8x8xf32>
    %286 = vector.shape_cast %285 : vector<1x8x8xf32> to vector<8x8xf32>
    %287 = vector.shape_cast %284 : vector<8x8xf32> to vector<1x8x8xf32>
    tpu.vector_store %arg19[%c0_109, %c0_110, %c0_111], %287 {strides = array<i32>} : memref<2x8x8xf32, #tpu.memory_space<vmem>>, vector<1x8x8xf32>,
    %c2_i32_112 = arith.constant 2 : i32
    %288 = vector.broadcast %c2_i32_112 : i32 to vector<8x16xi32>
    %289 = arith.muli %266, %288 : vector<8x16xi32>
    %c1_i32 = arith.constant 1 : i32
    %290 = vector.broadcast %c1_i32 : i32 to vector<8x16xi32>
    %291 = arith.addi %289, %290 : vector<8x16xi32>
    %292 = arith.cmpi eq, %267, %291 : vector<8x16xi32>
    %293 = arith.extui %292 : vector<8x16xi1> to vector<8x16xi32>
    %294 = arith.sitofp %293 : vector<8x16xi32> to vector<8x16xf32>
    %cst_113 = arith.constant dense<0.000000e+00> : vector<8x32xf32>
    %295 = tpu.matmul %294, %265, %cst_113 {dimension_numbers = #tpu.dot_dimension_numbers<[1], [0], [0], [1], [0, 0, 1, 1], [], []>} : vector<8x16xf32>, vector<16x32xf32>, vector<8x32xf32> -> vector<8x32xf32>
    %cst_114 = arith.constant dense<0.000000e+00> : vector<8x8xf32>
    %296 = tpu.matmul %295, %295, %cst_114 {dimension_numbers = #tpu.dot_dimension_numbers<[1], [1], [0], [0], [0, 0, 1, 0], [], []>} : vector<8x32xf32>, vector<8x32xf32>, vector<8x8xf32> -> vector<8x8xf32>
    %cst_115 = arith.constant -0.99999988 : f32
    %cst_116 = arith.constant 0.99999988 : f32
    %297 = vector.broadcast %cst_115 : f32 to vector<8x8xf32>
    %298 = arith.maximumf %297, %296 : vector<8x8xf32>
    %299 = vector.broadcast %cst_116 : f32 to vector<8x8xf32>
    %300 = arith.minimumf %299, %298 : vector<8x8xf32>
    %cst_117 = arith.constant 0.707106769 : f32
    %301 = vector.broadcast %cst_117 : f32 to vector<8x8xf32>
    %302 = arith.cmpf oge, %300, %301 : vector<8x8xf32>
    %303 = arith.extui %302 : vector<8x8xi1> to vector<8x8xi32>
    %304 = arith.sitofp %303 : vector<8x8xi32> to vector<8x8xf32>
    %c1 = arith.constant 1 : index
    %c0_118 = arith.constant 0 : index
    %c0_119 = arith.constant 0 : index
    %305 = vector.load %arg19[%c1, %c0_118, %c0_119] : memref<2x8x8xf32, #tpu.memory_space<vmem>>, vector<1x8x8xf32>
    %306 = vector.shape_cast %305 : vector<1x8x8xf32> to vector<8x8xf32>
    %307 = vector.shape_cast %304 : vector<8x8xf32> to vector<1x8x8xf32>
    tpu.vector_store %arg19[%c1, %c0_118, %c0_119], %307 {strides = array<i32>} : memref<2x8x8xf32, #tpu.memory_space<vmem>>, vector<1x8x8xf32>,
    %c0_120 = arith.constant 0 : index
    %c0_121 = arith.constant 0 : index
    %308 = vector.load %arg11[%c0_120, %c0_121] : memref<32x128xf32, #tpu.memory_space<vmem>>, vector<32x128xf32>
    %cst_122 = arith.constant dense<0.000000e+00> : vector<16x128xf32>
    %309 = tpu.matmul %257, %308, %cst_122 {dimension_numbers = #tpu.dot_dimension_numbers<[1], [0], [0], [1], [0, 0, 1, 1], [], []>} : vector<16x32xf32>, vector<32x128xf32>, vector<16x128xf32> -> vector<16x128xf32>
    %c0_123 = arith.constant 0 : index
    %c0_124 = arith.constant 0 : index
    %310 = vector.load %arg13[%c0_123, %c0_124] : memref<1x128xf32, #tpu.memory_space<vmem>>, vector<1x128xf32>
    %311 = vector.broadcast %310 : vector<1x128xf32> to vector<16x128xf32>
    %312 = arith.addf %309, %311 : vector<16x128xf32>
    %c0_125 = arith.constant 0 : index
    %c0_126 = arith.constant 0 : index
    %313 = vector.load %arg12[%c0_125, %c0_126] : memref<32x128xf32, #tpu.memory_space<vmem>>, vector<32x128xf32>
    %cst_127 = arith.constant 0.000000e+00 : f32
    %314 = vector.broadcast %cst_127 : f32 to vector<2x32xf32>
    %cst_128 = arith.constant 0.000000e+00 : f32
    %315 = vector.broadcast %cst_128 : f32 to vector<2x32xf32>
    %316 = vector.extract_strided_slice %312 {offsets = [0, 0], sizes = [2, 128], strides = [1, 1]} : vector<16x128xf32> to vector<2x128xf32>
    %cst_129 = arith.constant dense<0.000000e+00> : vector<2x128xf32>
    %317 = tpu.matmul %314, %313, %cst_129 {dimension_numbers = #tpu.dot_dimension_numbers<[1], [0], [0], [1], [0, 0, 1, 1], [], []>} : vector<2x32xf32>, vector<32x128xf32>, vector<2x128xf32> -> vector<2x128xf32>
    %318 = arith.addf %316, %317 : vector<2x128xf32>
    %319 = math.tanh %318 : vector<2x128xf32>
    %320 = vector.extract_strided_slice %319 {offsets = [0, 0], sizes = [2, 32], strides = [1, 1]} : vector<2x128xf32> to vector<2x32xf32>
    %cst_130 = arith.constant 5.000000e-01 : f32
    %321 = vector.broadcast %cst_130 : f32 to vector<2x32xf32>
    %322 = arith.mulf %321, %320 : vector<2x32xf32>
    %cst_131 = arith.constant 5.000000e-01 : f32
    %323 = vector.broadcast %cst_131 : f32 to vector<2x32xf32>
    %324 = arith.addf %322, %323 : vector<2x32xf32>
    %325 = vector.extract_strided_slice %319 {offsets = [0, 32], sizes = [2, 32], strides = [1, 1]} : vector<2x128xf32> to vector<2x32xf32>
    %cst_132 = arith.constant 5.000000e-01 : f32
    %326 = vector.broadcast %cst_132 : f32 to vector<2x32xf32>
    %327 = arith.mulf %326, %325 : vector<2x32xf32>
    %cst_133 = arith.constant 5.000000e-01 : f32
    %328 = vector.broadcast %cst_133 : f32 to vector<2x32xf32>
    %329 = arith.addf %327, %328 : vector<2x32xf32>
    %330 = vector.extract_strided_slice %319 {offsets = [0, 64], sizes = [2, 32], strides = [1, 1]} : vector<2x128xf32> to vector<2x32xf32>
    %cst_134 = arith.constant 5.000000e-01 : f32
    %331 = vector.broadcast %cst_134 : f32 to vector<2x32xf32>
    %332 = arith.mulf %331, %330 : vector<2x32xf32>
    %cst_135 = arith.constant 5.000000e-01 : f32
    %333 = vector.broadcast %cst_135 : f32 to vector<2x32xf32>
    %334 = arith.addf %332, %333 : vector<2x32xf32>
    %335 = vector.extract_strided_slice %319 {offsets = [0, 96], sizes = [2, 32], strides = [1, 1]} : vector<2x128xf32> to vector<2x32xf32>
    %336 = arith.mulf %329, %315 : vector<2x32xf32>
    %337 = arith.mulf %324, %335 : vector<2x32xf32>
    %338 = arith.addf %336, %337 : vector<2x32xf32>
    %339 = math.tanh %338 : vector<2x32xf32>
    %340 = arith.mulf %334, %339 : vector<2x32xf32>
    %c0_136 = arith.constant 0 : index
    %c0_137 = arith.constant 0 : index
    %341 = vector.load %arg21[%c0_136, %c0_137] : memref<16x32xf32, #tpu.memory_space<vmem>>, vector<2x32xf32>
    tpu.vector_store %arg21[%c0_136, %c0_137], %340 {strides = array<i32>} : memref<16x32xf32, #tpu.memory_space<vmem>>, vector<2x32xf32>,
    %342 = vector.extract_strided_slice %312 {offsets = [2, 0], sizes = [2, 128], strides = [1, 1]} : vector<16x128xf32> to vector<2x128xf32>
    %cst_138 = arith.constant dense<0.000000e+00> : vector<2x128xf32>
    %343 = tpu.matmul %340, %313, %cst_138 {dimension_numbers = #tpu.dot_dimension_numbers<[1], [0], [0], [1], [0, 0, 1, 1], [], []>} : vector<2x32xf32>, vector<32x128xf32>, vector<2x128xf32> -> vector<2x128xf32>
    %344 = arith.addf %342, %343 : vector<2x128xf32>
    %345 = math.tanh %344 : vector<2x128xf32>
    %346 = vector.extract_strided_slice %345 {offsets = [0, 0], sizes = [2, 32], strides = [1, 1]} : vector<2x128xf32> to vector<2x32xf32>
    %cst_139 = arith.constant 5.000000e-01 : f32
    %347 = vector.broadcast %cst_139 : f32 to vector<2x32xf32>
    %348 = arith.mulf %347, %346 : vector<2x32xf32>
    %cst_140 = arith.constant 5.000000e-01 : f32
    %349 = vector.broadcast %cst_140 : f32 to vector<2x32xf32>
    %350 = arith.addf %348, %349 : vector<2x32xf32>
    %351 = vector.extract_strided_slice %345 {offsets = [0, 32], sizes = [2, 32], strides = [1, 1]} : vector<2x128xf32> to vector<2x32xf32>
    %cst_141 = arith.constant 5.000000e-01 : f32
    %352 = vector.broadcast %cst_141 : f32 to vector<2x32xf32>
    %353 = arith.mulf %352, %351 : vector<2x32xf32>
    %cst_142 = arith.constant 5.000000e-01 : f32
    %354 = vector.broadcast %cst_142 : f32 to vector<2x32xf32>
    %355 = arith.addf %353, %354 : vector<2x32xf32>
    %356 = vector.extract_strided_slice %345 {offsets = [0, 64], sizes = [2, 32], strides = [1, 1]} : vector<2x128xf32> to vector<2x32xf32>
    %cst_143 = arith.constant 5.000000e-01 : f32
    %357 = vector.broadcast %cst_143 : f32 to vector<2x32xf32>
    %358 = arith.mulf %357, %356 : vector<2x32xf32>
    %cst_144 = arith.constant 5.000000e-01 : f32
    %359 = vector.broadcast %cst_144 : f32 to vector<2x32xf32>
    %360 = arith.addf %358, %359 : vector<2x32xf32>
    %361 = vector.extract_strided_slice %345 {offsets = [0, 96], sizes = [2, 32], strides = [1, 1]} : vector<2x128xf32> to vector<2x32xf32>
    %362 = arith.mulf %355, %338 : vector<2x32xf32>
    %363 = arith.mulf %350, %361 : vector<2x32xf32>
    %364 = arith.addf %362, %363 : vector<2x32xf32>
    %365 = math.tanh %364 : vector<2x32xf32>
    %366 = arith.mulf %360, %365 : vector<2x32xf32>
    %c2_145 = arith.constant 2 : index
    %c0_146 = arith.constant 0 : index
    %367 = vector.load %arg21[%c2_145, %c0_146] : memref<16x32xf32, #tpu.memory_space<vmem>>, vector<2x32xf32>
    tpu.vector_store %arg21[%c2_145, %c0_146], %366 {strides = array<i32>} : memref<16x32xf32, #tpu.memory_space<vmem>>, vector<2x32xf32>,
    %368 = vector.extract_strided_slice %312 {offsets = [4, 0], sizes = [2, 128], strides = [1, 1]} : vector<16x128xf32> to vector<2x128xf32>
    %cst_147 = arith.constant dense<0.000000e+00> : vector<2x128xf32>
    %369 = tpu.matmul %366, %313, %cst_147 {dimension_numbers = #tpu.dot_dimension_numbers<[1], [0], [0], [1], [0, 0, 1, 1], [], []>} : vector<2x32xf32>, vector<32x128xf32>, vector<2x128xf32> -> vector<2x128xf32>
    %370 = arith.addf %368, %369 : vector<2x128xf32>
    %371 = math.tanh %370 : vector<2x128xf32>
    %372 = vector.extract_strided_slice %371 {offsets = [0, 0], sizes = [2, 32], strides = [1, 1]} : vector<2x128xf32> to vector<2x32xf32>
    %cst_148 = arith.constant 5.000000e-01 : f32
    %373 = vector.broadcast %cst_148 : f32 to vector<2x32xf32>
    %374 = arith.mulf %373, %372 : vector<2x32xf32>
    %cst_149 = arith.constant 5.000000e-01 : f32
    %375 = vector.broadcast %cst_149 : f32 to vector<2x32xf32>
    %376 = arith.addf %374, %375 : vector<2x32xf32>
    %377 = vector.extract_strided_slice %371 {offsets = [0, 32], sizes = [2, 32], strides = [1, 1]} : vector<2x128xf32> to vector<2x32xf32>
    %cst_150 = arith.constant 5.000000e-01 : f32
    %378 = vector.broadcast %cst_150 : f32 to vector<2x32xf32>
    %379 = arith.mulf %378, %377 : vector<2x32xf32>
    %cst_151 = arith.constant 5.000000e-01 : f32
    %380 = vector.broadcast %cst_151 : f32 to vector<2x32xf32>
    %381 = arith.addf %379, %380 : vector<2x32xf32>
    %382 = vector.extract_strided_slice %371 {offsets = [0, 64], sizes = [2, 32], strides = [1, 1]} : vector<2x128xf32> to vector<2x32xf32>
    %cst_152 = arith.constant 5.000000e-01 : f32
    %383 = vector.broadcast %cst_152 : f32 to vector<2x32xf32>
    %384 = arith.mulf %383, %382 : vector<2x32xf32>
    %cst_153 = arith.constant 5.000000e-01 : f32
    %385 = vector.broadcast %cst_153 : f32 to vector<2x32xf32>
    %386 = arith.addf %384, %385 : vector<2x32xf32>
    %387 = vector.extract_strided_slice %371 {offsets = [0, 96], sizes = [2, 32], strides = [1, 1]} : vector<2x128xf32> to vector<2x32xf32>
    %388 = arith.mulf %381, %364 : vector<2x32xf32>
    %389 = arith.mulf %376, %387 : vector<2x32xf32>
    %390 = arith.addf %388, %389 : vector<2x32xf32>
    %391 = math.tanh %390 : vector<2x32xf32>
    %392 = arith.mulf %386, %391 : vector<2x32xf32>
    %c4_154 = arith.constant 4 : index
    %c0_155 = arith.constant 0 : index
    %393 = vector.load %arg21[%c4_154, %c0_155] : memref<16x32xf32, #tpu.memory_space<vmem>>, vector<2x32xf32>
    tpu.vector_store %arg21[%c4_154, %c0_155], %392 {strides = array<i32>} : memref<16x32xf32, #tpu.memory_space<vmem>>, vector<2x32xf32>,
    %394 = vector.extract_strided_slice %312 {offsets = [6, 0], sizes = [2, 128], strides = [1, 1]} : vector<16x128xf32> to vector<2x128xf32>
    %cst_156 = arith.constant dense<0.000000e+00> : vector<2x128xf32>
    %395 = tpu.matmul %392, %313, %cst_156 {dimension_numbers = #tpu.dot_dimension_numbers<[1], [0], [0], [1], [0, 0, 1, 1], [], []>} : vector<2x32xf32>, vector<32x128xf32>, vector<2x128xf32> -> vector<2x128xf32>
    %396 = arith.addf %394, %395 : vector<2x128xf32>
    %397 = math.tanh %396 : vector<2x128xf32>
    %398 = vector.extract_strided_slice %397 {offsets = [0, 0], sizes = [2, 32], strides = [1, 1]} : vector<2x128xf32> to vector<2x32xf32>
    %cst_157 = arith.constant 5.000000e-01 : f32
    %399 = vector.broadcast %cst_157 : f32 to vector<2x32xf32>
    %400 = arith.mulf %399, %398 : vector<2x32xf32>
    %cst_158 = arith.constant 5.000000e-01 : f32
    %401 = vector.broadcast %cst_158 : f32 to vector<2x32xf32>
    %402 = arith.addf %400, %401 : vector<2x32xf32>
    %403 = vector.extract_strided_slice %397 {offsets = [0, 32], sizes = [2, 32], strides = [1, 1]} : vector<2x128xf32> to vector<2x32xf32>
    %cst_159 = arith.constant 5.000000e-01 : f32
    %404 = vector.broadcast %cst_159 : f32 to vector<2x32xf32>
    %405 = arith.mulf %404, %403 : vector<2x32xf32>
    %cst_160 = arith.constant 5.000000e-01 : f32
    %406 = vector.broadcast %cst_160 : f32 to vector<2x32xf32>
    %407 = arith.addf %405, %406 : vector<2x32xf32>
    %408 = vector.extract_strided_slice %397 {offsets = [0, 64], sizes = [2, 32], strides = [1, 1]} : vector<2x128xf32> to vector<2x32xf32>
    %cst_161 = arith.constant 5.000000e-01 : f32
    %409 = vector.broadcast %cst_161 : f32 to vector<2x32xf32>
    %410 = arith.mulf %409, %408 : vector<2x32xf32>
    %cst_162 = arith.constant 5.000000e-01 : f32
    %411 = vector.broadcast %cst_162 : f32 to vector<2x32xf32>
    %412 = arith.addf %410, %411 : vector<2x32xf32>
    %413 = vector.extract_strided_slice %397 {offsets = [0, 96], sizes = [2, 32], strides = [1, 1]} : vector<2x128xf32> to vector<2x32xf32>
    %414 = arith.mulf %407, %390 : vector<2x32xf32>
    %415 = arith.mulf %402, %413 : vector<2x32xf32>
    %416 = arith.addf %414, %415 : vector<2x32xf32>
    %417 = math.tanh %416 : vector<2x32xf32>
    %418 = arith.mulf %412, %417 : vector<2x32xf32>
    %c6_163 = arith.constant 6 : index
    %c0_164 = arith.constant 0 : index
    %419 = vector.load %arg21[%c6_163, %c0_164] : memref<16x32xf32, #tpu.memory_space<vmem>>, vector<2x32xf32>
    tpu.vector_store %arg21[%c6_163, %c0_164], %418 {strides = array<i32>} : memref<16x32xf32, #tpu.memory_space<vmem>>, vector<2x32xf32>,
    %420 = vector.extract_strided_slice %312 {offsets = [8, 0], sizes = [2, 128], strides = [1, 1]} : vector<16x128xf32> to vector<2x128xf32>
    %cst_165 = arith.constant dense<0.000000e+00> : vector<2x128xf32>
    %421 = tpu.matmul %418, %313, %cst_165 {dimension_numbers = #tpu.dot_dimension_numbers<[1], [0], [0], [1], [0, 0, 1, 1], [], []>} : vector<2x32xf32>, vector<32x128xf32>, vector<2x128xf32> -> vector<2x128xf32>
    %422 = arith.addf %420, %421 : vector<2x128xf32>
    %423 = math.tanh %422 : vector<2x128xf32>
    %424 = vector.extract_strided_slice %423 {offsets = [0, 0], sizes = [2, 32], strides = [1, 1]} : vector<2x128xf32> to vector<2x32xf32>
    %cst_166 = arith.constant 5.000000e-01 : f32
    %425 = vector.broadcast %cst_166 : f32 to vector<2x32xf32>
    %426 = arith.mulf %425, %424 : vector<2x32xf32>
    %cst_167 = arith.constant 5.000000e-01 : f32
    %427 = vector.broadcast %cst_167 : f32 to vector<2x32xf32>
    %428 = arith.addf %426, %427 : vector<2x32xf32>
    %429 = vector.extract_strided_slice %423 {offsets = [0, 32], sizes = [2, 32], strides = [1, 1]} : vector<2x128xf32> to vector<2x32xf32>
    %cst_168 = arith.constant 5.000000e-01 : f32
    %430 = vector.broadcast %cst_168 : f32 to vector<2x32xf32>
    %431 = arith.mulf %430, %429 : vector<2x32xf32>
    %cst_169 = arith.constant 5.000000e-01 : f32
    %432 = vector.broadcast %cst_169 : f32 to vector<2x32xf32>
    %433 = arith.addf %431, %432 : vector<2x32xf32>
    %434 = vector.extract_strided_slice %423 {offsets = [0, 64], sizes = [2, 32], strides = [1, 1]} : vector<2x128xf32> to vector<2x32xf32>
    %cst_170 = arith.constant 5.000000e-01 : f32
    %435 = vector.broadcast %cst_170 : f32 to vector<2x32xf32>
    %436 = arith.mulf %435, %434 : vector<2x32xf32>
    %cst_171 = arith.constant 5.000000e-01 : f32
    %437 = vector.broadcast %cst_171 : f32 to vector<2x32xf32>
    %438 = arith.addf %436, %437 : vector<2x32xf32>
    %439 = vector.extract_strided_slice %423 {offsets = [0, 96], sizes = [2, 32], strides = [1, 1]} : vector<2x128xf32> to vector<2x32xf32>
    %440 = arith.mulf %433, %416 : vector<2x32xf32>
    %441 = arith.mulf %428, %439 : vector<2x32xf32>
    %442 = arith.addf %440, %441 : vector<2x32xf32>
    %443 = math.tanh %442 : vector<2x32xf32>
    %444 = arith.mulf %438, %443 : vector<2x32xf32>
    %c8_172 = arith.constant 8 : index
    %c0_173 = arith.constant 0 : index
    %445 = vector.load %arg21[%c8_172, %c0_173] : memref<16x32xf32, #tpu.memory_space<vmem>>, vector<2x32xf32>
    tpu.vector_store %arg21[%c8_172, %c0_173], %444 {strides = array<i32>} : memref<16x32xf32, #tpu.memory_space<vmem>>, vector<2x32xf32>,
    %446 = vector.extract_strided_slice %312 {offsets = [10, 0], sizes = [2, 128], strides = [1, 1]} : vector<16x128xf32> to vector<2x128xf32>
    %cst_174 = arith.constant dense<0.000000e+00> : vector<2x128xf32>
    %447 = tpu.matmul %444, %313, %cst_174 {dimension_numbers = #tpu.dot_dimension_numbers<[1], [0], [0], [1], [0, 0, 1, 1], [], []>} : vector<2x32xf32>, vector<32x128xf32>, vector<2x128xf32> -> vector<2x128xf32>
    %448 = arith.addf %446, %447 : vector<2x128xf32>
    %449 = math.tanh %448 : vector<2x128xf32>
    %450 = vector.extract_strided_slice %449 {offsets = [0, 0], sizes = [2, 32], strides = [1, 1]} : vector<2x128xf32> to vector<2x32xf32>
    %cst_175 = arith.constant 5.000000e-01 : f32
    %451 = vector.broadcast %cst_175 : f32 to vector<2x32xf32>
    %452 = arith.mulf %451, %450 : vector<2x32xf32>
    %cst_176 = arith.constant 5.000000e-01 : f32
    %453 = vector.broadcast %cst_176 : f32 to vector<2x32xf32>
    %454 = arith.addf %452, %453 : vector<2x32xf32>
    %455 = vector.extract_strided_slice %449 {offsets = [0, 32], sizes = [2, 32], strides = [1, 1]} : vector<2x128xf32> to vector<2x32xf32>
    %cst_177 = arith.constant 5.000000e-01 : f32
    %456 = vector.broadcast %cst_177 : f32 to vector<2x32xf32>
    %457 = arith.mulf %456, %455 : vector<2x32xf32>
    %cst_178 = arith.constant 5.000000e-01 : f32
    %458 = vector.broadcast %cst_178 : f32 to vector<2x32xf32>
    %459 = arith.addf %457, %458 : vector<2x32xf32>
    %460 = vector.extract_strided_slice %449 {offsets = [0, 64], sizes = [2, 32], strides = [1, 1]} : vector<2x128xf32> to vector<2x32xf32>
    %cst_179 = arith.constant 5.000000e-01 : f32
    %461 = vector.broadcast %cst_179 : f32 to vector<2x32xf32>
    %462 = arith.mulf %461, %460 : vector<2x32xf32>
    %cst_180 = arith.constant 5.000000e-01 : f32
    %463 = vector.broadcast %cst_180 : f32 to vector<2x32xf32>
    %464 = arith.addf %462, %463 : vector<2x32xf32>
    %465 = vector.extract_strided_slice %449 {offsets = [0, 96], sizes = [2, 32], strides = [1, 1]} : vector<2x128xf32> to vector<2x32xf32>
    %466 = arith.mulf %459, %442 : vector<2x32xf32>
    %467 = arith.mulf %454, %465 : vector<2x32xf32>
    %468 = arith.addf %466, %467 : vector<2x32xf32>
    %469 = math.tanh %468 : vector<2x32xf32>
    %470 = arith.mulf %464, %469 : vector<2x32xf32>
    %c10_181 = arith.constant 10 : index
    %c0_182 = arith.constant 0 : index
    %471 = vector.load %arg21[%c10_181, %c0_182] : memref<16x32xf32, #tpu.memory_space<vmem>>, vector<2x32xf32>
    tpu.vector_store %arg21[%c10_181, %c0_182], %470 {strides = array<i32>} : memref<16x32xf32, #tpu.memory_space<vmem>>, vector<2x32xf32>,
    %472 = vector.extract_strided_slice %312 {offsets = [12, 0], sizes = [2, 128], strides = [1, 1]} : vector<16x128xf32> to vector<2x128xf32>
    %cst_183 = arith.constant dense<0.000000e+00> : vector<2x128xf32>
    %473 = tpu.matmul %470, %313, %cst_183 {dimension_numbers = #tpu.dot_dimension_numbers<[1], [0], [0], [1], [0, 0, 1, 1], [], []>} : vector<2x32xf32>, vector<32x128xf32>, vector<2x128xf32> -> vector<2x128xf32>
    %474 = arith.addf %472, %473 : vector<2x128xf32>
    %475 = math.tanh %474 : vector<2x128xf32>
    %476 = vector.extract_strided_slice %475 {offsets = [0, 0], sizes = [2, 32], strides = [1, 1]} : vector<2x128xf32> to vector<2x32xf32>
    %cst_184 = arith.constant 5.000000e-01 : f32
    %477 = vector.broadcast %cst_184 : f32 to vector<2x32xf32>
    %478 = arith.mulf %477, %476 : vector<2x32xf32>
    %cst_185 = arith.constant 5.000000e-01 : f32
    %479 = vector.broadcast %cst_185 : f32 to vector<2x32xf32>
    %480 = arith.addf %478, %479 : vector<2x32xf32>
    %481 = vector.extract_strided_slice %475 {offsets = [0, 32], sizes = [2, 32], strides = [1, 1]} : vector<2x128xf32> to vector<2x32xf32>
    %cst_186 = arith.constant 5.000000e-01 : f32
    %482 = vector.broadcast %cst_186 : f32 to vector<2x32xf32>
    %483 = arith.mulf %482, %481 : vector<2x32xf32>
    %cst_187 = arith.constant 5.000000e-01 : f32
    %484 = vector.broadcast %cst_187 : f32 to vector<2x32xf32>
    %485 = arith.addf %483, %484 : vector<2x32xf32>
    %486 = vector.extract_strided_slice %475 {offsets = [0, 64], sizes = [2, 32], strides = [1, 1]} : vector<2x128xf32> to vector<2x32xf32>
    %cst_188 = arith.constant 5.000000e-01 : f32
    %487 = vector.broadcast %cst_188 : f32 to vector<2x32xf32>
    %488 = arith.mulf %487, %486 : vector<2x32xf32>
    %cst_189 = arith.constant 5.000000e-01 : f32
    %489 = vector.broadcast %cst_189 : f32 to vector<2x32xf32>
    %490 = arith.addf %488, %489 : vector<2x32xf32>
    %491 = vector.extract_strided_slice %475 {offsets = [0, 96], sizes = [2, 32], strides = [1, 1]} : vector<2x128xf32> to vector<2x32xf32>
    %492 = arith.mulf %485, %468 : vector<2x32xf32>
    %493 = arith.mulf %480, %491 : vector<2x32xf32>
    %494 = arith.addf %492, %493 : vector<2x32xf32>
    %495 = math.tanh %494 : vector<2x32xf32>
    %496 = arith.mulf %490, %495 : vector<2x32xf32>
    %c12_190 = arith.constant 12 : index
    %c0_191 = arith.constant 0 : index
    %497 = vector.load %arg21[%c12_190, %c0_191] : memref<16x32xf32, #tpu.memory_space<vmem>>, vector<2x32xf32>
    tpu.vector_store %arg21[%c12_190, %c0_191], %496 {strides = array<i32>} : memref<16x32xf32, #tpu.memory_space<vmem>>, vector<2x32xf32>,
    %498 = vector.extract_strided_slice %312 {offsets = [14, 0], sizes = [2, 128], strides = [1, 1]} : vector<16x128xf32> to vector<2x128xf32>
    %cst_192 = arith.constant dense<0.000000e+00> : vector<2x128xf32>
    %499 = tpu.matmul %496, %313, %cst_192 {dimension_numbers = #tpu.dot_dimension_numbers<[1], [0], [0], [1], [0, 0, 1, 1], [], []>} : vector<2x32xf32>, vector<32x128xf32>, vector<2x128xf32> -> vector<2x128xf32>
    %500 = arith.addf %498, %499 : vector<2x128xf32>
    %501 = math.tanh %500 : vector<2x128xf32>
    %502 = vector.extract_strided_slice %501 {offsets = [0, 0], sizes = [2, 32], strides = [1, 1]} : vector<2x128xf32> to vector<2x32xf32>
    %cst_193 = arith.constant 5.000000e-01 : f32
    %503 = vector.broadcast %cst_193 : f32 to vector<2x32xf32>
    %504 = arith.mulf %503, %502 : vector<2x32xf32>
    %cst_194 = arith.constant 5.000000e-01 : f32
    %505 = vector.broadcast %cst_194 : f32 to vector<2x32xf32>
    %506 = arith.addf %504, %505 : vector<2x32xf32>
    %507 = vector.extract_strided_slice %501 {offsets = [0, 32], sizes = [2, 32], strides = [1, 1]} : vector<2x128xf32> to vector<2x32xf32>
    %cst_195 = arith.constant 5.000000e-01 : f32
    %508 = vector.broadcast %cst_195 : f32 to vector<2x32xf32>
    %509 = arith.mulf %508, %507 : vector<2x32xf32>
    %cst_196 = arith.constant 5.000000e-01 : f32
    %510 = vector.broadcast %cst_196 : f32 to vector<2x32xf32>
    %511 = arith.addf %509, %510 : vector<2x32xf32>
    %512 = vector.extract_strided_slice %501 {offsets = [0, 64], sizes = [2, 32], strides = [1, 1]} : vector<2x128xf32> to vector<2x32xf32>
    %cst_197 = arith.constant 5.000000e-01 : f32
    %513 = vector.broadcast %cst_197 : f32 to vector<2x32xf32>
    %514 = arith.mulf %513, %512 : vector<2x32xf32>
    %cst_198 = arith.constant 5.000000e-01 : f32
    %515 = vector.broadcast %cst_198 : f32 to vector<2x32xf32>
    %516 = arith.addf %514, %515 : vector<2x32xf32>
    %517 = vector.extract_strided_slice %501 {offsets = [0, 96], sizes = [2, 32], strides = [1, 1]} : vector<2x128xf32> to vector<2x32xf32>
    %518 = arith.mulf %511, %494 : vector<2x32xf32>
    %519 = arith.mulf %506, %517 : vector<2x32xf32>
    %520 = arith.addf %518, %519 : vector<2x32xf32>
    %521 = math.tanh %520 : vector<2x32xf32>
    %522 = arith.mulf %516, %521 : vector<2x32xf32>
    %c14_199 = arith.constant 14 : index
    %c0_200 = arith.constant 0 : index
    %523 = vector.load %arg21[%c14_199, %c0_200] : memref<16x32xf32, #tpu.memory_space<vmem>>, vector<2x32xf32>
    tpu.vector_store %arg21[%c14_199, %c0_200], %522 {strides = array<i32>} : memref<16x32xf32, #tpu.memory_space<vmem>>, vector<2x32xf32>,
    %c0_201 = arith.constant 0 : index
    %c0_202 = arith.constant 0 : index
    %524 = vector.load %arg21[%c0_201, %c0_202] : memref<16x32xf32, #tpu.memory_space<vmem>>, vector<16x32xf32>
    %c0_203 = arith.constant 0 : index
    %c0_204 = arith.constant 0 : index
    %525 = vector.load %arg14[%c0_203, %c0_204] : memref<128x16xf32, #tpu.memory_space<vmem>>, vector<32x16xf32>
    %c32 = arith.constant 32 : index
    %c0_205 = arith.constant 0 : index
    %526 = vector.load %arg14[%c32, %c0_205] : memref<128x16xf32, #tpu.memory_space<vmem>>, vector<32x16xf32>
    %c64 = arith.constant 64 : index
    %c0_206 = arith.constant 0 : index
    %527 = vector.load %arg14[%c64, %c0_206] : memref<128x16xf32, #tpu.memory_space<vmem>>, vector<32x16xf32>
    %c96 = arith.constant 96 : index
    %c0_207 = arith.constant 0 : index
    %528 = vector.load %arg14[%c96, %c0_207] : memref<128x16xf32, #tpu.memory_space<vmem>>, vector<32x16xf32>
    %c0_208 = arith.constant 0 : index
    %c0_209 = arith.constant 0 : index
    %529 = vector.load %arg15[%c0_208, %c0_209] : memref<1x16xf32, #tpu.memory_space<vmem>>, vector<1x16xf32>
    %cst_210 = arith.constant dense<0.000000e+00> : vector<16x16xf32>
    %530 = tpu.matmul %524, %526, %cst_210 {dimension_numbers = #tpu.dot_dimension_numbers<[1], [0], [0], [1], [0, 0, 1, 1], [], []>} : vector<16x32xf32>, vector<32x16xf32>, vector<16x16xf32> -> vector<16x16xf32>
    %cst_211 = arith.constant dense<0.000000e+00> : vector<16x32xf32>
    %531 = tpu.matmul %6, %524, %cst_211 {dimension_numbers = #tpu.dot_dimension_numbers<[1], [0], [0], [1], [0, 0, 1, 1], [], []>} : vector<16x16xf32>, vector<16x32xf32>, vector<16x32xf32> -> vector<16x32xf32>
    %cst_212 = arith.constant dense<0.000000e+00> : vector<16x16xf32>
    %532 = tpu.matmul %531, %528, %cst_212 {dimension_numbers = #tpu.dot_dimension_numbers<[1], [0], [0], [1], [0, 0, 1, 1], [], []>} : vector<16x32xf32>, vector<32x16xf32>, vector<16x16xf32> -> vector<16x16xf32>
    %533 = arith.addf %530, %532 : vector<16x16xf32>
    %534 = vector.broadcast %529 : vector<1x16xf32> to vector<16x16xf32>
    %535 = arith.addf %533, %534 : vector<16x16xf32>
    %cst_213 = arith.constant 0.000000e+00 : f32
    %536 = vector.broadcast %cst_213 : f32 to vector<16x16xf32>
    %537 = arith.maximumf %535, %536 : vector<16x16xf32>
    %cst_214 = arith.constant dense<0.000000e+00> : vector<16x32xf32>
    %538 = tpu.matmul %11, %524, %cst_214 {dimension_numbers = #tpu.dot_dimension_numbers<[1], [0], [0], [1], [0, 0, 1, 1], [], []>} : vector<16x16xf32>, vector<16x32xf32>, vector<16x32xf32> -> vector<16x32xf32>
    %cst_215 = arith.constant dense<0.000000e+00> : vector<16x16xf32>
    %539 = tpu.matmul %538, %525, %cst_215 {dimension_numbers = #tpu.dot_dimension_numbers<[1], [0], [0], [1], [0, 0, 1, 1], [], []>} : vector<16x32xf32>, vector<32x16xf32>, vector<16x16xf32> -> vector<16x16xf32>
    %cst_216 = arith.constant dense<0.000000e+00> : vector<16x16xf32>
    %540 = tpu.matmul %524, %527, %cst_216 {dimension_numbers = #tpu.dot_dimension_numbers<[1], [0], [0], [1], [0, 0, 1, 1], [], []>} : vector<16x32xf32>, vector<32x16xf32>, vector<16x16xf32> -> vector<16x16xf32>
    %541 = arith.addf %539, %540 : vector<16x16xf32>
    %542 = vector.broadcast %529 : vector<1x16xf32> to vector<16x16xf32>
    %543 = arith.addf %541, %542 : vector<16x16xf32>
    %cst_217 = arith.constant 0.000000e+00 : f32
    %544 = vector.broadcast %cst_217 : f32 to vector<16x16xf32>
    %545 = arith.maximumf %543, %544 : vector<16x16xf32>
    %c0_218 = arith.constant 0 : index
    %c0_219 = arith.constant 0 : index
    %546 = vector.load %arg16[%c0_218, %c0_219] : memref<48x128xf32, #tpu.memory_space<vmem>>, vector<16x128xf32>
    %c16_220 = arith.constant 16 : index
    %c0_221 = arith.constant 0 : index
    %547 = vector.load %arg16[%c16_220, %c0_221] : memref<48x128xf32, #tpu.memory_space<vmem>>, vector<16x128xf32>
    %c32_222 = arith.constant 32 : index
    %c0_223 = arith.constant 0 : index
    %548 = vector.load %arg16[%c32_222, %c0_223] : memref<48x128xf32, #tpu.memory_space<vmem>>, vector<16x128xf32>
    %c0_224 = arith.constant 0 : index
    %c0_225 = arith.constant 0 : index
    %549 = vector.load %arg17[%c0_224, %c0_225] : memref<1x128xf32, #tpu.memory_space<vmem>>, vector<1x128xf32>
    %cst_226 = arith.constant dense<0.000000e+00> : vector<16x16xf32>
    %550 = tpu.matmul %6, %545, %cst_226 {dimension_numbers = #tpu.dot_dimension_numbers<[1], [0], [0], [1], [0, 0, 1, 1], [], []>} : vector<16x16xf32>, vector<16x16xf32>, vector<16x16xf32> -> vector<16x16xf32>
    %cst_227 = arith.constant dense<0.000000e+00> : vector<16x128xf32>
    %551 = tpu.matmul %550, %546, %cst_227 {dimension_numbers = #tpu.dot_dimension_numbers<[1], [0], [0], [1], [0, 0, 1, 1], [], []>} : vector<16x16xf32>, vector<16x128xf32>, vector<16x128xf32> -> vector<16x128xf32>
    %cst_228 = arith.constant dense<0.000000e+00> : vector<16x128xf32>
    %552 = tpu.matmul %537, %547, %cst_228 {dimension_numbers = #tpu.dot_dimension_numbers<[1], [0], [0], [1], [0, 0, 1, 1], [], []>} : vector<16x16xf32>, vector<16x128xf32>, vector<16x128xf32> -> vector<16x128xf32>
    %553 = arith.addf %551, %552 : vector<16x128xf32>
    %cst_229 = arith.constant dense<0.000000e+00> : vector<16x128xf32>
    %554 = tpu.matmul %545, %548, %cst_229 {dimension_numbers = #tpu.dot_dimension_numbers<[1], [0], [0], [1], [0, 0, 1, 1], [], []>} : vector<16x16xf32>, vector<16x128xf32>, vector<16x128xf32> -> vector<16x128xf32>
    %555 = arith.addf %553, %554 : vector<16x128xf32>
    %556 = vector.broadcast %549 : vector<1x128xf32> to vector<16x128xf32>
    %557 = arith.addf %555, %556 : vector<16x128xf32>
    %558 = math.tanh %557 : vector<16x128xf32>
    %cst_230 = arith.constant dense<0.000000e+00> : vector<16x128xf32>
    %559 = tpu.matmul %537, %546, %cst_230 {dimension_numbers = #tpu.dot_dimension_numbers<[1], [0], [0], [1], [0, 0, 1, 1], [], []>} : vector<16x16xf32>, vector<16x128xf32>, vector<16x128xf32> -> vector<16x128xf32>
    %cst_231 = arith.constant dense<0.000000e+00> : vector<16x128xf32>
    %560 = tpu.matmul %545, %547, %cst_231 {dimension_numbers = #tpu.dot_dimension_numbers<[1], [0], [0], [1], [0, 0, 1, 1], [], []>} : vector<16x16xf32>, vector<16x128xf32>, vector<16x128xf32> -> vector<16x128xf32>
    %561 = arith.addf %559, %560 : vector<16x128xf32>
    %cst_232 = arith.constant dense<0.000000e+00> : vector<16x16xf32>
    %562 = tpu.matmul %11, %537, %cst_232 {dimension_numbers = #tpu.dot_dimension_numbers<[1], [0], [0], [1], [0, 0, 1, 1], [], []>} : vector<16x16xf32>, vector<16x16xf32>, vector<16x16xf32> -> vector<16x16xf32>
    %cst_233 = arith.constant dense<0.000000e+00> : vector<16x128xf32>
    %563 = tpu.matmul %562, %548, %cst_233 {dimension_numbers = #tpu.dot_dimension_numbers<[1], [0], [0], [1], [0, 0, 1, 1], [], []>} : vector<16x16xf32>, vector<16x128xf32>, vector<16x128xf32> -> vector<16x128xf32>
    %564 = arith.addf %561, %563 : vector<16x128xf32>
    %565 = vector.broadcast %549 : vector<1x128xf32> to vector<16x128xf32>
    %566 = arith.addf %564, %565 : vector<16x128xf32>
    %567 = math.tanh %566 : vector<16x128xf32>
    %c0_234 = arith.constant 0 : index
    %c0_235 = arith.constant 0 : index
    %568 = vector.load %arg18[%c0_234, %c0_235] : memref<32x128xf32, #tpu.memory_space<vmem>>, vector<16x128xf32>
    tpu.vector_store %arg18[%c0_234, %c0_235], %558 {strides = array<i32>} : memref<32x128xf32, #tpu.memory_space<vmem>>, vector<16x128xf32>,
    %c16_236 = arith.constant 16 : index
    %c0_237 = arith.constant 0 : index
    %569 = vector.load %arg18[%c16_236, %c0_237] : memref<32x128xf32, #tpu.memory_space<vmem>>, vector<16x128xf32>
    tpu.vector_store %arg18[%c16_236, %c0_237], %567 {strides = array<i32>} : memref<32x128xf32, #tpu.memory_space<vmem>>, vector<16x128xf32>,
    return
  }
  func.func @transform_0(%arg0: i32) -> (i32, i32) {
    %c0_i32 = arith.constant 0 : i32
    %c0_i32_0 = arith.constant 0 : i32
    %c0_i32_1 = arith.constant 0 : i32
    return %c0_i32, %c0_i32_0 : i32, i32
  }
  func.func @transform_1(%arg0: i32) -> (i32, i32) {
    %c0_i32 = arith.constant 0 : i32
    %c0_i32_0 = arith.constant 0 : i32
    %c0_i32_1 = arith.constant 0 : i32
    return %c0_i32, %c0_i32_0 : i32, i32
  }
  func.func @transform_2(%arg0: i32) -> (i32, i32) {
    %c0_i32 = arith.constant 0 : i32
    %c0_i32_0 = arith.constant 0 : i32
    %c0_i32_1 = arith.constant 0 : i32
    return %c0_i32, %c0_i32_0 : i32, i32
  }
  func.func @transform_3(%arg0: i32) -> (i32, i32) {
    %c0_i32 = arith.constant 0 : i32
    %c0_i32_0 = arith.constant 0 : i32
    %c0_i32_1 = arith.constant 0 : i32
    return %c0_i32, %c0_i32_0 : i32, i32
  }
  func.func @transform_4(%arg0: i32) -> (i32, i32) {
    %c0_i32 = arith.constant 0 : i32
    %c0_i32_0 = arith.constant 0 : i32
    %c0_i32_1 = arith.constant 0 : i32
    return %c0_i32, %c0_i32_0 : i32, i32
  }
  func.func @transform_5(%arg0: i32) -> (i32, i32) {
    %c0_i32 = arith.constant 0 : i32
    %c0_i32_0 = arith.constant 0 : i32
    %c0_i32_1 = arith.constant 0 : i32
    return %c0_i32, %c0_i32_0 : i32, i32
  }
  func.func @transform_6(%arg0: i32) -> (i32, i32) {
    %c0_i32 = arith.constant 0 : i32
    %c0_i32_0 = arith.constant 0 : i32
    %c0_i32_1 = arith.constant 0 : i32
    return %c0_i32, %c0_i32_0 : i32, i32
  }
  func.func @transform_7(%arg0: i32) -> (i32, i32) {
    %c0_i32 = arith.constant 0 : i32
    %c0_i32_0 = arith.constant 0 : i32
    %c0_i32_1 = arith.constant 0 : i32
    return %c0_i32, %c0_i32_0 : i32, i32
  }
  func.func @transform_8(%arg0: i32) -> (i32, i32) {
    %c0_i32 = arith.constant 0 : i32
    %c0_i32_0 = arith.constant 0 : i32
    %c0_i32_1 = arith.constant 0 : i32
    return %c0_i32, %c0_i32_0 : i32, i32
  }
  func.func @transform_9(%arg0: i32) -> (i32, i32) {
    %c0_i32 = arith.constant 0 : i32
    %c0_i32_0 = arith.constant 0 : i32
    %c0_i32_1 = arith.constant 0 : i32
    return %c0_i32, %c0_i32_0 : i32, i32
  }
  func.func @transform_10(%arg0: i32) -> (i32, i32) {
    %c0_i32 = arith.constant 0 : i32
    %c0_i32_0 = arith.constant 0 : i32
    %c0_i32_1 = arith.constant 0 : i32
    return %c0_i32, %c0_i32_0 : i32, i32
  }
  func.func @transform_11(%arg0: i32) -> (i32, i32) {
    %c0_i32 = arith.constant 0 : i32
    %c0_i32_0 = arith.constant 0 : i32
    %c0_i32_1 = arith.constant 0 : i32
    return %c0_i32, %c0_i32_0 : i32, i32
  }
  func.func @transform_12(%arg0: i32) -> (i32, i32) {
    %c0_i32 = arith.constant 0 : i32
    %c0_i32_0 = arith.constant 0 : i32
    %c0_i32_1 = arith.constant 0 : i32
    return %c0_i32, %c0_i32_0 : i32, i32
  }
  func.func @transform_13(%arg0: i32) -> (i32, i32) {
    %c0_i32 = arith.constant 0 : i32
    %c0_i32_0 = arith.constant 0 : i32
    %c0_i32_1 = arith.constant 0 : i32
    return %c0_i32, %c0_i32_0 : i32, i32
  }
  func.func @transform_14(%arg0: i32) -> (i32, i32) {
    %c0_i32 = arith.constant 0 : i32
    %c0_i32_0 = arith.constant 0 : i32
    %c0_i32_1 = arith.constant 0 : i32
    return %c0_i32, %c0_i32_0 : i32, i32
  }
  func.func @transform_15(%arg0: i32) -> (i32, i32) {
    %c0_i32 = arith.constant 0 : i32
    %c0_i32_0 = arith.constant 0 : i32
    %c0_i32_1 = arith.constant 0 : i32
    return %c0_i32, %c0_i32_0 : i32, i32
  }
  func.func @transform_16(%arg0: i32) -> (i32, i32) {
    %c0_i32 = arith.constant 0 : i32
    %c0_i32_0 = arith.constant 0 : i32
    %c0_i32_1 = arith.constant 0 : i32
    return %c0_i32, %c0_i32_0 : i32, i32
  }
  func.func @transform_17(%arg0: i32) -> (i32, i32) {
    %c0_i32 = arith.constant 0 : i32
    %c0_i32_0 = arith.constant 0 : i32
    %c0_i32_1 = arith.constant 0 : i32
    return %c0_i32, %c0_i32_0 : i32, i32
  }
  func.func @transform_18(%arg0: i32) -> (i32, i32, i32) {
    %c0_i32 = arith.constant 0 : i32
    %c0_i32_0 = arith.constant 0 : i32
    %c0_i32_1 = arith.constant 0 : i32
    %c0_i32_2 = arith.constant 0 : i32
    return %c0_i32, %c0_i32_0, %c0_i32_1 : i32, i32, i32
  }
}

</mosaic_0001>

<llo_original>
// kernel: forward.1
$region0: #{forward.1}
  #allocation0 [shape = 'u32[]', space=smem, size = 0x4, offset = 0x4, fixed_abs, tag = 'smem constant byte address 0x4 - core index']
  #allocation1 [shape = 'u32[72,128]{1,0:T(1,128)}', space=vmem, size = 0x9000, scoped, tag = 'internal scratch']
  #allocation2 [shape = 'f32[16,32]{1,0:T(8,128)}', space=vmem, size = 0x2000, scoped, tag = 'scratch operand']
  #allocation3 [shape = 'f32[16,32]{1,0:T(8,128)}', space=vmem, size = 0x2000, scoped, tag = 'scratch operand']
  %s0 = inlined_call_operand.vmem [shape: f32[16,12], index: 0, kind: input, shape index: {}]
  %s1 = inlined_call_operand.vmem [shape: f32[12,8], index: 1, kind: input, shape index: {}]
  %s2 = inlined_call_operand.vmem [shape: f32[1,8], index: 2, kind: input, shape index: {}]
  %s3 = inlined_call_operand.vmem [shape: f32[24,16], index: 3, kind: input, shape index: {}]
  %s4 = inlined_call_operand.vmem [shape: f32[1,16], index: 4, kind: input, shape index: {}]
  %s5 = inlined_call_operand.vmem [shape: f32[16,128], index: 5, kind: input, shape index: {}]
  %s6 = inlined_call_operand.vmem [shape: f32[32,128], index: 6, kind: input, shape index: {}]
  %s7 = inlined_call_operand.vmem [shape: f32[1,128], index: 7, kind: input, shape index: {}]
  %s8 = inlined_call_operand.vmem [shape: f32[32,32], index: 8, kind: input, shape index: {}]
  %s9 = inlined_call_operand.vmem [shape: f32[1,32], index: 9, kind: input, shape index: {}]
  %s10 = inlined_call_operand.vmem [shape: f32[32,128], index: 10, kind: input, shape index: {}]
  %s11 = inlined_call_operand.vmem [shape: f32[32,128], index: 11, kind: input, shape index: {}]
  %s12 = inlined_call_operand.vmem [shape: f32[1,128], index: 12, kind: input, shape index: {}]
  %s13 = inlined_call_operand.vmem [shape: f32[128,16], index: 13, kind: input, shape index: {}]
  %s14 = inlined_call_operand.vmem [shape: f32[1,16], index: 14, kind: input, shape index: {}]
  %s15 = inlined_call_operand.vmem [shape: f32[48,128], index: 15, kind: input, shape index: {}]
  %s16 = inlined_call_operand.vmem [shape: f32[1,128], index: 16, kind: input, shape index: {}]
  %s17 = inlined_call_operand.vmem [shape: f32[32,128], index: 17, kind: output, shape index: {0}]
  %s18 = inlined_call_operand.hbm [shape: f32[2,8,8], index: 18, kind: output, shape index: {1}]
  %19 = xla_tuple %s17, %s18
  %s20 = sld [smem:[#allocation0]]
  $region86: #{forward.1} parent=0
    _
  %s22 = ssub.s32 1, %s20
  %s23 = scalar_select 0, %s22, %s20
  $region1: #{forward.1} parent=0
    #allocation4 [shape = 'u8[8192]{0}', space=vmem, size = 0x2000, scoped, tag = 'output window, operand 1, single buffered']
    #allocation5 [shape = 's32[1]{0}', space=sflag, size = 0x4, scoped, tag = 'scoped memory for forward.1']
    %24 = vsyncpa [#allocation5], 0
    // Predicated region
    $region2: #{forward.1} parent=1 // pred_check
      _
    $region3: #{forward.1} parent=1 // pred_check_branch
      %26 = sbr.rel (0) target = $region5
    $region4: #{forward.1} parent=1 // pred_region
      _
    $region5: #{forward.1} parent=1 // pred_fallthru
      _
    // Predicated region
    $region6: #{forward.1} parent=1 // pred_check
      _
    $region7: #{forward.1} parent=1 // pred_check_branch
      %28 = sbr.rel (0) target = $region9
    $region8: #{forward.1} parent=1 // pred_region
      _
    $region9: #{forward.1} parent=1 // pred_fallthru
      _
    // Predicated region
    $region10: #{forward.1} parent=1 // pred_check
      _
    $region11: #{forward.1} parent=1 // pred_check_branch
      %30 = sbr.rel (0) target = $region13
    $region12: #{forward.1} parent=1 // pred_region
      _
    $region13: #{forward.1} parent=1 // pred_fallthru
      _
    // Predicated region
    $region14: #{forward.1} parent=1 // pred_check
      _
    $region15: #{forward.1} parent=1 // pred_check_branch
      %32 = sbr.rel (0) target = $region17
    $region16: #{forward.1} parent=1 // pred_region
      _
    $region17: #{forward.1} parent=1 // pred_fallthru
      _
    // Predicated region
    $region18: #{forward.1} parent=1 // pred_check
      _
    $region19: #{forward.1} parent=1 // pred_check_branch
      %34 = sbr.rel (0) target = $region21
    $region20: #{forward.1} parent=1 // pred_region
      _
    $region21: #{forward.1} parent=1 // pred_fallthru
      _
    // Predicated region
    $region22: #{forward.1} parent=1 // pred_check
      _
    $region23: #{forward.1} parent=1 // pred_check_branch
      %36 = sbr.rel (0) target = $region25
    $region24: #{forward.1} parent=1 // pred_region
      _
    $region25: #{forward.1} parent=1 // pred_fallthru
      _
    // Predicated region
    $region26: #{forward.1} parent=1 // pred_check
      _
    $region27: #{forward.1} parent=1 // pred_check_branch
      %38 = sbr.rel (0) target = $region29
    $region28: #{forward.1} parent=1 // pred_region
      _
    $region29: #{forward.1} parent=1 // pred_fallthru
      _
    // Predicated region
    $region30: #{forward.1} parent=1 // pred_check
      _
    $region31: #{forward.1} parent=1 // pred_check_branch
      %40 = sbr.rel (0) target = $region33
    $region32: #{forward.1} parent=1 // pred_region
      _
    $region33: #{forward.1} parent=1 // pred_fallthru
      _
    // Predicated region
    $region34: #{forward.1} parent=1 // pred_check
      _
    $region35: #{forward.1} parent=1 // pred_check_branch
      %42 = sbr.rel (0) target = $region37
    $region36: #{forward.1} parent=1 // pred_region
      _
    $region37: #{forward.1} parent=1 // pred_fallthru
      _
    // Predicated region
    $region38: #{forward.1} parent=1 // pred_check
      _
    $region39: #{forward.1} parent=1 // pred_check_branch
      %44 = sbr.rel (0) target = $region41
    $region40: #{forward.1} parent=1 // pred_region
      _
    $region41: #{forward.1} parent=1 // pred_fallthru
      _
    // Predicated region
    $region42: #{forward.1} parent=1 // pred_check
      _
    $region43: #{forward.1} parent=1 // pred_check_branch
      %46 = sbr.rel (0) target = $region45
    $region44: #{forward.1} parent=1 // pred_region
      _
    $region45: #{forward.1} parent=1 // pred_fallthru
      _
    // Predicated region
    $region46: #{forward.1} parent=1 // pred_check
      _
    $region47: #{forward.1} parent=1 // pred_check_branch
      %48 = sbr.rel (0) target = $region49
    $region48: #{forward.1} parent=1 // pred_region
      _
    $region49: #{forward.1} parent=1 // pred_fallthru
      _
    // Predicated region
    $region50: #{forward.1} parent=1 // pred_check
      _
    $region51: #{forward.1} parent=1 // pred_check_branch
      %50 = sbr.rel (0) target = $region53
    $region52: #{forward.1} parent=1 // pred_region
      _
    $region53: #{forward.1} parent=1 // pred_fallthru
      _
    // Predicated region
    $region54: #{forward.1} parent=1 // pred_check
      _
    $region55: #{forward.1} parent=1 // pred_check_branch
      %52 = sbr.rel (0) target = $region57
    $region56: #{forward.1} parent=1 // pred_region
      _
    $region57: #{forward.1} parent=1 // pred_fallthru
      _
    // Predicated region
    $region58: #{forward.1} parent=1 // pred_check
      _
    $region59: #{forward.1} parent=1 // pred_check_branch
      %54 = sbr.rel (0) target = $region61
    $region60: #{forward.1} parent=1 // pred_region
      _
    $region61: #{forward.1} parent=1 // pred_fallthru
      _
    // Predicated region
    $region62: #{forward.1} parent=1 // pred_check
      _
    $region63: #{forward.1} parent=1 // pred_check_branch
      %56 = sbr.rel (0) target = $region65
    $region64: #{forward.1} parent=1 // pred_region
      _
    $region65: #{forward.1} parent=1 // pred_fallthru
      _
    // Predicated region
    $region66: #{forward.1} parent=1 // pred_check
      _
    $region67: #{forward.1} parent=1 // pred_check_branch
      %58 = sbr.rel (0) target = $region69
    $region68: #{forward.1} parent=1 // pred_region
      _
    $region69: #{forward.1} parent=1 // pred_fallthru
      _
    %v59 = vlaneseq
    %v60 = vshrl.u32 %v59, 7
    %v61 = vadd.s32 %v60, 8
    %v62 = vlaneseq
    %v63 = vand.u32 %v62, 127
    %v64 = vsub.s32 %v60, 2
    %v65 = vsub.s32 %v61, 2
    %vm66 = vcmp.eq.s32.totalorder %v63, %v64
    %vm67 = vcmp.eq.s32.totalorder %v63, %v65
    %v68 = vsel %vm66, 1, 0
    %v69 = vsel %vm67, 1, 0
    %v70 = vcvt.s32.f32 %v68
    %v71 = vcvt.s32.f32 %v69
    %v72 = vadd.s32 %v60, 2
    %v73 = vadd.s32 %v61, 2
    %vm74 = vcmp.eq.s32.totalorder %v63, %v72
    %vm75 = vcmp.eq.s32.totalorder %v63, %v73
    %v76 = vsel %vm74, 1, 0
    %v77 = vsel %vm75, 1, 0
    %v78 = vcvt.s32.f32 %v76
    %v79 = vcvt.s32.f32 %v77
    %v80 = vld [vmem:[%s0] sm:$0xff]
    %v81 = vld [vmem:[%s0 + $0x8] sm:$0xff]
    %v82 = vld [vmem:[%s1] sm:$0xff]
    %v83 = vld [vmem:[%s1 + $0x8] sm:$0xf]
    %v84 = vld [vmem:[%s2] sm:$0x1]
    %v86 = vperm.slane %v84, 0
    %vm88 = vcmask 97280
    %v90 = vsel %vm88, %v80, 0
    %v93 = vsel %vm88, %v81, 0
    %vm95 = vcmask 1043456
    %v97 = vsel %vm95, %v83, 0
    %99 = vmatpush.msra.mxu0 0.0
    %100 = vmatpush.msra.mxu0 0.0
    %101 = vmatpush.msra.mxu0 0.0
    %102 = vmatpush.msra.mxu0 0.0
    %103 = vmatpush.msra.mxu0 0.0
    %104 = vmatpush.msra.mxu0 0.0
    %105 = vmatpush.msra.mxu0 0.0
    %106 = vmatpush.msra.mxu0 0.0
    %107 = vmatpush.msra.mxu0 0.0
    %108 = vmatpush.msra.mxu0 0.0
    %109 = vmatpush.msra.mxu0 0.0
    %110 = vmatpush.msra.mxu0 0.0
    %111 = vmatpush.msra.mxu0 0.0
    %112 = vmatpush.msra.mxu0 0.0
    %113 = vmatpush.msra.mxu0 %v97
    %114 = vmatpush.msra.mxu0 %v82
    %115 = vmatmul.f32.gmra.mxu0 %v90
    %v116 = vpop.f32.mrf.mxu0
    %v117 = vadd.f32 %v86, %v116
    %118 = vmatmul.f32.gmra.mxu0 %v93
    %v119 = vpop.f32.mrf.mxu0
    %v120 = vadd.f32 %v86, %v119
    %121 = vdwg.mxu0
    %v122 = vmax.f32 %v117, 0.0
    %v123 = vmax.f32 %v120, 0.0
    %v124 = vld [vmem:[%s3] sm:$0xff]
    %v125 = vld [vmem:[%s3 + $0x8] sm:$0xff]
    %v126 = vld [vmem:[%s3 + $0x10] sm:$0xff]
    %vm127 = vcmask 130048
    %v129 = vsel %vm127, %v70, 0
    %v132 = vsel %vm127, %v71, 0
    %134 = vmatpush.msra.mxu0 0.0
    %135 = vmatpush.msra.mxu0 0.0
    %136 = vmatpush.msra.mxu0 0.0
    %137 = vmatpush.msra.mxu0 0.0
    %138 = vmatpush.msra.mxu0 0.0
    %139 = vmatpush.msra.mxu0 0.0
    %140 = vmatpush.msra.mxu0 0.0
    %141 = vmatpush.msra.mxu0 0.0
    %142 = vmatpush.msra.mxu0 0.0
    %143 = vmatpush.msra.mxu0 0.0
    %144 = vmatpush.msra.mxu0 0.0
    %145 = vmatpush.msra.mxu0 0.0
    %146 = vmatpush.msra.mxu0 0.0
    %147 = vmatpush.msra.mxu0 0.0
    %148 = vmatpush.msra.mxu0 %v123
    %149 = vmatpush.msra.mxu0 %v122
    %150 = vmatmul.f32.gmra.mxu0 %v129
    %v151 = vpop.f32.mrf.mxu0
    %v152 = vadd.f32 0.0, %v151
    %153 = vmatmul.f32.gmra.mxu0 %v132
    %v154 = vpop.f32.mrf.mxu0
    %v155 = vadd.f32 0.0, %v154
    %156 = vdwg.mxu0
    %vm157 = vcmask 64512
    %v159 = vsel %vm157, %v122, 0
    %v162 = vsel %vm157, %v123, 0
    %164 = vmatpush.msra.mxu0 0.0
    %165 = vmatpush.msra.mxu0 0.0
    %166 = vmatpush.msra.mxu0 0.0
    %167 = vmatpush.msra.mxu0 0.0
    %168 = vmatpush.msra.mxu0 0.0
    %169 = vmatpush.msra.mxu0 0.0
    %170 = vmatpush.msra.mxu0 0.0
    %171 = vmatpush.msra.mxu0 0.0
    %172 = vmatpush.msra.mxu0 0.0
    %173 = vmatpush.msra.mxu0 0.0
    %174 = vmatpush.msra.mxu0 0.0
    %175 = vmatpush.msra.mxu0 0.0
    %176 = vmatpush.msra.mxu0 0.0
    %177 = vmatpush.msra.mxu0 0.0
    %178 = vmatpush.msra.mxu0 0.0
    %179 = vmatpush.msra.mxu0 %v125
    %180 = vmatmul.f32.gmra.mxu0 %v159
    %v181 = vpop.f32.mrf.mxu0
    %v182 = vadd.f32 0.0, %v181
    %183 = vmatmul.f32.gmra.mxu0 %v162
    %v184 = vpop.f32.mrf.mxu0
    %v185 = vadd.f32 0.0, %v184
    %186 = vdwg.mxu0
    %v188 = vsel %vm157, %v152, 0
    %v191 = vsel %vm157, %v155, 0
    %193 = vmatpush.msra.mxu0 0.0
    %194 = vmatpush.msra.mxu0 0.0
    %195 = vmatpush.msra.mxu0 0.0
    %196 = vmatpush.msra.mxu0 0.0
    %197 = vmatpush.msra.mxu0 0.0
    %198 = vmatpush.msra.mxu0 0.0
    %199 = vmatpush.msra.mxu0 0.0
    %200 = vmatpush.msra.mxu0 0.0
    %201 = vmatpush.msra.mxu0 0.0
    %202 = vmatpush.msra.mxu0 0.0
    %203 = vmatpush.msra.mxu0 0.0
    %204 = vmatpush.msra.mxu0 0.0
    %205 = vmatpush.msra.mxu0 0.0
    %206 = vmatpush.msra.mxu0 0.0
    %207 = vmatpush.msra.mxu0 0.0
    %208 = vmatpush.msra.mxu0 %v124
    %209 = vmatmul.f32.gmra.mxu0 %v188
    %v210 = vpop.f32.mrf.mxu0
    %v211 = vadd.f32 %v182, %v210
    %212 = vmatmul.f32.gmra.mxu0 %v191
    %v213 = vpop.f32.mrf.mxu0
    %v214 = vadd.f32 %v185, %v213
    %215 = vdwg.mxu0
    %v217 = vsel %vm127, %v78, 0
    %v220 = vsel %vm127, %v79, 0
    %222 = vmatpush.msra.mxu0 0.0
    %223 = vmatpush.msra.mxu0 0.0
    %224 = vmatpush.msra.mxu0 0.0
    %225 = vmatpush.msra.mxu0 0.0
    %226 = vmatpush.msra.mxu0 0.0
    %227 = vmatpush.msra.mxu0 0.0
    %228 = vmatpush.msra.mxu0 0.0
    %229 = vmatpush.msra.mxu0 0.0
    %230 = vmatpush.msra.mxu0 0.0
    %231 = vmatpush.msra.mxu0 0.0
    %232 = vmatpush.msra.mxu0 0.0
    %233 = vmatpush.msra.mxu0 0.0
    %234 = vmatpush.msra.mxu0 0.0
    %235 = vmatpush.msra.mxu0 0.0
    %236 = vmatpush.msra.mxu0 %v123
    %237 = vmatpush.msra.mxu0 %v122
    %238 = vmatmul.f32.gmra.mxu0 %v217
    %v239 = vpop.f32.mrf.mxu0
    %v240 = vadd.f32 0.0, %v239
    %241 = vmatmul.f32.gmra.mxu0 %v220
    %v242 = vpop.f32.mrf.mxu0
    %v243 = vadd.f32 0.0, %v242
    %244 = vdwg.mxu0
    %v246 = vsel %vm157, %v240, 0
    %v249 = vsel %vm157, %v243, 0
    %251 = vmatpush.msra.mxu0 0.0
    %252 = vmatpush.msra.mxu0 0.0
    %253 = vmatpush.msra.mxu0 0.0
    %254 = vmatpush.msra.mxu0 0.0
    %255 = vmatpush.msra.mxu0 0.0
    %256 = vmatpush.msra.mxu0 0.0
    %257 = vmatpush.msra.mxu0 0.0
    %258 = vmatpush.msra.mxu0 0.0
    %259 = vmatpush.msra.mxu0 0.0
    %260 = vmatpush.msra.mxu0 0.0
    %261 = vmatpush.msra.mxu0 0.0
    %262 = vmatpush.msra.mxu0 0.0
    %263 = vmatpush.msra.mxu0 0.0
    %264 = vmatpush.msra.mxu0 0.0
    %265 = vmatpush.msra.mxu0 0.0
    %266 = vmatpush.msra.mxu0 %v126
    %267 = vmatmul.f32.gmra.mxu0 %v246
    %v268 = vpop.f32.mrf.mxu0
    %v269 = vadd.f32 0.0, %v268
    %270 = vmatmul.f32.gmra.mxu0 %v249
    %v271 = vpop.f32.mrf.mxu0
    %v272 = vadd.f32 0.0, %v271
    %273 = vdwg.mxu0
    %v274 = vadd.f32 %v211, %v269
    %v275 = vadd.f32 %v214, %v272
    %v276 = vld [vmem:[%s4] sm:$0x1]
    %v278 = vperm.slane %v276, 0
    %v280 = vadd.f32 %v274, %v278
    %v281 = vadd.f32 %v275, %v278
    %v282 = vmax.f32 %v280, 0.0
    %v283 = vmax.f32 %v281, 0.0
    %v284 = vld [vmem:[%s5] sm:$0xff]
    %v285 = vld [vmem:[%s5 + $0x8] sm:$0xff]
    %v286 = vld [vmem:[%s7] sm:$0x1]
    %v288 = vperm.slane %v286, 0
    %v291 = vsel %vm127, %v282, 0
    %v294 = vsel %vm127, %v283, 0
    %296 = vmatpush.msra.mxu0 0.0
    %297 = vmatpush.msra.mxu0 0.0
    %298 = vmatpush.msra.mxu0 0.0
    %299 = vmatpush.msra.mxu0 0.0
    %300 = vmatpush.msra.mxu0 0.0
    %301 = vmatpush.msra.mxu0 0.0
    %302 = vmatpush.msra.mxu0 0.0
    %303 = vmatpush.msra.mxu0 0.0
    %304 = vmatpush.msra.mxu0 0.0
    %305 = vmatpush.msra.mxu0 0.0
    %306 = vmatpush.msra.mxu0 0.0
    %307 = vmatpush.msra.mxu0 0.0
    %308 = vmatpush.msra.mxu0 0.0
    %309 = vmatpush.msra.mxu0 0.0
    %310 = vmatpush.msra.mxu0 %v285
    %311 = vmatpush.msra.mxu0 %v284
    %312 = vmatmul.f32.gmra.mxu0 %v291
    %v313 = vpop.f32.mrf.mxu0
    %v314 = vadd.f32 %v288, %v313
    %315 = vmatmul.f32.gmra.mxu0 %v294
    %v316 = vpop.f32.mrf.mxu0
    %v317 = vadd.f32 %v288, %v316
    %318 = vdwg.mxu0
    %v319 = vld [vmem:[%s6] sm:$0xff]
    %v320 = vld [vmem:[%s6 + $0x8] sm:$0xff]
    %v321 = vld [vmem:[%s6 + $0x10] sm:$0xff]
    %v322 = vld [vmem:[%s6 + $0x18] sm:$0xff]
    %vm323 = vcmask 261120
    %v325 = vsel %vm323, 0.0, 0
    %327 = vmatpush.msra.mxu0 0.0
    %328 = vmatpush.msra.mxu0 0.0
    %329 = vmatpush.msra.mxu0 0.0
    %330 = vmatpush.msra.mxu0 0.0
    %331 = vmatpush.msra.mxu0 0.0
    %332 = vmatpush.msra.mxu0 0.0
    %333 = vmatpush.msra.mxu0 0.0
    %334 = vmatpush.msra.mxu0 0.0
    %335 = vmatpush.msra.mxu0 0.0
    %336 = vmatpush.msra.mxu0 0.0
    %337 = vmatpush.msra.mxu0 0.0
    %338 = vmatpush.msra.mxu0 0.0
    %339 = vmatpush.msra.mxu0 %v322
    %340 = vmatpush.msra.mxu0 %v321
    %341 = vmatpush.msra.mxu0 %v320
    %342 = vmatpush.msra.mxu0 %v319
    %343 = vmatmul.f32.gmra.mxu0 %v325
    %v344 = vpop.f32.mrf.mxu0
    %v345 = vadd.f32 0.0, %v344
    %346 = vdwg.mxu0
    %v347 = vadd.f32 %v314, %v345
    %v348 = vtanh.pop %v347
    %v349 = vmul.f32 %v348, 0.5
    %v350 = vadd.f32 %v349, 0.5
    %v351 = vmul.f32 %v350, 0.0
    %353 = vrot.lane.b32.xlu0 %v348, 32
    %v354 = vpop.permute.xlu0 %353
    %v356 = vmul.f32 %v350, %v354
    %358 = vrot.lane.b32.xlu0 %v356, 32
    %v359 = vpop.permute.xlu0 %358
    %v361 = vadd.f32 %v351, %v359
    %v362 = vtanh.pop %v361
    %364 = vrot.lane.b32.xlu0 %v362, 32
    %v365 = vpop.permute.xlu0 %364
    %v367 = vmul.f32 %v350, %v365
    %369 = vrot.lane.b32.xlu0 %v367, 64
    %v370 = vpop.permute.xlu0 %369
    %vm372 = vcmask 254976
    %373 = vst.msk [vmem:[#allocation2] sm:$0x3] %vm372, %v370
    %v374 = vsel %vm323, %v370, 0
    %376 = vmatpush.msra.mxu0 0.0
    %377 = vmatpush.msra.mxu0 0.0
    %378 = vmatpush.msra.mxu0 0.0
    %379 = vmatpush.msra.mxu0 0.0
    %380 = vmatpush.msra.mxu0 0.0
    %381 = vmatpush.msra.mxu0 0.0
    %382 = vmatpush.msra.mxu0 0.0
    %383 = vmatpush.msra.mxu0 0.0
    %384 = vmatpush.msra.mxu0 0.0
    %385 = vmatpush.msra.mxu0 0.0
    %386 = vmatpush.msra.mxu0 0.0
    %387 = vmatpush.msra.mxu0 0.0
    %388 = vmatpush.msra.mxu0 %v322
    %389 = vmatpush.msra.mxu0 %v321
    %390 = vmatpush.msra.mxu0 %v320
    %391 = vmatpush.msra.mxu0 %v319
    %392 = vmatmul.f32.gmra.mxu0 %v374
    %v393 = vpop.f32.mrf.mxu0
    %v394 = vadd.f32 0.0, %v393
    %395 = vdwg.mxu0
    %v397 = vrot.slane %v394, 6
    %v399 = vadd.f32 %v314, %v397
    %v400 = vtanh.pop %v399
    %v401 = vmul.f32 %v400, 0.5
    %v402 = vadd.f32 %v401, 0.5
    %v404 = vrot.slane %v361, 6
    %v406 = vmul.f32 %v402, %v404
    %408 = vrot.lane.b32.xlu0 %v400, 32
    %v409 = vpop.permute.xlu0 %408
    %v411 = vmul.f32 %v402, %v409
    %413 = vrot.lane.b32.xlu0 %v411, 32
    %v414 = vpop.permute.xlu0 %413
    %v416 = vadd.f32 %v406, %v414
    %v417 = vtanh.pop %v416
    %419 = vrot.lane.b32.xlu0 %v417, 32
    %v420 = vpop.permute.xlu0 %419
    %v422 = vmul.f32 %v402, %v420
    %424 = vrot.lane.b32.xlu0 %v422, 64
    %v425 = vpop.permute.xlu0 %424
    %vm427 = vcmask 257026
    %428 = vst.msk [vmem:[#allocation2] sm:$0xc] %vm427, %v425
    %v429 = vrot.slane %v422, 2
    %430 = vrot.lane.b32.xlu0 %v429, 64
    %v431 = vpop.permute.xlu0 %430
    %v432 = vsel %vm323, %v431, 0
    %434 = vmatpush.msra.mxu0 0.0
    %435 = vmatpush.msra.mxu0 0.0
    %436 = vmatpush.msra.mxu0 0.0
    %437 = vmatpush.msra.mxu0 0.0
    %438 = vmatpush.msra.mxu0 0.0
    %439 = vmatpush.msra.mxu0 0.0
    %440 = vmatpush.msra.mxu0 0.0
    %441 = vmatpush.msra.mxu0 0.0
    %442 = vmatpush.msra.mxu0 0.0
    %443 = vmatpush.msra.mxu0 0.0
    %444 = vmatpush.msra.mxu0 0.0
    %445 = vmatpush.msra.mxu0 0.0
    %446 = vmatpush.msra.mxu0 %v322
    %447 = vmatpush.msra.mxu0 %v321
    %448 = vmatpush.msra.mxu0 %v320
    %449 = vmatpush.msra.mxu0 %v319
    %450 = vmatmul.f32.gmra.mxu0 %v432
    %v451 = vpop.f32.mrf.mxu0
    %v452 = vadd.f32 0.0, %v451
    %453 = vdwg.mxu0
    %v455 = vrot.slane %v452, 4
    %v457 = vadd.f32 %v314, %v455
    %v458 = vtanh.pop %v457
    %v459 = vmul.f32 %v458, 0.5
    %v460 = vadd.f32 %v459, 0.5
    %v462 = vrot.slane %v416, 6
    %v464 = vmul.f32 %v460, %v462
    %466 = vrot.lane.b32.xlu0 %v458, 32
    %v467 = vpop.permute.xlu0 %466
    %v469 = vmul.f32 %v460, %v467
    %471 = vrot.lane.b32.xlu0 %v469, 32
    %v472 = vpop.permute.xlu0 %471
    %v474 = vadd.f32 %v464, %v472
    %v475 = vtanh.pop %v474
    %477 = vrot.lane.b32.xlu0 %v475, 32
    %v478 = vpop.permute.xlu0 %477
    %v480 = vmul.f32 %v460, %v478
    %482 = vrot.lane.b32.xlu0 %v480, 64
    %v483 = vpop.permute.xlu0 %482
    %vm485 = vcmask 259076
    %486 = vst.msk [vmem:[#allocation2] sm:$0x30] %vm485, %v483
    %v487 = vrot.slane %v480, 4
    %488 = vrot.lane.b32.xlu0 %v487, 64
    %v489 = vpop.permute.xlu0 %488
    %v490 = vsel %vm323, %v489, 0
    %492 = vmatpush.msra.mxu0 0.0
    %493 = vmatpush.msra.mxu0 0.0
    %494 = vmatpush.msra.mxu0 0.0
    %495 = vmatpush.msra.mxu0 0.0
    %496 = vmatpush.msra.mxu0 0.0
    %497 = vmatpush.msra.mxu0 0.0
    %498 = vmatpush.msra.mxu0 0.0
    %499 = vmatpush.msra.mxu0 0.0
    %500 = vmatpush.msra.mxu0 0.0
    %501 = vmatpush.msra.mxu0 0.0
    %502 = vmatpush.msra.mxu0 0.0
    %503 = vmatpush.msra.mxu0 0.0
    %504 = vmatpush.msra.mxu0 %v322
    %505 = vmatpush.msra.mxu0 %v321
    %506 = vmatpush.msra.mxu0 %v320
    %507 = vmatpush.msra.mxu0 %v319
    %508 = vmatmul.f32.gmra.mxu0 %v490
    %v509 = vpop.f32.mrf.mxu0
    %v510 = vadd.f32 0.0, %v509
    %511 = vdwg.mxu0
    %v513 = vrot.slane %v510, 2
    %v515 = vadd.f32 %v314, %v513
    %v516 = vtanh.pop %v515
    %v517 = vmul.f32 %v516, 0.5
    %v518 = vadd.f32 %v517, 0.5
    %v520 = vrot.slane %v474, 6
    %v522 = vmul.f32 %v518, %v520
    %524 = vrot.lane.b32.xlu0 %v516, 32
    %v525 = vpop.permute.xlu0 %524
    %v527 = vmul.f32 %v518, %v525
    %529 = vrot.lane.b32.xlu0 %v527, 32
    %v530 = vpop.permute.xlu0 %529
    %v532 = vadd.f32 %v522, %v530
    %v533 = vtanh.pop %v532
    %535 = vrot.lane.b32.xlu0 %v533, 32
    %v536 = vpop.permute.xlu0 %535
    %v538 = vmul.f32 %v518, %v536
    %540 = vrot.lane.b32.xlu0 %v538, 64
    %v541 = vpop.permute.xlu0 %540
    %vm543 = vcmask 261126
    %544 = vst.msk [vmem:[#allocation2] sm:$0xc0] %vm543, %v541
    %v545 = vrot.slane %v538, 6
    %546 = vrot.lane.b32.xlu0 %v545, 64
    %v547 = vpop.permute.xlu0 %546
    %v548 = vsel %vm323, %v547, 0
    %550 = vmatpush.msra.mxu0 0.0
    %551 = vmatpush.msra.mxu0 0.0
    %552 = vmatpush.msra.mxu0 0.0
    %553 = vmatpush.msra.mxu0 0.0
    %554 = vmatpush.msra.mxu0 0.0
    %555 = vmatpush.msra.mxu0 0.0
    %556 = vmatpush.msra.mxu0 0.0
    %557 = vmatpush.msra.mxu0 0.0
    %558 = vmatpush.msra.mxu0 0.0
    %559 = vmatpush.msra.mxu0 0.0
    %560 = vmatpush.msra.mxu0 0.0
    %561 = vmatpush.msra.mxu0 0.0
    %562 = vmatpush.msra.mxu0 %v322
    %563 = vmatpush.msra.mxu0 %v321
    %564 = vmatpush.msra.mxu0 %v320
    %565 = vmatpush.msra.mxu0 %v319
    %566 = vmatmul.f32.gmra.mxu0 %v548
    %v567 = vpop.f32.mrf.mxu0
    %v568 = vadd.f32 0.0, %v567
    %569 = vdwg.mxu0
    %v570 = vadd.f32 %v317, %v568
    %v571 = vtanh.pop %v570
    %v572 = vmul.f32 %v571, 0.5
    %v573 = vadd.f32 %v572, 0.5
    %v575 = vrot.slane %v532, 6
    %v577 = vmul.f32 %v573, %v575
    %579 = vrot.lane.b32.xlu0 %v571, 32
    %v580 = vpop.permute.xlu0 %579
    %v582 = vmul.f32 %v573, %v580
    %584 = vrot.lane.b32.xlu0 %v582, 32
    %v585 = vpop.permute.xlu0 %584
    %v587 = vadd.f32 %v577, %v585
    %v588 = vtanh.pop %v587
    %590 = vrot.lane.b32.xlu0 %v588, 32
    %v591 = vpop.permute.xlu0 %590
    %v593 = vmul.f32 %v573, %v591
    %595 = vrot.lane.b32.xlu0 %v593, 64
    %v596 = vpop.permute.xlu0 %595
    %598 = vst.msk [vmem:[#allocation2 + $0x8] sm:$0x3] %vm372, %v596
    %v599 = vsel %vm323, %v596, 0
    %601 = vmatpush.msra.mxu0 0.0
    %602 = vmatpush.msra.mxu0 0.0
    %603 = vmatpush.msra.mxu0 0.0
    %604 = vmatpush.msra.mxu0 0.0
    %605 = vmatpush.msra.mxu0 0.0
    %606 = vmatpush.msra.mxu0 0.0
    %607 = vmatpush.msra.mxu0 0.0
    %608 = vmatpush.msra.mxu0 0.0
    %609 = vmatpush.msra.mxu0 0.0
    %610 = vmatpush.msra.mxu0 0.0
    %611 = vmatpush.msra.mxu0 0.0
    %612 = vmatpush.msra.mxu0 0.0
    %613 = vmatpush.msra.mxu0 %v322
    %614 = vmatpush.msra.mxu0 %v321
    %615 = vmatpush.msra.mxu0 %v320
    %616 = vmatpush.msra.mxu0 %v319
    %617 = vmatmul.f32.gmra.mxu0 %v599
    %v618 = vpop.f32.mrf.mxu0
    %v619 = vadd.f32 0.0, %v618
    %620 = vdwg.mxu0
    %v622 = vrot.slane %v619, 6
    %v624 = vadd.f32 %v317, %v622
    %v625 = vtanh.pop %v624
    %v626 = vmul.f32 %v625, 0.5
    %v627 = vadd.f32 %v626, 0.5
    %v629 = vrot.slane %v587, 6
    %v631 = vmul.f32 %v627, %v629
    %633 = vrot.lane.b32.xlu0 %v625, 32
    %v634 = vpop.permute.xlu0 %633
    %v636 = vmul.f32 %v627, %v634
    %638 = vrot.lane.b32.xlu0 %v636, 32
    %v639 = vpop.permute.xlu0 %638
    %v641 = vadd.f32 %v631, %v639
    %v642 = vtanh.pop %v641
    %644 = vrot.lane.b32.xlu0 %v642, 32
    %v645 = vpop.permute.xlu0 %644
    %v647 = vmul.f32 %v627, %v645
    %649 = vrot.lane.b32.xlu0 %v647, 64
    %v650 = vpop.permute.xlu0 %649
    %652 = vst.msk [vmem:[#allocation2 + $0x8] sm:$0xc] %vm427, %v650
    %v653 = vrot.slane %v647, 2
    %654 = vrot.lane.b32.xlu0 %v653, 64
    %v655 = vpop.permute.xlu0 %654
    %v656 = vsel %vm323, %v655, 0
    %658 = vmatpush.msra.mxu0 0.0
    %659 = vmatpush.msra.mxu0 0.0
    %660 = vmatpush.msra.mxu0 0.0
    %661 = vmatpush.msra.mxu0 0.0
    %662 = vmatpush.msra.mxu0 0.0
    %663 = vmatpush.msra.mxu0 0.0
    %664 = vmatpush.msra.mxu0 0.0
    %665 = vmatpush.msra.mxu0 0.0
    %666 = vmatpush.msra.mxu0 0.0
    %667 = vmatpush.msra.mxu0 0.0
    %668 = vmatpush.msra.mxu0 0.0
    %669 = vmatpush.msra.mxu0 0.0
    %670 = vmatpush.msra.mxu0 %v322
    %671 = vmatpush.msra.mxu0 %v321
    %672 = vmatpush.msra.mxu0 %v320
    %673 = vmatpush.msra.mxu0 %v319
    %674 = vmatmul.f32.gmra.mxu0 %v656
    %v675 = vpop.f32.mrf.mxu0
    %v676 = vadd.f32 0.0, %v675
    %677 = vdwg.mxu0
    %v679 = vrot.slane %v676, 4
    %v681 = vadd.f32 %v317, %v679
    %v682 = vtanh.pop %v681
    %v683 = vmul.f32 %v682, 0.5
    %v684 = vadd.f32 %v683, 0.5
    %v686 = vrot.slane %v641, 6
    %v688 = vmul.f32 %v684, %v686
    %690 = vrot.lane.b32.xlu0 %v682, 32
    %v691 = vpop.permute.xlu0 %690
    %v693 = vmul.f32 %v684, %v691
    %695 = vrot.lane.b32.xlu0 %v693, 32
    %v696 = vpop.permute.xlu0 %695
    %v698 = vadd.f32 %v688, %v696
    %v699 = vtanh.pop %v698
    %701 = vrot.lane.b32.xlu0 %v699, 32
    %v702 = vpop.permute.xlu0 %701
    %v704 = vmul.f32 %v684, %v702
    %706 = vrot.lane.b32.xlu0 %v704, 64
    %v707 = vpop.permute.xlu0 %706
    %709 = vst.msk [vmem:[#allocation2 + $0x8] sm:$0x30] %vm485, %v707
    %v710 = vrot.slane %v704, 4
    %711 = vrot.lane.b32.xlu0 %v710, 64
    %v712 = vpop.permute.xlu0 %711
    %v713 = vsel %vm323, %v712, 0
    %715 = vmatpush.msra.mxu0 0.0
    %716 = vmatpush.msra.mxu0 0.0
    %717 = vmatpush.msra.mxu0 0.0
    %718 = vmatpush.msra.mxu0 0.0
    %719 = vmatpush.msra.mxu0 0.0
    %720 = vmatpush.msra.mxu0 0.0
    %721 = vmatpush.msra.mxu0 0.0
    %722 = vmatpush.msra.mxu0 0.0
    %723 = vmatpush.msra.mxu0 0.0
    %724 = vmatpush.msra.mxu0 0.0
    %725 = vmatpush.msra.mxu0 0.0
    %726 = vmatpush.msra.mxu0 0.0
    %727 = vmatpush.msra.mxu0 %v322
    %728 = vmatpush.msra.mxu0 %v321
    %729 = vmatpush.msra.mxu0 %v320
    %730 = vmatpush.msra.mxu0 %v319
    %731 = vmatmul.f32.gmra.mxu0 %v713
    %v732 = vpop.f32.mrf.mxu0
    %v733 = vadd.f32 0.0, %v732
    %734 = vdwg.mxu0
    %v736 = vrot.slane %v733, 2
    %v738 = vadd.f32 %v317, %v736
    %v739 = vtanh.pop %v738
    %v740 = vmul.f32 %v739, 0.5
    %v741 = vadd.f32 %v740, 0.5
    %v743 = vrot.slane %v698, 6
    %v745 = vmul.f32 %v741, %v743
    %747 = vrot.lane.b32.xlu0 %v739, 32
    %v748 = vpop.permute.xlu0 %747
    %v750 = vmul.f32 %v741, %v748
    %752 = vrot.lane.b32.xlu0 %v750, 32
    %v753 = vpop.permute.xlu0 %752
    %v755 = vadd.f32 %v745, %v753
    %v756 = vtanh.pop %v755
    %758 = vrot.lane.b32.xlu0 %v756, 32
    %v759 = vpop.permute.xlu0 %758
    %v761 = vmul.f32 %v741, %v759
    %763 = vrot.lane.b32.xlu0 %v761, 64
    %v764 = vpop.permute.xlu0 %763
    %766 = vst.msk [vmem:[#allocation2 + $0x8] sm:$0xc0] %vm543, %v764
    %v767 = vld [vmem:[#allocation2] sm:$0xff]
    %v768 = vld [vmem:[#allocation2 + $0x8] sm:$0xff]
    %v769 = vld [vmem:[%s8] sm:$0xff]
    %v770 = vld [vmem:[%s8 + $0x8] sm:$0xff]
    %v771 = vld [vmem:[%s8 + $0x10] sm:$0xff]
    %v772 = vld [vmem:[%s8 + $0x18] sm:$0xff]
    %v773 = vld [vmem:[%s9] sm:$0x1]
    %v775 = vperm.slane %v773, 0
    %v778 = vsel %vm323, %v767, 0
    %v781 = vsel %vm323, %v768, 0
    %783 = vmatpush.msra.mxu0 0.0
    %784 = vmatpush.msra.mxu0 0.0
    %785 = vmatpush.msra.mxu0 0.0
    %786 = vmatpush.msra.mxu0 0.0
    %787 = vmatpush.msra.mxu0 0.0
    %788 = vmatpush.msra.mxu0 0.0
    %789 = vmatpush.msra.mxu0 0.0
    %790 = vmatpush.msra.mxu0 0.0
    %791 = vmatpush.msra.mxu0 0.0
    %792 = vmatpush.msra.mxu0 0.0
    %793 = vmatpush.msra.mxu0 0.0
    %794 = vmatpush.msra.mxu0 0.0
    %795 = vmatpush.msra.mxu0 %v772
    %796 = vmatpush.msra.mxu0 %v771
    %797 = vmatpush.msra.mxu0 %v770
    %798 = vmatpush.msra.mxu0 %v769
    %799 = vmatmul.f32.gmra.mxu0 %v778
    %v800 = vpop.f32.mrf.mxu0
    %v801 = vadd.f32 %v775, %v800
    %802 = vmatmul.f32.gmra.mxu0 %v781
    %v803 = vpop.f32.mrf.mxu0
    %v804 = vadd.f32 %v775, %v803
    %805 = vdwg.mxu0
    %v806 = vtanh.pop %v801
    %v807 = vtanh.pop %v804
    %v808 = vmul.f32 %v806, %v806
    %v809 = vmul.f32 %v807, %v807
    %v810 = vsel %vm323, %v808, 0.0
    %811 = vadd.xlane.f32.xlu0 %v810
    %v812 = vpop.xlane.xlu0 %811
    %v813 = vsel %vm323, %v809, 0.0
    %814 = vadd.xlane.f32.xlu0 %v813
    %v815 = vpop.xlane.xlu0 %814
    %v816 = vmax.f32 %v812, 1e-16
    %v817 = vmax.f32 %v815, 1e-16
    %v818 = vrsqrt.pop %v816
    %v819 = vmul.f32 %v818, %v816
    %v820 = vmul.f32 %v819, %v818
    %v821 = vmul.f32 0.5, %v820
    %v822 = vsub.f32 1.5, %v821
    %v823 = vmul.f32 %v818, %v822
    %vm824 = vweird.f32 %v816
    %vm825 = vweird.f32 %v818
    %vm826 = vmor %vm824, %vm825
    %v827 = vsel %vm826, %v818, %v823
    %v828 = vrsqrt.pop %v817
    %v829 = vmul.f32 %v828, %v817
    %v830 = vmul.f32 %v829, %v828
    %v831 = vmul.f32 0.5, %v830
    %v832 = vsub.f32 1.5, %v831
    %v833 = vmul.f32 %v828, %v832
    %vm834 = vweird.f32 %v817
    %vm835 = vweird.f32 %v828
    %vm836 = vmor %vm834, %vm835
    %v837 = vsel %vm836, %v828, %v833
    %v838 = vmul.f32 %v806, %v827
    %v839 = vmul.f32 %v807, %v837
    %v840 = vmul.u32 %v60, 2
    %vm841 = vcmp.eq.s32.totalorder %v63, %v840
    %v842 = vsel %vm841, 1, 0
    %v843 = vcvt.s32.f32 %v842
    %v845 = vsel %vm127, %v843, 0
    %847 = vmatpush.msra.mxu0 0.0
    %848 = vmatpush.msra.mxu0 0.0
    %849 = vmatpush.msra.mxu0 0.0
    %850 = vmatpush.msra.mxu0 0.0
    %851 = vmatpush.msra.mxu0 0.0
    %852 = vmatpush.msra.mxu0 0.0
    %853 = vmatpush.msra.mxu0 0.0
    %854 = vmatpush.msra.mxu0 0.0
    %855 = vmatpush.msra.mxu0 0.0
    %856 = vmatpush.msra.mxu0 0.0
    %857 = vmatpush.msra.mxu0 0.0
    %858 = vmatpush.msra.mxu0 0.0
    %859 = vmatpush.msra.mxu0 0.0
    %860 = vmatpush.msra.mxu0 0.0
    %861 = vmatpush.msra.mxu0 %v839
    %862 = vmatpush.msra.mxu0 %v838
    %863 = vmatmul.f32.gmra.mxu0 %v845
    %v864 = vpop.f32.mrf.mxu0
    %v865 = vadd.f32 0.0, %v864
    %866 = vdwg.mxu0
    %v868 = vsel %vm323, %v865, 0
    %870 = vmatpush.xpose.msra.mxu0 0.0
    %871 = vmatpush.xpose.msra.mxu0 0.0
    %872 = vmatpush.xpose.msra.mxu0 0.0
    %873 = vmatpush.xpose.msra.mxu0 0.0
    %874 = vmatpush.xpose.msra.mxu0 0.0
    %875 = vmatpush.xpose.msra.mxu0 0.0
    %876 = vmatpush.xpose.msra.mxu0 0.0
    %877 = vmatpush.xpose.msra.mxu0 0.0
    %878 = vmatpush.xpose.msra.mxu0 0.0
    %879 = vmatpush.xpose.msra.mxu0 0.0
    %880 = vmatpush.xpose.msra.mxu0 0.0
    %881 = vmatpush.xpose.msra.mxu0 0.0
    %882 = vmatpush.xpose.msra.mxu0 0.0
    %883 = vmatpush.xpose.msra.mxu0 0.0
    %884 = vmatpush.xpose.msra.mxu0 0.0
    %885 = vmatpush.xpose.msra.mxu0 %v868
    %886 = vmatmul.f32.gmra.mxu0 %v868
    %v887 = vpop.f32.mrf.mxu0
    %v888 = vadd.f32 0.0, %v887
    %889 = vdwg.mxu0
    %v890 = vmax.f32 %v888, -0.9999999
    %v891 = vmin.f32 %v890, 0.9999999
    %vm892 = vcmp.ge.f32.partialorder %v891, 0.70710677
    %v893 = vsel %vm892, 1, 0
    %v894 = vcvt.s32.f32 %v893
    %895 = vst.msk [vmem:[#allocation4] sm:$0xff] %vm157, %v894
    %v896 = vadd.s32 %v840, 1
    %vm897 = vcmp.eq.s32.totalorder %v63, %v896
    %v898 = vsel %vm897, 1, 0
    %v899 = vcvt.s32.f32 %v898
    %v901 = vsel %vm127, %v899, 0
    %903 = vmatpush.msra.mxu0 0.0
    %904 = vmatpush.msra.mxu0 0.0
    %905 = vmatpush.msra.mxu0 0.0
    %906 = vmatpush.msra.mxu0 0.0
    %907 = vmatpush.msra.mxu0 0.0
    %908 = vmatpush.msra.mxu0 0.0
    %909 = vmatpush.msra.mxu0 0.0
    %910 = vmatpush.msra.mxu0 0.0
    %911 = vmatpush.msra.mxu0 0.0
    %912 = vmatpush.msra.mxu0 0.0
    %913 = vmatpush.msra.mxu0 0.0
    %914 = vmatpush.msra.mxu0 0.0
    %915 = vmatpush.msra.mxu0 0.0
    %916 = vmatpush.msra.mxu0 0.0
    %917 = vmatpush.msra.mxu0 %v839
    %918 = vmatpush.msra.mxu0 %v838
    %919 = vmatmul.f32.gmra.mxu0 %v901
    %v920 = vpop.f32.mrf.mxu0
    %v921 = vadd.f32 0.0, %v920
    %922 = vdwg.mxu0
    %v924 = vsel %vm323, %v921, 0
    %926 = vmatpush.xpose.msra.mxu0 0.0
    %927 = vmatpush.xpose.msra.mxu0 0.0
    %928 = vmatpush.xpose.msra.mxu0 0.0
    %929 = vmatpush.xpose.msra.mxu0 0.0
    %930 = vmatpush.xpose.msra.mxu0 0.0
    %931 = vmatpush.xpose.msra.mxu0 0.0
    %932 = vmatpush.xpose.msra.mxu0 0.0
    %933 = vmatpush.xpose.msra.mxu0 0.0
    %934 = vmatpush.xpose.msra.mxu0 0.0
    %935 = vmatpush.xpose.msra.mxu0 0.0
    %936 = vmatpush.xpose.msra.mxu0 0.0
    %937 = vmatpush.xpose.msra.mxu0 0.0
    %938 = vmatpush.xpose.msra.mxu0 0.0
    %939 = vmatpush.xpose.msra.mxu0 0.0
    %940 = vmatpush.xpose.msra.mxu0 0.0
    %941 = vmatpush.xpose.msra.mxu0 %v924
    %942 = vmatmul.f32.gmra.mxu0 %v924
    %v943 = vpop.f32.mrf.mxu0
    %v944 = vadd.f32 0.0, %v943
    %945 = vdwg.mxu0
    %v946 = vmax.f32 %v944, -0.9999999
    %v947 = vmin.f32 %v946, 0.9999999
    %vm948 = vcmp.ge.f32.partialorder %v947, 0.70710677
    %v949 = vsel %vm948, 1, 0
    %v950 = vcvt.s32.f32 %v949
    %s951 = scalar_lea.vmem [#allocation4], 8
    %952 = vst.msk [vmem:[%s951] sm:$0xff] %vm157, %v950
    %v953 = vld [vmem:[%s10] sm:$0xff]
    %v954 = vld [vmem:[%s10 + $0x8] sm:$0xff]
    %v955 = vld [vmem:[%s10 + $0x10] sm:$0xff]
    %v956 = vld [vmem:[%s10 + $0x18] sm:$0xff]
    %v957 = vld [vmem:[%s12] sm:$0x1]
    %v959 = vperm.slane %v957, 0
    %v962 = vsel %vm323, %v806, 0
    %v965 = vsel %vm323, %v807, 0
    %967 = vmatpush.msra.mxu0 0.0
    %968 = vmatpush.msra.mxu0 0.0
    %969 = vmatpush.msra.mxu0 0.0
    %970 = vmatpush.msra.mxu0 0.0
    %971 = vmatpush.msra.mxu0 0.0
    %972 = vmatpush.msra.mxu0 0.0
    %973 = vmatpush.msra.mxu0 0.0
    %974 = vmatpush.msra.mxu0 0.0
    %975 = vmatpush.msra.mxu0 0.0
    %976 = vmatpush.msra.mxu0 0.0
    %977 = vmatpush.msra.mxu0 0.0
    %978 = vmatpush.msra.mxu0 0.0
    %979 = vmatpush.msra.mxu0 %v956
    %980 = vmatpush.msra.mxu0 %v955
    %981 = vmatpush.msra.mxu0 %v954
    %982 = vmatpush.msra.mxu0 %v953
    %983 = vmatmul.f32.gmra.mxu0 %v962
    %v984 = vpop.f32.mrf.mxu0
    %v985 = vadd.f32 %v959, %v984
    %986 = vmatmul.f32.gmra.mxu0 %v965
    %v987 = vpop.f32.mrf.mxu0
    %v988 = vadd.f32 %v959, %v987
    %989 = vdwg.mxu0
    %v990 = vld [vmem:[%s11] sm:$0xff]
    %v991 = vld [vmem:[%s11 + $0x8] sm:$0xff]
    %v992 = vld [vmem:[%s11 + $0x10] sm:$0xff]
    %v993 = vld [vmem:[%s11 + $0x18] sm:$0xff]
    %994 = vmatpush.msra.mxu0 0.0
    %995 = vmatpush.msra.mxu0 0.0
    %996 = vmatpush.msra.mxu0 0.0
    %997 = vmatpush.msra.mxu0 0.0
    %998 = vmatpush.msra.mxu0 0.0
    %999 = vmatpush.msra.mxu0 0.0
    %1000 = vmatpush.msra.mxu0 0.0
    %1001 = vmatpush.msra.mxu0 0.0
    %1002 = vmatpush.msra.mxu0 0.0
    %1003 = vmatpush.msra.mxu0 0.0
    %1004 = vmatpush.msra.mxu0 0.0
    %1005 = vmatpush.msra.mxu0 0.0
    %1006 = vmatpush.msra.mxu0 %v993
    %1007 = vmatpush.msra.mxu0 %v992
    %1008 = vmatpush.msra.mxu0 %v991
    %1009 = vmatpush.msra.mxu0 %v990
    %1010 = vmatmul.f32.gmra.mxu0 %v325
    %v1011 = vpop.f32.mrf.mxu0
    %v1012 = vadd.f32 0.0, %v1011
    %1013 = vdwg.mxu0
    %v1014 = vadd.f32 %v985, %v1012
    %v1015 = vtanh.pop %v1014
    %v1016 = vmul.f32 %v1015, 0.5
    %v1017 = vadd.f32 %v1016, 0.5
    %v1018 = vmul.f32 %v1017, 0.0
    %1020 = vrot.lane.b32.xlu0 %v1015, 32
    %v1021 = vpop.permute.xlu0 %1020
    %v1023 = vmul.f32 %v1017, %v1021
    %1025 = vrot.lane.b32.xlu0 %v1023, 32
    %v1026 = vpop.permute.xlu0 %1025
    %v1028 = vadd.f32 %v1018, %v1026
    %v1029 = vtanh.pop %v1028
    %1031 = vrot.lane.b32.xlu0 %v1029, 32
    %v1032 = vpop.permute.xlu0 %1031
    %v1034 = vmul.f32 %v1017, %v1032
    %1036 = vrot.lane.b32.xlu0 %v1034, 64
    %v1037 = vpop.permute.xlu0 %1036
    %1039 = vst.msk [vmem:[#allocation3] sm:$0x3] %vm372, %v1037
    %v1040 = vsel %vm323, %v1037, 0
    %1042 = vmatpush.msra.mxu0 0.0
    %1043 = vmatpush.msra.mxu0 0.0
    %1044 = vmatpush.msra.mxu0 0.0
    %1045 = vmatpush.msra.mxu0 0.0
    %1046 = vmatpush.msra.mxu0 0.0
    %1047 = vmatpush.msra.mxu0 0.0
    %1048 = vmatpush.msra.mxu0 0.0
    %1049 = vmatpush.msra.mxu0 0.0
    %1050 = vmatpush.msra.mxu0 0.0
    %1051 = vmatpush.msra.mxu0 0.0
    %1052 = vmatpush.msra.mxu0 0.0
    %1053 = vmatpush.msra.mxu0 0.0
    %1054 = vmatpush.msra.mxu0 %v993
    %1055 = vmatpush.msra.mxu0 %v992
    %1056 = vmatpush.msra.mxu0 %v991
    %1057 = vmatpush.msra.mxu0 %v990
    %1058 = vmatmul.f32.gmra.mxu0 %v1040
    %v1059 = vpop.f32.mrf.mxu0
    %v1060 = vadd.f32 0.0, %v1059
    %1061 = vdwg.mxu0
    %v1063 = vrot.slane %v1060, 6
    %v1065 = vadd.f32 %v985, %v1063
    %v1066 = vtanh.pop %v1065
    %v1067 = vmul.f32 %v1066, 0.5
    %v1068 = vadd.f32 %v1067, 0.5
    %v1070 = vrot.slane %v1028, 6
    %v1072 = vmul.f32 %v1068, %v1070
    %1074 = vrot.lane.b32.xlu0 %v1066, 32
    %v1075 = vpop.permute.xlu0 %1074
    %v1077 = vmul.f32 %v1068, %v1075
    %1079 = vrot.lane.b32.xlu0 %v1077, 32
    %v1080 = vpop.permute.xlu0 %1079
    %v1082 = vadd.f32 %v1072, %v1080
    %v1083 = vtanh.pop %v1082
    %1085 = vrot.lane.b32.xlu0 %v1083, 32
    %v1086 = vpop.permute.xlu0 %1085
    %v1088 = vmul.f32 %v1068, %v1086
    %1090 = vrot.lane.b32.xlu0 %v1088, 64
    %v1091 = vpop.permute.xlu0 %1090
    %1093 = vst.msk [vmem:[#allocation3] sm:$0xc] %vm427, %v1091
    %v1094 = vrot.slane %v1088, 2
    %1095 = vrot.lane.b32.xlu0 %v1094, 64
    %v1096 = vpop.permute.xlu0 %1095
    %v1097 = vsel %vm323, %v1096, 0
    %1099 = vmatpush.msra.mxu0 0.0
    %1100 = vmatpush.msra.mxu0 0.0
    %1101 = vmatpush.msra.mxu0 0.0
    %1102 = vmatpush.msra.mxu0 0.0
    %1103 = vmatpush.msra.mxu0 0.0
    %1104 = vmatpush.msra.mxu0 0.0
    %1105 = vmatpush.msra.mxu0 0.0
    %1106 = vmatpush.msra.mxu0 0.0
    %1107 = vmatpush.msra.mxu0 0.0
    %1108 = vmatpush.msra.mxu0 0.0
    %1109 = vmatpush.msra.mxu0 0.0
    %1110 = vmatpush.msra.mxu0 0.0
    %1111 = vmatpush.msra.mxu0 %v993
    %1112 = vmatpush.msra.mxu0 %v992
    %1113 = vmatpush.msra.mxu0 %v991
    %1114 = vmatpush.msra.mxu0 %v990
    %1115 = vmatmul.f32.gmra.mxu0 %v1097
    %v1116 = vpop.f32.mrf.mxu0
    %v1117 = vadd.f32 0.0, %v1116
    %1118 = vdwg.mxu0
    %v1120 = vrot.slane %v1117, 4
    %v1122 = vadd.f32 %v985, %v1120
    %v1123 = vtanh.pop %v1122
    %v1124 = vmul.f32 %v1123, 0.5
    %v1125 = vadd.f32 %v1124, 0.5
    %v1127 = vrot.slane %v1082, 6
    %v1129 = vmul.f32 %v1125, %v1127
    %1131 = vrot.lane.b32.xlu0 %v1123, 32
    %v1132 = vpop.permute.xlu0 %1131
    %v1134 = vmul.f32 %v1125, %v1132
    %1136 = vrot.lane.b32.xlu0 %v1134, 32
    %v1137 = vpop.permute.xlu0 %1136
    %v1139 = vadd.f32 %v1129, %v1137
    %v1140 = vtanh.pop %v1139
    %1142 = vrot.lane.b32.xlu0 %v1140, 32
    %v1143 = vpop.permute.xlu0 %1142
    %v1145 = vmul.f32 %v1125, %v1143
    %1147 = vrot.lane.b32.xlu0 %v1145, 64
    %v1148 = vpop.permute.xlu0 %1147
    %1150 = vst.msk [vmem:[#allocation3] sm:$0x30] %vm485, %v1148
    %v1151 = vrot.slane %v1145, 4
    %1152 = vrot.lane.b32.xlu0 %v1151, 64
    %v1153 = vpop.permute.xlu0 %1152
    %v1154 = vsel %vm323, %v1153, 0
    %1156 = vmatpush.msra.mxu0 0.0
    %1157 = vmatpush.msra.mxu0 0.0
    %1158 = vmatpush.msra.mxu0 0.0
    %1159 = vmatpush.msra.mxu0 0.0
    %1160 = vmatpush.msra.mxu0 0.0
    %1161 = vmatpush.msra.mxu0 0.0
    %1162 = vmatpush.msra.mxu0 0.0
    %1163 = vmatpush.msra.mxu0 0.0
    %1164 = vmatpush.msra.mxu0 0.0
    %1165 = vmatpush.msra.mxu0 0.0
    %1166 = vmatpush.msra.mxu0 0.0
    %1167 = vmatpush.msra.mxu0 0.0
    %1168 = vmatpush.msra.mxu0 %v993
    %1169 = vmatpush.msra.mxu0 %v992
    %1170 = vmatpush.msra.mxu0 %v991
    %1171 = vmatpush.msra.mxu0 %v990
    %1172 = vmatmul.f32.gmra.mxu0 %v1154
    %v1173 = vpop.f32.mrf.mxu0
    %v1174 = vadd.f32 0.0, %v1173
    %1175 = vdwg.mxu0
    %v1177 = vrot.slane %v1174, 2
    %v1179 = vadd.f32 %v985, %v1177
    %v1180 = vtanh.pop %v1179
    %v1181 = vmul.f32 %v1180, 0.5
    %v1182 = vadd.f32 %v1181, 0.5
    %v1184 = vrot.slane %v1139, 6
    %v1186 = vmul.f32 %v1182, %v1184
    %1188 = vrot.lane.b32.xlu0 %v1180, 32
    %v1189 = vpop.permute.xlu0 %1188
    %v1191 = vmul.f32 %v1182, %v1189
    %1193 = vrot.lane.b32.xlu0 %v1191, 32
    %v1194 = vpop.permute.xlu0 %1193
    %v1196 = vadd.f32 %v1186, %v1194
    %v1197 = vtanh.pop %v1196
    %1199 = vrot.lane.b32.xlu0 %v1197, 32
    %v1200 = vpop.permute.xlu0 %1199
    %v1202 = vmul.f32 %v1182, %v1200
    %1204 = vrot.lane.b32.xlu0 %v1202, 64
    %v1205 = vpop.permute.xlu0 %1204
    %1207 = vst.msk [vmem:[#allocation3] sm:$0xc0] %vm543, %v1205
    %v1208 = vrot.slane %v1202, 6
    %1209 = vrot.lane.b32.xlu0 %v1208, 64
    %v1210 = vpop.permute.xlu0 %1209
    %v1211 = vsel %vm323, %v1210, 0
    %1213 = vmatpush.msra.mxu0 0.0
    %1214 = vmatpush.msra.mxu0 0.0
    %1215 = vmatpush.msra.mxu0 0.0
    %1216 = vmatpush.msra.mxu0 0.0
    %1217 = vmatpush.msra.mxu0 0.0
    %1218 = vmatpush.msra.mxu0 0.0
    %1219 = vmatpush.msra.mxu0 0.0
    %1220 = vmatpush.msra.mxu0 0.0
    %1221 = vmatpush.msra.mxu0 0.0
    %1222 = vmatpush.msra.mxu0 0.0
    %1223 = vmatpush.msra.mxu0 0.0
    %1224 = vmatpush.msra.mxu0 0.0
    %1225 = vmatpush.msra.mxu0 %v993
    %1226 = vmatpush.msra.mxu0 %v992
    %1227 = vmatpush.msra.mxu0 %v991
    %1228 = vmatpush.msra.mxu0 %v990
    %1229 = vmatmul.f32.gmra.mxu0 %v1211
    %v1230 = vpop.f32.mrf.mxu0
    %v1231 = vadd.f32 0.0, %v1230
    %1232 = vdwg.mxu0
    %v1233 = vadd.f32 %v988, %v1231
    %v1234 = vtanh.pop %v1233
    %v1235 = vmul.f32 %v1234, 0.5
    %v1236 = vadd.f32 %v1235, 0.5
    %v1238 = vrot.slane %v1196, 6
    %v1240 = vmul.f32 %v1236, %v1238
    %1242 = vrot.lane.b32.xlu0 %v1234, 32
    %v1243 = vpop.permute.xlu0 %1242
    %v1245 = vmul.f32 %v1236, %v1243
    %1247 = vrot.lane.b32.xlu0 %v1245, 32
    %v1248 = vpop.permute.xlu0 %1247
    %v1250 = vadd.f32 %v1240, %v1248
    %v1251 = vtanh.pop %v1250
    %1253 = vrot.lane.b32.xlu0 %v1251, 32
    %v1254 = vpop.permute.xlu0 %1253
    %v1256 = vmul.f32 %v1236, %v1254
    %1258 = vrot.lane.b32.xlu0 %v1256, 64
    %v1259 = vpop.permute.xlu0 %1258
    %1261 = vst.msk [vmem:[#allocation3 + $0x8] sm:$0x3] %vm372, %v1259
    %v1262 = vsel %vm323, %v1259, 0
    %1264 = vmatpush.msra.mxu0 0.0
    %1265 = vmatpush.msra.mxu0 0.0
    %1266 = vmatpush.msra.mxu0 0.0
    %1267 = vmatpush.msra.mxu0 0.0
    %1268 = vmatpush.msra.mxu0 0.0
    %1269 = vmatpush.msra.mxu0 0.0
    %1270 = vmatpush.msra.mxu0 0.0
    %1271 = vmatpush.msra.mxu0 0.0
    %1272 = vmatpush.msra.mxu0 0.0
    %1273 = vmatpush.msra.mxu0 0.0
    %1274 = vmatpush.msra.mxu0 0.0
    %1275 = vmatpush.msra.mxu0 0.0
    %1276 = vmatpush.msra.mxu0 %v993
    %1277 = vmatpush.msra.mxu0 %v992
    %1278 = vmatpush.msra.mxu0 %v991
    %1279 = vmatpush.msra.mxu0 %v990
    %1280 = vmatmul.f32.gmra.mxu0 %v1262
    %v1281 = vpop.f32.mrf.mxu0
    %v1282 = vadd.f32 0.0, %v1281
    %1283 = vdwg.mxu0
    %v1285 = vrot.slane %v1282, 6
    %v1287 = vadd.f32 %v988, %v1285
    %v1288 = vtanh.pop %v1287
    %v1289 = vmul.f32 %v1288, 0.5
    %v1290 = vadd.f32 %v1289, 0.5
    %v1292 = vrot.slane %v1250, 6
    %v1294 = vmul.f32 %v1290, %v1292
    %1296 = vrot.lane.b32.xlu0 %v1288, 32
    %v1297 = vpop.permute.xlu0 %1296
    %v1299 = vmul.f32 %v1290, %v1297
    %1301 = vrot.lane.b32.xlu0 %v1299, 32
    %v1302 = vpop.permute.xlu0 %1301
    %v1304 = vadd.f32 %v1294, %v1302
    %v1305 = vtanh.pop %v1304
    %1307 = vrot.lane.b32.xlu0 %v1305, 32
    %v1308 = vpop.permute.xlu0 %1307
    %v1310 = vmul.f32 %v1290, %v1308
    %1312 = vrot.lane.b32.xlu0 %v1310, 64
    %v1313 = vpop.permute.xlu0 %1312
    %1315 = vst.msk [vmem:[#allocation3 + $0x8] sm:$0xc] %vm427, %v1313
    %v1316 = vrot.slane %v1310, 2
    %1317 = vrot.lane.b32.xlu0 %v1316, 64
    %v1318 = vpop.permute.xlu0 %1317
    %v1319 = vsel %vm323, %v1318, 0
    %1321 = vmatpush.msra.mxu0 0.0
    %1322 = vmatpush.msra.mxu0 0.0
    %1323 = vmatpush.msra.mxu0 0.0
    %1324 = vmatpush.msra.mxu0 0.0
    %1325 = vmatpush.msra.mxu0 0.0
    %1326 = vmatpush.msra.mxu0 0.0
    %1327 = vmatpush.msra.mxu0 0.0
    %1328 = vmatpush.msra.mxu0 0.0
    %1329 = vmatpush.msra.mxu0 0.0
    %1330 = vmatpush.msra.mxu0 0.0
    %1331 = vmatpush.msra.mxu0 0.0
    %1332 = vmatpush.msra.mxu0 0.0
    %1333 = vmatpush.msra.mxu0 %v993
    %1334 = vmatpush.msra.mxu0 %v992
    %1335 = vmatpush.msra.mxu0 %v991
    %1336 = vmatpush.msra.mxu0 %v990
    %1337 = vmatmul.f32.gmra.mxu0 %v1319
    %v1338 = vpop.f32.mrf.mxu0
    %v1339 = vadd.f32 0.0, %v1338
    %1340 = vdwg.mxu0
    %v1342 = vrot.slane %v1339, 4
    %v1344 = vadd.f32 %v988, %v1342
    %v1345 = vtanh.pop %v1344
    %v1346 = vmul.f32 %v1345, 0.5
    %v1347 = vadd.f32 %v1346, 0.5
    %v1349 = vrot.slane %v1304, 6
    %v1351 = vmul.f32 %v1347, %v1349
    %1353 = vrot.lane.b32.xlu0 %v1345, 32
    %v1354 = vpop.permute.xlu0 %1353
    %v1356 = vmul.f32 %v1347, %v1354
    %1358 = vrot.lane.b32.xlu0 %v1356, 32
    %v1359 = vpop.permute.xlu0 %1358
    %v1361 = vadd.f32 %v1351, %v1359
    %v1362 = vtanh.pop %v1361
    %1364 = vrot.lane.b32.xlu0 %v1362, 32
    %v1365 = vpop.permute.xlu0 %1364
    %v1367 = vmul.f32 %v1347, %v1365
    %1369 = vrot.lane.b32.xlu0 %v1367, 64
    %v1370 = vpop.permute.xlu0 %1369
    %1372 = vst.msk [vmem:[#allocation3 + $0x8] sm:$0x30] %vm485, %v1370
    %v1373 = vrot.slane %v1367, 4
    %1374 = vrot.lane.b32.xlu0 %v1373, 64
    %v1375 = vpop.permute.xlu0 %1374
    %v1376 = vsel %vm323, %v1375, 0
    %1378 = vmatpush.msra.mxu0 0.0
    %1379 = vmatpush.msra.mxu0 0.0
    %1380 = vmatpush.msra.mxu0 0.0
    %1381 = vmatpush.msra.mxu0 0.0
    %1382 = vmatpush.msra.mxu0 0.0
    %1383 = vmatpush.msra.mxu0 0.0
    %1384 = vmatpush.msra.mxu0 0.0
    %1385 = vmatpush.msra.mxu0 0.0
    %1386 = vmatpush.msra.mxu0 0.0
    %1387 = vmatpush.msra.mxu0 0.0
    %1388 = vmatpush.msra.mxu0 0.0
    %1389 = vmatpush.msra.mxu0 0.0
    %1390 = vmatpush.msra.mxu0 %v993
    %1391 = vmatpush.msra.mxu0 %v992
    %1392 = vmatpush.msra.mxu0 %v991
    %1393 = vmatpush.msra.mxu0 %v990
    %1394 = vmatmul.f32.gmra.mxu0 %v1376
    %v1395 = vpop.f32.mrf.mxu0
    %v1396 = vadd.f32 0.0, %v1395
    %1397 = vdwg.mxu0
    %v1399 = vrot.slane %v1396, 2
    %v1401 = vadd.f32 %v988, %v1399
    %v1402 = vtanh.pop %v1401
    %v1403 = vmul.f32 %v1402, 0.5
    %v1404 = vadd.f32 %v1403, 0.5
    %v1406 = vrot.slane %v1361, 6
    %v1408 = vmul.f32 %v1404, %v1406
    %1410 = vrot.lane.b32.xlu0 %v1402, 32
    %v1411 = vpop.permute.xlu0 %1410
    %v1413 = vmul.f32 %v1404, %v1411
    %1415 = vrot.lane.b32.xlu0 %v1413, 32
    %v1416 = vpop.permute.xlu0 %1415
    %v1418 = vadd.f32 %v1408, %v1416
    %v1419 = vtanh.pop %v1418
    %1421 = vrot.lane.b32.xlu0 %v1419, 32
    %v1422 = vpop.permute.xlu0 %1421
    %v1424 = vmul.f32 %v1404, %v1422
    %1426 = vrot.lane.b32.xlu0 %v1424, 64
    %v1427 = vpop.permute.xlu0 %1426
    %1429 = vst.msk [vmem:[#allocation3 + $0x8] sm:$0xc0] %vm543, %v1427
    %v1430 = vld [vmem:[#allocation3] sm:$0xff]
    %v1431 = vld [vmem:[#allocation3 + $0x8] sm:$0xff]
    %v1432 = vld [vmem:[%s13] sm:$0xff]
    %v1433 = vld [vmem:[%s13 + $0x8] sm:$0xff]
    %v1434 = vld [vmem:[%s13 + $0x10] sm:$0xff]
    %v1435 = vld [vmem:[%s13 + $0x18] sm:$0xff]
    %v1436 = vld [vmem:[%s13 + $0x20] sm:$0xff]
    %v1437 = vld [vmem:[%s13 + $0x28] sm:$0xff]
    %v1438 = vld [vmem:[%s13 + $0x30] sm:$0xff]
    %v1439 = vld [vmem:[%s13 + $0x38] sm:$0xff]
    %v1440 = vld [vmem:[%s13 + $0x40] sm:$0xff]
    %v1441 = vld [vmem:[%s13 + $0x48] sm:$0xff]
    %v1442 = vld [vmem:[%s13 + $0x50] sm:$0xff]
    %v1443 = vld [vmem:[%s13 + $0x58] sm:$0xff]
    %v1444 = vld [vmem:[%s13 + $0x60] sm:$0xff]
    %v1445 = vld [vmem:[%s13 + $0x68] sm:$0xff]
    %v1446 = vld [vmem:[%s13 + $0x70] sm:$0xff]
    %v1447 = vld [vmem:[%s13 + $0x78] sm:$0xff]
    %v1448 = vld [vmem:[%s14] sm:$0x1]
    %1449 = vmatpush.msra.mxu0 0.0
    %1450 = vmatpush.msra.mxu0 0.0
    %1451 = vmatpush.msra.mxu0 0.0
    %1452 = vmatpush.msra.mxu0 0.0
    %1453 = vmatpush.msra.mxu0 0.0
    %1454 = vmatpush.msra.mxu0 0.0
    %1455 = vmatpush.msra.mxu0 0.0
    %1456 = vmatpush.msra.mxu0 0.0
    %1457 = vmatpush.msra.mxu0 0.0
    %1458 = vmatpush.msra.mxu0 0.0
    %1459 = vmatpush.msra.mxu0 0.0
    %1460 = vmatpush.msra.mxu0 0.0
    %1461 = vmatpush.msra.mxu0 0.0
    %1462 = vmatpush.msra.mxu0 0.0
    %1463 = vmatpush.msra.mxu0 %v1431
    %1464 = vmatpush.msra.mxu0 %v1430
    %1465 = vmatmul.f32.gmra.mxu0 %v129
    %v1466 = vpop.f32.mrf.mxu0
    %v1467 = vadd.f32 0.0, %v1466
    %1468 = vmatmul.f32.gmra.mxu0 %v132
    %v1469 = vpop.f32.mrf.mxu0
    %v1470 = vadd.f32 0.0, %v1469
    %1471 = vdwg.mxu0
    %v1473 = vsel %vm323, %v1467, 0
    %v1476 = vsel %vm323, %v1470, 0
    %1478 = vmatpush.msra.mxu0 0.0
    %1479 = vmatpush.msra.mxu0 0.0
    %1480 = vmatpush.msra.mxu0 0.0
    %1481 = vmatpush.msra.mxu0 0.0
    %1482 = vmatpush.msra.mxu0 0.0
    %1483 = vmatpush.msra.mxu0 0.0
    %1484 = vmatpush.msra.mxu0 0.0
    %1485 = vmatpush.msra.mxu0 0.0
    %1486 = vmatpush.msra.mxu0 0.0
    %1487 = vmatpush.msra.mxu0 0.0
    %1488 = vmatpush.msra.mxu0 0.0
    %1489 = vmatpush.msra.mxu0 0.0
    %1490 = vmatpush.msra.mxu0 %v1447
    %1491 = vmatpush.msra.mxu0 %v1446
    %1492 = vmatpush.msra.mxu0 %v1445
    %1493 = vmatpush.msra.mxu0 %v1444
    %1494 = vmatmul.f32.gmra.mxu0 %v1473
    %v1495 = vpop.f32.mrf.mxu0
    %v1496 = vadd.f32 0.0, %v1495
    %1497 = vmatmul.f32.gmra.mxu0 %v1476
    %v1498 = vpop.f32.mrf.mxu0
    %v1499 = vadd.f32 0.0, %v1498
    %1500 = vdwg.mxu0
    %v1502 = vsel %vm323, %v1430, 0
    %v1505 = vsel %vm323, %v1431, 0
    %1507 = vmatpush.msra.mxu0 0.0
    %1508 = vmatpush.msra.mxu0 0.0
    %1509 = vmatpush.msra.mxu0 0.0
    %1510 = vmatpush.msra.mxu0 0.0
    %1511 = vmatpush.msra.mxu0 0.0
    %1512 = vmatpush.msra.mxu0 0.0
    %1513 = vmatpush.msra.mxu0 0.0
    %1514 = vmatpush.msra.mxu0 0.0
    %1515 = vmatpush.msra.mxu0 0.0
    %1516 = vmatpush.msra.mxu0 0.0
    %1517 = vmatpush.msra.mxu0 0.0
    %1518 = vmatpush.msra.mxu0 0.0
    %1519 = vmatpush.msra.mxu0 %v1439
    %1520 = vmatpush.msra.mxu0 %v1438
    %1521 = vmatpush.msra.mxu0 %v1437
    %1522 = vmatpush.msra.mxu0 %v1436
    %1523 = vmatmul.f32.gmra.mxu0 %v1502
    %v1524 = vpop.f32.mrf.mxu0
    %v1525 = vadd.f32 %v1496, %v1524
    %1526 = vmatmul.f32.gmra.mxu0 %v1505
    %v1527 = vpop.f32.mrf.mxu0
    %v1528 = vadd.f32 %v1499, %v1527
    %1529 = vdwg.mxu0
    %v1531 = vperm.slane %v1448, 0
    %v1533 = vadd.f32 %v1525, %v1531
    %v1534 = vadd.f32 %v1528, %v1531
    %v1535 = vmax.f32 %v1533, 0.0
    %v1536 = vmax.f32 %v1534, 0.0
    %1537 = vmatpush.msra.mxu0 0.0
    %1538 = vmatpush.msra.mxu0 0.0
    %1539 = vmatpush.msra.mxu0 0.0
    %1540 = vmatpush.msra.mxu0 0.0
    %1541 = vmatpush.msra.mxu0 0.0
    %1542 = vmatpush.msra.mxu0 0.0
    %1543 = vmatpush.msra.mxu0 0.0
    %1544 = vmatpush.msra.mxu0 0.0
    %1545 = vmatpush.msra.mxu0 0.0
    %1546 = vmatpush.msra.mxu0 0.0
    %1547 = vmatpush.msra.mxu0 0.0
    %1548 = vmatpush.msra.mxu0 0.0
    %1549 = vmatpush.msra.mxu0 0.0
    %1550 = vmatpush.msra.mxu0 0.0
    %1551 = vmatpush.msra.mxu0 %v1431
    %1552 = vmatpush.msra.mxu0 %v1430
    %1553 = vmatmul.f32.gmra.mxu0 %v217
    %v1554 = vpop.f32.mrf.mxu0
    %v1555 = vadd.f32 0.0, %v1554
    %1556 = vmatmul.f32.gmra.mxu0 %v220
    %v1557 = vpop.f32.mrf.mxu0
    %v1558 = vadd.f32 0.0, %v1557
    %1559 = vdwg.mxu0
    %1560 = vmatpush.msra.mxu0 0.0
    %1561 = vmatpush.msra.mxu0 0.0
    %1562 = vmatpush.msra.mxu0 0.0
    %1563 = vmatpush.msra.mxu0 0.0
    %1564 = vmatpush.msra.mxu0 0.0
    %1565 = vmatpush.msra.mxu0 0.0
    %1566 = vmatpush.msra.mxu0 0.0
    %1567 = vmatpush.msra.mxu0 0.0
    %1568 = vmatpush.msra.mxu0 0.0
    %1569 = vmatpush.msra.mxu0 0.0
    %1570 = vmatpush.msra.mxu0 0.0
    %1571 = vmatpush.msra.mxu0 0.0
    %1572 = vmatpush.msra.mxu0 %v1443
    %1573 = vmatpush.msra.mxu0 %v1442
    %1574 = vmatpush.msra.mxu0 %v1441
    %1575 = vmatpush.msra.mxu0 %v1440
    %1576 = vmatmul.f32.gmra.mxu0 %v1502
    %v1577 = vpop.f32.mrf.mxu0
    %v1578 = vadd.f32 0.0, %v1577
    %1579 = vmatmul.f32.gmra.mxu0 %v1505
    %v1580 = vpop.f32.mrf.mxu0
    %v1581 = vadd.f32 0.0, %v1580
    %1582 = vdwg.mxu0
    %v1584 = vsel %vm323, %v1555, 0
    %v1587 = vsel %vm323, %v1558, 0
    %1589 = vmatpush.msra.mxu0 0.0
    %1590 = vmatpush.msra.mxu0 0.0
    %1591 = vmatpush.msra.mxu0 0.0
    %1592 = vmatpush.msra.mxu0 0.0
    %1593 = vmatpush.msra.mxu0 0.0
    %1594 = vmatpush.msra.mxu0 0.0
    %1595 = vmatpush.msra.mxu0 0.0
    %1596 = vmatpush.msra.mxu0 0.0
    %1597 = vmatpush.msra.mxu0 0.0
    %1598 = vmatpush.msra.mxu0 0.0
    %1599 = vmatpush.msra.mxu0 0.0
    %1600 = vmatpush.msra.mxu0 0.0
    %1601 = vmatpush.msra.mxu0 %v1435
    %1602 = vmatpush.msra.mxu0 %v1434
    %1603 = vmatpush.msra.mxu0 %v1433
    %1604 = vmatpush.msra.mxu0 %v1432
    %1605 = vmatmul.f32.gmra.mxu0 %v1584
    %v1606 = vpop.f32.mrf.mxu0
    %v1607 = vadd.f32 %v1578, %v1606
    %1608 = vmatmul.f32.gmra.mxu0 %v1587
    %v1609 = vpop.f32.mrf.mxu0
    %v1610 = vadd.f32 %v1581, %v1609
    %1611 = vdwg.mxu0
    %v1612 = vadd.f32 %v1607, %v1531
    %v1613 = vadd.f32 %v1610, %v1531
    %v1614 = vmax.f32 %v1612, 0.0
    %v1615 = vmax.f32 %v1613, 0.0
    %v1616 = vld [vmem:[%s15] sm:$0xff]
    %v1617 = vld [vmem:[%s15 + $0x8] sm:$0xff]
    %v1618 = vld [vmem:[%s15 + $0x10] sm:$0xff]
    %v1619 = vld [vmem:[%s15 + $0x18] sm:$0xff]
    %v1620 = vld [vmem:[%s15 + $0x20] sm:$0xff]
    %v1621 = vld [vmem:[%s15 + $0x28] sm:$0xff]
    %v1622 = vld [vmem:[%s16] sm:$0x1]
    %1623 = vmatpush.msra.mxu0 0.0
    %1624 = vmatpush.msra.mxu0 0.0
    %1625 = vmatpush.msra.mxu0 0.0
    %1626 = vmatpush.msra.mxu0 0.0
    %1627 = vmatpush.msra.mxu0 0.0
    %1628 = vmatpush.msra.mxu0 0.0
    %1629 = vmatpush.msra.mxu0 0.0
    %1630 = vmatpush.msra.mxu0 0.0
    %1631 = vmatpush.msra.mxu0 0.0
    %1632 = vmatpush.msra.mxu0 0.0
    %1633 = vmatpush.msra.mxu0 0.0
    %1634 = vmatpush.msra.mxu0 0.0
    %1635 = vmatpush.msra.mxu0 0.0
    %1636 = vmatpush.msra.mxu0 0.0
    %1637 = vmatpush.msra.mxu0 %v1615
    %1638 = vmatpush.msra.mxu0 %v1614
    %1639 = vmatmul.f32.gmra.mxu0 %v129
    %v1640 = vpop.f32.mrf.mxu0
    %v1641 = vadd.f32 0.0, %v1640
    %1642 = vmatmul.f32.gmra.mxu0 %v132
    %v1643 = vpop.f32.mrf.mxu0
    %v1644 = vadd.f32 0.0, %v1643
    %1645 = vdwg.mxu0
    %v1647 = vsel %vm127, %v1535, 0
    %v1650 = vsel %vm127, %v1536, 0
    %1652 = vmatpush.msra.mxu0 0.0
    %1653 = vmatpush.msra.mxu0 0.0
    %1654 = vmatpush.msra.mxu0 0.0
    %1655 = vmatpush.msra.mxu0 0.0
    %1656 = vmatpush.msra.mxu0 0.0
    %1657 = vmatpush.msra.mxu0 0.0
    %1658 = vmatpush.msra.mxu0 0.0
    %1659 = vmatpush.msra.mxu0 0.0
    %1660 = vmatpush.msra.mxu0 0.0
    %1661 = vmatpush.msra.mxu0 0.0
    %1662 = vmatpush.msra.mxu0 0.0
    %1663 = vmatpush.msra.mxu0 0.0
    %1664 = vmatpush.msra.mxu0 0.0
    %1665 = vmatpush.msra.mxu0 0.0
    %1666 = vmatpush.msra.mxu0 %v1619
    %1667 = vmatpush.msra.mxu0 %v1618
    %1668 = vmatmul.f32.gmra.mxu0 %v1647
    %v1669 = vpop.f32.mrf.mxu0
    %v1670 = vadd.f32 0.0, %v1669
    %1671 = vmatmul.f32.gmra.mxu0 %v1650
    %v1672 = vpop.f32.mrf.mxu0
    %v1673 = vadd.f32 0.0, %v1672
    %1674 = vdwg.mxu0
    %v1676 = vsel %vm127, %v1641, 0
    %v1679 = vsel %vm127, %v1644, 0
    %1681 = vmatpush.msra.mxu0 0.0
    %1682 = vmatpush.msra.mxu0 0.0
    %1683 = vmatpush.msra.mxu0 0.0
    %1684 = vmatpush.msra.mxu0 0.0
    %1685 = vmatpush.msra.mxu0 0.0
    %1686 = vmatpush.msra.mxu0 0.0
    %1687 = vmatpush.msra.mxu0 0.0
    %1688 = vmatpush.msra.mxu0 0.0
    %1689 = vmatpush.msra.mxu0 0.0
    %1690 = vmatpush.msra.mxu0 0.0
    %1691 = vmatpush.msra.mxu0 0.0
    %1692 = vmatpush.msra.mxu0 0.0
    %1693 = vmatpush.msra.mxu0 0.0
    %1694 = vmatpush.msra.mxu0 0.0
    %1695 = vmatpush.msra.mxu0 %v1617
    %1696 = vmatpush.msra.mxu0 %v1616
    %1697 = vmatmul.f32.gmra.mxu0 %v1676
    %v1698 = vpop.f32.mrf.mxu0
    %v1699 = vadd.f32 %v1670, %v1698
    %1700 = vmatmul.f32.gmra.mxu0 %v1679
    %v1701 = vpop.f32.mrf.mxu0
    %v1702 = vadd.f32 %v1673, %v1701
    %1703 = vdwg.mxu0
    %v1705 = vsel %vm127, %v1614, 0
    %v1708 = vsel %vm127, %v1615, 0
    %1710 = vmatpush.msra.mxu0 0.0
    %1711 = vmatpush.msra.mxu0 0.0
    %1712 = vmatpush.msra.mxu0 0.0
    %1713 = vmatpush.msra.mxu0 0.0
    %1714 = vmatpush.msra.mxu0 0.0
    %1715 = vmatpush.msra.mxu0 0.0
    %1716 = vmatpush.msra.mxu0 0.0
    %1717 = vmatpush.msra.mxu0 0.0
    %1718 = vmatpush.msra.mxu0 0.0
    %1719 = vmatpush.msra.mxu0 0.0
    %1720 = vmatpush.msra.mxu0 0.0
    %1721 = vmatpush.msra.mxu0 0.0
    %1722 = vmatpush.msra.mxu0 0.0
    %1723 = vmatpush.msra.mxu0 0.0
    %1724 = vmatpush.msra.mxu0 %v1621
    %1725 = vmatpush.msra.mxu0 %v1620
    %1726 = vmatmul.f32.gmra.mxu0 %v1705
    %v1727 = vpop.f32.mrf.mxu0
    %v1728 = vadd.f32 0.0, %v1727
    %1729 = vmatmul.f32.gmra.mxu0 %v1708
    %v1730 = vpop.f32.mrf.mxu0
    %v1731 = vadd.f32 0.0, %v1730
    %1732 = vdwg.mxu0
    %v1733 = vadd.f32 %v1699, %v1728
    %v1734 = vadd.f32 %v1702, %v1731
    %v1736 = vperm.slane %v1622, 0
    %v1738 = vadd.f32 %v1733, %v1736
    %v1739 = vadd.f32 %v1734, %v1736
    %v1740 = vtanh.pop %v1738
    %v1741 = vtanh.pop %v1739
    %1742 = vmatpush.msra.mxu0 0.0
    %1743 = vmatpush.msra.mxu0 0.0
    %1744 = vmatpush.msra.mxu0 0.0
    %1745 = vmatpush.msra.mxu0 0.0
    %1746 = vmatpush.msra.mxu0 0.0
    %1747 = vmatpush.msra.mxu0 0.0
    %1748 = vmatpush.msra.mxu0 0.0
    %1749 = vmatpush.msra.mxu0 0.0
    %1750 = vmatpush.msra.mxu0 0.0
    %1751 = vmatpush.msra.mxu0 0.0
    %1752 = vmatpush.msra.mxu0 0.0
    %1753 = vmatpush.msra.mxu0 0.0
    %1754 = vmatpush.msra.mxu0 0.0
    %1755 = vmatpush.msra.mxu0 0.0
    %1756 = vmatpush.msra.mxu0 %v1619
    %1757 = vmatpush.msra.mxu0 %v1618
    %1758 = vmatmul.f32.gmra.mxu0 %v1705
    %v1759 = vpop.f32.mrf.mxu0
    %v1760 = vadd.f32 0.0, %v1759
    %1761 = vmatmul.f32.gmra.mxu0 %v1708
    %v1762 = vpop.f32.mrf.mxu0
    %v1763 = vadd.f32 0.0, %v1762
    %1764 = vdwg.mxu0
    %1765 = vmatpush.msra.mxu0 0.0
    %1766 = vmatpush.msra.mxu0 0.0
    %1767 = vmatpush.msra.mxu0 0.0
    %1768 = vmatpush.msra.mxu0 0.0
    %1769 = vmatpush.msra.mxu0 0.0
    %1770 = vmatpush.msra.mxu0 0.0
    %1771 = vmatpush.msra.mxu0 0.0
    %1772 = vmatpush.msra.mxu0 0.0
    %1773 = vmatpush.msra.mxu0 0.0
    %1774 = vmatpush.msra.mxu0 0.0
    %1775 = vmatpush.msra.mxu0 0.0
    %1776 = vmatpush.msra.mxu0 0.0
    %1777 = vmatpush.msra.mxu0 0.0
    %1778 = vmatpush.msra.mxu0 0.0
    %1779 = vmatpush.msra.mxu0 %v1617
    %1780 = vmatpush.msra.mxu0 %v1616
    %1781 = vmatmul.f32.gmra.mxu0 %v1647
    %v1782 = vpop.f32.mrf.mxu0
    %v1783 = vadd.f32 %v1760, %v1782
    %1784 = vmatmul.f32.gmra.mxu0 %v1650
    %v1785 = vpop.f32.mrf.mxu0
    %v1786 = vadd.f32 %v1763, %v1785
    %1787 = vdwg.mxu0
    %1788 = vmatpush.msra.mxu0 0.0
    %1789 = vmatpush.msra.mxu0 0.0
    %1790 = vmatpush.msra.mxu0 0.0
    %1791 = vmatpush.msra.mxu0 0.0
    %1792 = vmatpush.msra.mxu0 0.0
    %1793 = vmatpush.msra.mxu0 0.0
    %1794 = vmatpush.msra.mxu0 0.0
    %1795 = vmatpush.msra.mxu0 0.0
    %1796 = vmatpush.msra.mxu0 0.0
    %1797 = vmatpush.msra.mxu0 0.0
    %1798 = vmatpush.msra.mxu0 0.0
    %1799 = vmatpush.msra.mxu0 0.0
    %1800 = vmatpush.msra.mxu0 0.0
    %1801 = vmatpush.msra.mxu0 0.0
    %1802 = vmatpush.msra.mxu0 %v1536
    %1803 = vmatpush.msra.mxu0 %v1535
    %1804 = vmatmul.f32.gmra.mxu0 %v217
    %v1805 = vpop.f32.mrf.mxu0
    %v1806 = vadd.f32 0.0, %v1805
    %1807 = vmatmul.f32.gmra.mxu0 %v220
    %v1808 = vpop.f32.mrf.mxu0
    %v1809 = vadd.f32 0.0, %v1808
    %1810 = vdwg.mxu0
    %v1812 = vsel %vm127, %v1806, 0
    %v1815 = vsel %vm127, %v1809, 0
    %1817 = vmatpush.msra.mxu0 0.0
    %1818 = vmatpush.msra.mxu0 0.0
    %1819 = vmatpush.msra.mxu0 0.0
    %1820 = vmatpush.msra.mxu0 0.0
    %1821 = vmatpush.msra.mxu0 0.0
    %1822 = vmatpush.msra.mxu0 0.0
    %1823 = vmatpush.msra.mxu0 0.0
    %1824 = vmatpush.msra.mxu0 0.0
    %1825 = vmatpush.msra.mxu0 0.0
    %1826 = vmatpush.msra.mxu0 0.0
    %1827 = vmatpush.msra.mxu0 0.0
    %1828 = vmatpush.msra.mxu0 0.0
    %1829 = vmatpush.msra.mxu0 0.0
    %1830 = vmatpush.msra.mxu0 0.0
    %1831 = vmatpush.msra.mxu0 %v1621
    %1832 = vmatpush.msra.mxu0 %v1620
    %1833 = vmatmul.f32.gmra.mxu0 %v1812
    %v1834 = vpop.f32.mrf.mxu0
    %v1835 = vadd.f32 0.0, %v1834
    %1836 = vmatmul.f32.gmra.mxu0 %v1815
    %v1837 = vpop.f32.mrf.mxu0
    %v1838 = vadd.f32 0.0, %v1837
    %1839 = vdwg.mxu0
    %v1840 = vadd.f32 %v1783, %v1835
    %v1841 = vadd.f32 %v1786, %v1838
    %v1842 = vadd.f32 %v1840, %v1736
    %v1843 = vadd.f32 %v1841, %v1736
    %v1844 = vtanh.pop %v1842
    %v1845 = vtanh.pop %v1843
    %1846 = vst [vmem:[%s17] sm:$0xff] %v1740
    %1847 = vst [vmem:[%s17 + $0x8] sm:$0xff] %v1741
    %1848 = vst [vmem:[%s17 + $0x10] sm:$0xff] %v1844
    %1849 = vst [vmem:[%s17 + $0x18] sm:$0xff] %v1845
    // Predicated region
    $region70: #{forward.1} parent=1 // pred_check
      _
    $region71: #{forward.1} parent=1 // pred_check_branch
      %1851 = sbr.rel (0) target = $region73
    $region72: #{forward.1} parent=1 // pred_region
      _
    $region73: #{forward.1} parent=1 // pred_fallthru
      _
    // Predicated region
    $region74: #{forward.1} parent=1 // pred_check
      _
    $region75: #{forward.1} parent=1 // pred_check_branch
      %1853 = sbr.rel (0) target = $region77
    $region76: #{forward.1} parent=1 // pred_region
      %1855 = vsyncadd [#allocation5], 0
      %s1856 = sshll.u32 [#allocation4], 4
      %s1857 = int_to_ptr.vmem [resolvable:$true] %s1856
      %s1858 = sshll.u32 %s18, 4
      %s1859 = int_to_ptr.hbm [resolvable:$true] %s1858
      %1864 = dma.vmem_to_hbm [thread:$0]  %s1857, 256, %s1859, [#allocation5], 128, 128, 8
    $region77: #{forward.1} parent=1 // pred_fallthru
      _
    // Predicated region
    $region78: #{forward.1} parent=1 // pred_check
      _
    $region79: #{forward.1} parent=1 // pred_check_branch
      %1866 = sbr.rel (0) target = $region81
    $region80: #{forward.1} parent=1 // pred_region
      _
    $region81: #{forward.1} parent=1 // pred_fallthru
      _
    // Predicated region
    $region82: #{forward.1} parent=1 // pred_check
      _
    $region83: #{forward.1} parent=1 // pred_check_branch
      %1868 = sbr.rel (0) target = $region85
    $region84: #{forward.1} parent=1 // pred_region
      %1870 = dma.done [#allocation5], 256
    $region85: #{forward.1} parent=1 // pred_fallthru
      _
    %1871 = vsyncpa [#allocation5], 1

</llo_original>
